<compile_context>
chip_gen: v6e
topology: v6e:2x2x1
jax: 0.10.0
libtpu: 0.0.40
codegen_flags: <defaults>
</compile_context>

<pallas_src>
import functools

import jax
import jax.numpy as jnp
from jax.experimental import pallas as pl
from jax.experimental.pallas import tpu as pltpu

LANE = 128  # TPU lane width; channel dims are padded to multiples of this.


# ---------------------------------------------------------------------------
# Small helpers
# ---------------------------------------------------------------------------
def _round_up(x, m):
    return (x + m - 1) // m * m


def _pick_tile(dim, max_tile, align):
    """Largest multiple of `align` <= max_tile that divides `dim` (dim % align == 0)."""
    t = min(max_tile, dim)
    t = (t // align) * align
    while dim % t:
        t -= align
    return max(t, align)


# ---------------------------------------------------------------------------
# Pallas kernel: tiled matmul + fused (bias / residual-add / relu) epilogue
# ---------------------------------------------------------------------------
def _fused_mm_kernel(*refs, relu, has_bias, has_skip):
    x_ref, w_ref = refs[0], refs[1]
    pos = 2
    b_ref = refs[pos] if has_bias else None
    pos += int(has_bias)
    s_ref = refs[pos] if has_skip else None
    pos += int(has_skip)
    o_ref, acc_ref = refs[pos], refs[pos + 1]

    k = pl.program_id(2)

    @pl.when(k == 0)
    def _init():
        acc_ref[...] = jnp.zeros_like(acc_ref)

    acc_ref[...] += jnp.dot(x_ref[...], w_ref[...],
                            preferred_element_type=jnp.float32)

    @pl.when(k == pl.num_programs(2) - 1)
    def _epilogue():
        y = acc_ref[...]
        if has_bias:
            y = y + b_ref[...]                      # folded-BN bias (f32)
        if has_skip:
            y = y + s_ref[...].astype(jnp.float32)  # residual
        if relu:
            y = jnp.maximum(y, 0.0)
        o_ref[...] = y.astype(o_ref.dtype)


def fused_matmul(x2d, w, bias=None, skip=None, relu=False,
                 out_dtype=jnp.bfloat16):
    """y = [relu]( x2d @ w + bias + skip ), tiled over (M, N, K) with f32 acc.

    x2d: (M, K), w: (K, N), bias: (1, N) f32 or None, skip: (M, N) or None.
    K and N must be multiples of 128 (padded at parameter-prep time).
    """
    M, K = x2d.shape
    K2, N = w.shape
    assert K == K2 and K % LANE == 0 and N % LANE == 0

    # Tile sizes: MXU/lane aligned, K padded dims always divide cleanly.
    tm = min(512, _round_up(M, 16))
    tn = _pick_tile(N, 256, LANE)
    tk = _pick_tile(K, 512, LANE)
    m_pad = _round_up(M, tm)

    if m_pad != M:
        x2d = jnp.pad(x2d, ((0, m_pad - M), (0, 0)))
        if skip is not None:
            skip = jnp.pad(skip, ((0, m_pad - M), (0, 0)))

    # bf16 MXU feed; accumulation stays f32 in VMEM scratch.
    x2d = x2d.astype(jnp.bfloat16)
    w = w.astype(jnp.bfloat16)

    grid = (m_pad // tm, N // tn, K // tk)

    in_specs = [
        pl.BlockSpec((tm, tk), lambda i, j, k: (i, k)),
        pl.BlockSpec((tk, tn), lambda i, j, k: (k, j)),
    ]
    args = [x2d, w]
    if bias is not None:
        in_specs.append(pl.BlockSpec((1, tn), lambda i, j, k: (0, j)))
        args.append(bias.astype(jnp.float32))
    if skip is not None:
        in_specs.append(pl.BlockSpec((tm, tn), lambda i, j, k: (i, j)))
        args.append(skip)

    kern = functools.partial(_fused_mm_kernel, relu=relu,
                             has_bias=bias is not None,
                             has_skip=skip is not None)

    out = pl.pallas_call(
        kern,
        out_shape=jax.ShapeDtypeStruct((m_pad, N), out_dtype),
        grid=grid,
        in_specs=in_specs,
        out_specs=pl.BlockSpec((tm, tn), lambda i, j, k: (i, j)),
        scratch_shapes=[pltpu.VMEM((tm, tn), jnp.float32)],
        compiler_params=pltpu.CompilerParams(
            dimension_semantics=("parallel", "parallel", "arbitrary")),
    )(*args)

    return out[:M] if m_pad != M else out


# ---------------------------------------------------------------------------
# Plain-JAX glue: layout conversions, im2col, BN folding, parameter prep
# ---------------------------------------------------------------------------
def fold_bn(gamma, beta, mean, var, eps=1e-5):
    s = gamma / jnp.sqrt(var + eps)
    b = beta - mean * s
    return s, b


def pad_bias(b, n_pad):
    return jnp.pad(b, ((0, n_pad - b.shape[0]),)).reshape(1, n_pad)


def conv1x1_to_mat(w_oihw, scale, kin_pad, nout_pad):
    """PyTorch (O, C, 1, 1) -> matmul layout (kin_pad, nout_pad) with BN scale folded."""
    O, C = w_oihw.shape[0], w_oihw.shape[1]
    w = jnp.transpose(w_oihw[:, :, 0, 0], (1, 0))  # (C, O)
    if scale is not None:
        w = w * scale.reshape(1, O)
    w = jnp.pad(w, ((0, kin_pad - C), (0, nout_pad - O)))
    return w.astype(jnp.bfloat16)


def conv3x3_to_mat(w_oihw, scale, cin_pad, cout_pad):
    """PyTorch (O, C, 3, 3) -> (9*cin_pad, cout_pad), matching im2col tap order."""
    O, C = w_oihw.shape[0], w_oihw.shape[1]
    w = jnp.transpose(w_oihw, (2, 3, 1, 0))  # (ky, kx, C, O)
    w = w * scale.reshape(1, 1, 1, O)
    w = jnp.pad(w, ((0, 0), (0, 0), (0, cin_pad - C), (0, cout_pad - O)))
    return w.reshape(9 * cin_pad, cout_pad).astype(jnp.bfloat16)


def im2col_3x3(x_nhwc, stride):
    """3x3 conv, padding=1, stride=stride -> (N*Ho*Wo, 9*C) patch matrix.

    TODO(synk): the im2col matrix is still materialized in HBM (~9x traffic on
    the dominant conv2 layer); fold the 9-tap gather into the kernel's K grid
    axis / a spatially tiled conv kernel to eliminate it.
    """
    N, H, W, C = x_nhwc.shape
    xp = jnp.pad(x_nhwc, ((0, 0), (1, 1), (1, 1), (0, 0)))
    Ho = (H + 2 - 3) // stride + 1
    Wo = (W + 2 - 3) // stride + 1
    cols = []
    for ky in range(3):
        for kx in range(3):
            patch = xp[:,
                       ky:ky + (Ho - 1) * stride + 1:stride,
                       kx:kx + (Wo - 1) * stride + 1:stride,
                       :]
            cols.append(patch)
    cols = jnp.concatenate(cols, axis=-1)            # (N, Ho, Wo, 9*C)
    return cols.reshape(N * Ho * Wo, 9 * C), (N, Ho, Wo)


def init_params(key, in_channels, out_channels, times, scale=4):
    """Random params in PyTorch layout, pre-folded (BN scale -> weights) and
    channel-padded to multiples of 128 for lane-dense TPU matmuls."""
    c4 = out_channels * scale
    cin_p = _round_up(in_channels, LANE)
    cout_p = _round_up(out_channels, LANE)
    c4_p = _round_up(c4, LANE)

    n_keys = 5 + 4 * (1 + 3 * times)   # 5 convs + 4 keys per BN
    ks = iter(jax.random.split(key, n_keys))

    def conv(shape):
        return 0.1 * jax.random.normal(next(ks), shape, dtype=jnp.float32)

    def bn(c):
        gamma = 1.0 + 0.1 * jax.random.normal(next(ks), (c,), dtype=jnp.float32)
        beta = 0.1 * jax.random.normal(next(ks), (c,), dtype=jnp.float32)
        mean = 0.1 * jax.random.normal(next(ks), (c,), dtype=jnp.float32)
        var = 1.0 + 0.1 * jnp.abs(jax.random.normal(next(ks), (c,), dtype=jnp.float32))
        return fold_bn(gamma, beta, mean, var)

    w_conv_input = conv((out_channels, in_channels, 1, 1))
    w_skip = conv((out_channels, out_channels, 1, 1))
    w_conv1 = conv((c4, out_channels, 1, 1))
    w_conv2 = conv((c4, c4, 3, 3))
    w_conv3 = conv((out_channels, c4, 1, 1))

    s_skip, b_skip = bn(out_channels)
    norms1 = [bn(c4) for _ in range(times)]
    norms2 = [bn(c4) for _ in range(times)]
    norms3 = [bn(out_channels) for _ in range(times)]

    params = {
        "conv_input_w": conv1x1_to_mat(w_conv_input, None, cin_p, cout_p),
        "skip_w": conv1x1_to_mat(w_skip, s_skip, cout_p, cout_p),
        "skip_b": pad_bias(b_skip, cout_p),
        # conv1/conv2/conv3 weights are shared across t, but each t has its own
        # BN scale -> fold per-t on the host (one-time prep).
        "conv1_w": [conv1x1_to_mat(w_conv1, norms1[t][0], cout_p, c4_p) for t in range(times)],
        "b1": [pad_bias(norms1[t][1], c4_p) for t in range(times)],
        "conv2_w": [conv3x3_to_mat(w_conv2, norms2[t][0], c4_p, c4_p) for t in range(times)],
        "b2": [pad_bias(norms2[t][1], c4_p) for t in range(times)],
        "conv3_w": [conv1x1_to_mat(w_conv3, norms3[t][0], c4_p, cout_p) for t in range(times)],
        "b3": [pad_bias(norms3[t][1], cout_p) for t in range(times)],
    }
    return params


# ---------------------------------------------------------------------------
# CORblock_S forward
# ---------------------------------------------------------------------------
def corblock_s_forward(inp_nchw, params, times, out_channels):
    cin_p = params["conv_input_w"].shape[0]
    cout_p = params["conv_input_w"].shape[1]
    c4_p = params["conv1_w"][0].shape[1]

    # NCHW (PyTorch) -> NHWC, pad channels to a lane multiple (zero padding is
    # preserved through every layer because the padded weight rows/cols and
    # biases are zero, and relu(0) == 0).
    x = jnp.transpose(inp_nchw, (0, 2, 3, 1)).astype(jnp.float32)
    N, H, W, Cin = x.shape
    x = jnp.pad(x, ((0, 0), (0, 0), (0, 0), (0, cin_p - Cin)))

    # conv_input: 1x1, no norm, no nonlinearity.
    x = fused_matmul(x.reshape(-1, cin_p), params["conv_input_w"],
                     relu=False).reshape(N, H, W, cout_p)

    for t in range(times):
        Nh, Hh, Wh, _ = x.shape
        if t == 0:
            # skip = norm_skip(skip_conv(x)); 1x1 stride-2 conv == subsample.
            # TODO(synk): do the stride-2 subsample via the BlockSpec index_map
            # instead of a JAX strided slice to save one activation round-trip.
            xs = x[:, ::2, ::2, :]
            Hs, Ws = xs.shape[1], xs.shape[2]
            skip = fused_matmul(xs.reshape(-1, cout_p), params["skip_w"],
                                bias=params["skip_b"],
                                relu=False).reshape(Nh, Hs, Ws, cout_p)
            stride = 2
        else:
            skip = x
            stride = 1

        # conv1 (1x1) + norm1_t + relu
        h = fused_matmul(x.reshape(-1, cout_p), params["conv1_w"][t],
                         bias=params["b1"][t],
                         relu=True).reshape(Nh, Hh, Wh, c4_p)

        # conv2 (3x3, stride 2 at t==0 else 1, pad 1) + norm2_t + relu
        cols, (Nh2, Ho, Wo) = im2col_3x3(h, stride)
        h = fused_matmul(cols, params["conv2_w"][t], bias=params["b2"][t],
                         relu=True).reshape(Nh2, Ho, Wo, c4_p)

        # conv3 (1x1) + norm3_t + residual add + relu, fused in one kernel
        x = fused_matmul(h.reshape(-1, c4_p), params["conv3_w"][t],
                         bias=params["b3"][t],
                         skip=skip.reshape(-1, cout_p),
                         relu=True).reshape(Nh2, Ho, Wo, cout_p)

    # Drop channel padding, back to NCHW (matches PyTorch output layout).
    out = x[..., :out_channels].astype(jnp.float32)
    return jnp.transpose(out, (0, 3, 1, 2))


# ---------------------------------------------------------------------------
if __name__ == "__main__":
    batch, in_ch, out_ch, hw, times = 2, 4, 8, 16, 2

    key = jax.random.PRNGKey(0)
    k_inp, k_par = jax.random.split(key)
    x_nchw = jax.random.normal(k_inp, (batch, in_ch, hw, hw), dtype=jnp.float32)
    params = init_params(k_par, in_ch, out_ch, times)

    fwd = jax.jit(lambda inp, p: corblock_s_forward(inp, p, times=times,
                                                    out_channels=out_ch))
    out = jax.block_until_ready(fwd(x_nchw, params))

    expected_shape = (batch, out_ch, hw // 2, hw // 2)
    assert out.shape == expected_shape, (out.shape, expected_shape)
    assert bool(jnp.all(jnp.isfinite(out)))
    print("KERNEL_OK")
</pallas_src>

<mosaic_0001>
module attributes {stable_mosaic.version = 11 : i64} {
  func.func @_fused_mm_kernel(%arg0: i32, %arg1: i32, %arg2: i32, %arg3: memref<512x128xbf16, #tpu.memory_space<vmem>>, %arg4: memref<128x128xbf16, #tpu.memory_space<vmem>>, %arg5: memref<512x128xbf16, #tpu.memory_space<vmem>>, %arg6: memref<512x128xf32, #tpu.memory_space<vmem>>) attributes {dimension_semantics = [#tpu.dimension_semantics<parallel>, #tpu.dimension_semantics<parallel>, #tpu.dimension_semantics<arbitrary>], iteration_bounds = array<i64: 1, 1, 1>, scalar_prefetch = 0 : i64, scratch_operands = 1 : i64, tpu.core_type = #tpu.core_type<tc>, window_params = [{transform_indices = @transform_0, window_bounds = array<i64: 512, 128>}, {transform_indices = @transform_1, window_bounds = array<i64: 128, 128>}, {transform_indices = @transform_2, window_bounds = array<i64: 512, 128>}]} {
    %c0_i32 = arith.constant 0 : i32
    %0 = arith.cmpi eq, %arg2, %c0_i32 : i32
    %1 = arith.extui %0 : i1 to i32
    %c0_i32_0 = arith.constant 0 : i32
    %2 = arith.cmpi ne, %1, %c0_i32_0 : i32
    scf.if %2 {
      %cst_10 = arith.constant 0.000000e+00 : f32
      %12 = vector.broadcast %cst_10 : f32 to vector<512x128xf32>
      %c0_11 = arith.constant 0 : index
      %c0_12 = arith.constant 0 : index
      %13 = vector.load %arg6[%c0_11, %c0_12] : memref<512x128xf32, #tpu.memory_space<vmem>>, vector<512x128xf32>
      tpu.vector_store %arg6[%c0_11, %c0_12], %12 {strides = array<i32>} : memref<512x128xf32, #tpu.memory_space<vmem>>, vector<512x128xf32>,
    } else {
    }
    %c0 = arith.constant 0 : index
    %c0_1 = arith.constant 0 : index
    %3 = vector.load %arg6[%c0, %c0_1] : memref<512x128xf32, #tpu.memory_space<vmem>>, vector<512x128xf32>
    %c0_2 = arith.constant 0 : index
    %c0_3 = arith.constant 0 : index
    %4 = vector.load %arg3[%c0_2, %c0_3] : memref<512x128xbf16, #tpu.memory_space<vmem>>, vector<512x128xbf16>
    %c0_4 = arith.constant 0 : index
    %c0_5 = arith.constant 0 : index
    %5 = vector.load %arg4[%c0_4, %c0_5] : memref<128x128xbf16, #tpu.memory_space<vmem>>, vector<128x128xbf16>
    %cst = arith.constant dense<0.000000e+00> : vector<512x128xf32>
    %6 = tpu.matmul %4, %5, %cst {dimension_numbers = #tpu.dot_dimension_numbers<[1], [0], [0], [1], [0, 0, 1, 1], [], []>} : vector<512x128xbf16>, vector<128x128xbf16>, vector<512x128xf32> -> vector<512x128xf32>
    %7 = arith.addf %3, %6 : vector<512x128xf32>
    %c0_6 = arith.constant 0 : index
    %c0_7 = arith.constant 0 : index
    %8 = vector.load %arg6[%c0_6, %c0_7] : memref<512x128xf32, #tpu.memory_space<vmem>>, vector<512x128xf32>
    tpu.vector_store %arg6[%c0_6, %c0_7], %7 {strides = array<i32>} : memref<512x128xf32, #tpu.memory_space<vmem>>, vector<512x128xf32>,
    %c0_i32_8 = arith.constant 0 : i32
    %9 = arith.cmpi eq, %arg2, %c0_i32_8 : i32
    %10 = arith.extui %9 : i1 to i32
    %c0_i32_9 = arith.constant 0 : i32
    %11 = arith.cmpi ne, %10, %c0_i32_9 : i32
    scf.if %11 {
      %c0_10 = arith.constant 0 : index
      %c0_11 = arith.constant 0 : index
      %12 = vector.load %arg6[%c0_10, %c0_11] : memref<512x128xf32, #tpu.memory_space<vmem>>, vector<512x128xf32>
      %13 = arith.truncf %12 : vector<512x128xf32> to vector<512x128xbf16>
      %c0_12 = arith.constant 0 : index
      %c0_13 = arith.constant 0 : index
      %14 = vector.load %arg5[%c0_12, %c0_13] : memref<512x128xbf16, #tpu.memory_space<vmem>>, vector<512x128xbf16>
      tpu.vector_store %arg5[%c0_12, %c0_13], %13 {strides = array<i32>} : memref<512x128xbf16, #tpu.memory_space<vmem>>, vector<512x128xbf16>,
    } else {
    }
    return
  }
  func.func @transform_0(%arg0: i32, %arg1: i32, %arg2: i32) -> (i32, i32) {
    %c0_i32 = arith.constant 0 : i32
    return %arg0, %arg2 : i32, i32
  }
  func.func @transform_1(%arg0: i32, %arg1: i32, %arg2: i32) -> (i32, i32) {
    %c0_i32 = arith.constant 0 : i32
    return %arg2, %arg1 : i32, i32
  }
  func.func @transform_2(%arg0: i32, %arg1: i32, %arg2: i32) -> (i32, i32) {
    %c0_i32 = arith.constant 0 : i32
    return %arg0, %arg1 : i32, i32
  }
}

module attributes {stable_mosaic.version = 11 : i64} {
  func.func @_fused_mm_kernel(%arg0: i32, %arg1: i32, %arg2: i32, %arg3: memref<128x128xbf16, #tpu.memory_space<vmem>>, %arg4: memref<128x128xbf16, #tpu.memory_space<vmem>>, %arg5: memref<1x128xf32, #tpu.memory_space<vmem>>, %arg6: memref<128x128xbf16, #tpu.memory_space<vmem>>, %arg7: memref<128x128xf32, #tpu.memory_space<vmem>>) attributes {dimension_semantics = [#tpu.dimension_semantics<parallel>, #tpu.dimension_semantics<parallel>, #tpu.dimension_semantics<arbitrary>], iteration_bounds = array<i64: 1, 1, 1>, scalar_prefetch = 0 : i64, scratch_operands = 1 : i64, tpu.core_type = #tpu.core_type<tc>, window_params = [{transform_indices = @transform_0, window_bounds = array<i64: 128, 128>}, {transform_indices = @transform_1, window_bounds = array<i64: 128, 128>}, {transform_indices = @transform_2, window_bounds = array<i64: 1, 128>}, {transform_indices = @transform_3, window_bounds = array<i64: 128, 128>}]} {
    %c0_i32 = arith.constant 0 : i32
    %0 = arith.cmpi eq, %arg2, %c0_i32 : i32
    %1 = arith.extui %0 : i1 to i32
    %c0_i32_0 = arith.constant 0 : i32
    %2 = arith.cmpi ne, %1, %c0_i32_0 : i32
    scf.if %2 {
      %cst_10 = arith.constant 0.000000e+00 : f32
      %12 = vector.broadcast %cst_10 : f32 to vector<128x128xf32>
      %c0_11 = arith.constant 0 : index
      %c0_12 = arith.constant 0 : index
      %13 = vector.load %arg7[%c0_11, %c0_12] : memref<128x128xf32, #tpu.memory_space<vmem>>, vector<128x128xf32>
      tpu.vector_store %arg7[%c0_11, %c0_12], %12 {strides = array<i32>} : memref<128x128xf32, #tpu.memory_space<vmem>>, vector<128x128xf32>,
    } else {
    }
    %c0 = arith.constant 0 : index
    %c0_1 = arith.constant 0 : index
    %3 = vector.load %arg7[%c0, %c0_1] : memref<128x128xf32, #tpu.memory_space<vmem>>, vector<128x128xf32>
    %c0_2 = arith.constant 0 : index
    %c0_3 = arith.constant 0 : index
    %4 = vector.load %arg3[%c0_2, %c0_3] : memref<128x128xbf16, #tpu.memory_space<vmem>>, vector<128x128xbf16>
    %c0_4 = arith.constant 0 : index
    %c0_5 = arith.constant 0 : index
    %5 = vector.load %arg4[%c0_4, %c0_5] : memref<128x128xbf16, #tpu.memory_space<vmem>>, vector<128x128xbf16>
    %cst = arith.constant dense<0.000000e+00> : vector<128x128xf32>
    %6 = tpu.matmul %4, %5, %cst {dimension_numbers = #tpu.dot_dimension_numbers<[1], [0], [0], [1], [0, 0, 1, 1], [], []>} : vector<128x128xbf16>, vector<128x128xbf16>, vector<128x128xf32> -> vector<128x128xf32>
    %7 = arith.addf %3, %6 : vector<128x128xf32>
    %c0_6 = arith.constant 0 : index
    %c0_7 = arith.constant 0 : index
    %8 = vector.load %arg7[%c0_6, %c0_7] : memref<128x128xf32, #tpu.memory_space<vmem>>, vector<128x128xf32>
    tpu.vector_store %arg7[%c0_6, %c0_7], %7 {strides = array<i32>} : memref<128x128xf32, #tpu.memory_space<vmem>>, vector<128x128xf32>,
    %c0_i32_8 = arith.constant 0 : i32
    %9 = arith.cmpi eq, %arg2, %c0_i32_8 : i32
    %10 = arith.extui %9 : i1 to i32
    %c0_i32_9 = arith.constant 0 : i32
    %11 = arith.cmpi ne, %10, %c0_i32_9 : i32
    scf.if %11 {
      %c0_10 = arith.constant 0 : index
      %c0_11 = arith.constant 0 : index
      %12 = vector.load %arg7[%c0_10, %c0_11] : memref<128x128xf32, #tpu.memory_space<vmem>>, vector<128x128xf32>
      %c0_12 = arith.constant 0 : index
      %c0_13 = arith.constant 0 : index
      %13 = vector.load %arg5[%c0_12, %c0_13] : memref<1x128xf32, #tpu.memory_space<vmem>>, vector<1x128xf32>
      %14 = vector.broadcast %13 : vector<1x128xf32> to vector<128x128xf32>
      %15 = arith.addf %12, %14 : vector<128x128xf32>
      %16 = arith.truncf %15 : vector<128x128xf32> to vector<128x128xbf16>
      %c0_14 = arith.constant 0 : index
      %c0_15 = arith.constant 0 : index
      %17 = vector.load %arg6[%c0_14, %c0_15] : memref<128x128xbf16, #tpu.memory_space<vmem>>, vector<128x128xbf16>
      tpu.vector_store %arg6[%c0_14, %c0_15], %16 {strides = array<i32>} : memref<128x128xbf16, #tpu.memory_space<vmem>>, vector<128x128xbf16>,
    } else {
    }
    return
  }
  func.func @transform_0(%arg0: i32, %arg1: i32, %arg2: i32) -> (i32, i32) {
    %c0_i32 = arith.constant 0 : i32
    return %arg0, %arg2 : i32, i32
  }
  func.func @transform_1(%arg0: i32, %arg1: i32, %arg2: i32) -> (i32, i32) {
    %c0_i32 = arith.constant 0 : i32
    return %arg2, %arg1 : i32, i32
  }
  func.func @transform_2(%arg0: i32, %arg1: i32, %arg2: i32) -> (i32, i32) {
    %c0_i32 = arith.constant 0 : i32
    %c0_i32_0 = arith.constant 0 : i32
    return %c0_i32, %arg1 : i32, i32
  }
  func.func @transform_3(%arg0: i32, %arg1: i32, %arg2: i32) -> (i32, i32) {
    %c0_i32 = arith.constant 0 : i32
    return %arg0, %arg1 : i32, i32
  }
}

module attributes {stable_mosaic.version = 11 : i64} {
  func.func @_fused_mm_kernel(%arg0: i32, %arg1: i32, %arg2: i32, %arg3: memref<512x128xbf16, #tpu.memory_space<vmem>>, %arg4: memref<128x128xbf16, #tpu.memory_space<vmem>>, %arg5: memref<1x128xf32, #tpu.memory_space<vmem>>, %arg6: memref<512x128xbf16, #tpu.memory_space<vmem>>, %arg7: memref<512x128xf32, #tpu.memory_space<vmem>>) attributes {dimension_semantics = [#tpu.dimension_semantics<parallel>, #tpu.dimension_semantics<parallel>, #tpu.dimension_semantics<arbitrary>], iteration_bounds = array<i64: 1, 1, 1>, scalar_prefetch = 0 : i64, scratch_operands = 1 : i64, tpu.core_type = #tpu.core_type<tc>, window_params = [{transform_indices = @transform_0, window_bounds = array<i64: 512, 128>}, {transform_indices = @transform_1, window_bounds = array<i64: 128, 128>}, {transform_indices = @transform_2, window_bounds = array<i64: 1, 128>}, {transform_indices = @transform_3, window_bounds = array<i64: 512, 128>}]} {
    %c0_i32 = arith.constant 0 : i32
    %0 = arith.cmpi eq, %arg2, %c0_i32 : i32
    %1 = arith.extui %0 : i1 to i32
    %c0_i32_0 = arith.constant 0 : i32
    %2 = arith.cmpi ne, %1, %c0_i32_0 : i32
    scf.if %2 {
      %cst_10 = arith.constant 0.000000e+00 : f32
      %12 = vector.broadcast %cst_10 : f32 to vector<512x128xf32>
      %c0_11 = arith.constant 0 : index
      %c0_12 = arith.constant 0 : index
      %13 = vector.load %arg7[%c0_11, %c0_12] : memref<512x128xf32, #tpu.memory_space<vmem>>, vector<512x128xf32>
      tpu.vector_store %arg7[%c0_11, %c0_12], %12 {strides = array<i32>} : memref<512x128xf32, #tpu.memory_space<vmem>>, vector<512x128xf32>,
    } else {
    }
    %c0 = arith.constant 0 : index
    %c0_1 = arith.constant 0 : index
    %3 = vector.load %arg7[%c0, %c0_1] : memref<512x128xf32, #tpu.memory_space<vmem>>, vector<512x128xf32>
    %c0_2 = arith.constant 0 : index
    %c0_3 = arith.constant 0 : index
    %4 = vector.load %arg3[%c0_2, %c0_3] : memref<512x128xbf16, #tpu.memory_space<vmem>>, vector<512x128xbf16>
    %c0_4 = arith.constant 0 : index
    %c0_5 = arith.constant 0 : index
    %5 = vector.load %arg4[%c0_4, %c0_5] : memref<128x128xbf16, #tpu.memory_space<vmem>>, vector<128x128xbf16>
    %cst = arith.constant dense<0.000000e+00> : vector<512x128xf32>
    %6 = tpu.matmul %4, %5, %cst {dimension_numbers = #tpu.dot_dimension_numbers<[1], [0], [0], [1], [0, 0, 1, 1], [], []>} : vector<512x128xbf16>, vector<128x128xbf16>, vector<512x128xf32> -> vector<512x128xf32>
    %7 = arith.addf %3, %6 : vector<512x128xf32>
    %c0_6 = arith.constant 0 : index
    %c0_7 = arith.constant 0 : index
    %8 = vector.load %arg7[%c0_6, %c0_7] : memref<512x128xf32, #tpu.memory_space<vmem>>, vector<512x128xf32>
    tpu.vector_store %arg7[%c0_6, %c0_7], %7 {strides = array<i32>} : memref<512x128xf32, #tpu.memory_space<vmem>>, vector<512x128xf32>,
    %c0_i32_8 = arith.constant 0 : i32
    %9 = arith.cmpi eq, %arg2, %c0_i32_8 : i32
    %10 = arith.extui %9 : i1 to i32
    %c0_i32_9 = arith.constant 0 : i32
    %11 = arith.cmpi ne, %10, %c0_i32_9 : i32
    scf.if %11 {
      %c0_10 = arith.constant 0 : index
      %c0_11 = arith.constant 0 : index
      %12 = vector.load %arg7[%c0_10, %c0_11] : memref<512x128xf32, #tpu.memory_space<vmem>>, vector<512x128xf32>
      %c0_12 = arith.constant 0 : index
      %c0_13 = arith.constant 0 : index
      %13 = vector.load %arg5[%c0_12, %c0_13] : memref<1x128xf32, #tpu.memory_space<vmem>>, vector<1x128xf32>
      %14 = vector.broadcast %13 : vector<1x128xf32> to vector<512x128xf32>
      %15 = arith.addf %12, %14 : vector<512x128xf32>
      %cst_14 = arith.constant 0.000000e+00 : f32
      %16 = vector.broadcast %cst_14 : f32 to vector<512x128xf32>
      %17 = arith.maximumf %15, %16 : vector<512x128xf32>
      %18 = arith.truncf %17 : vector<512x128xf32> to vector<512x128xbf16>
      %c0_15 = arith.constant 0 : index
      %c0_16 = arith.constant 0 : index
      %19 = vector.load %arg6[%c0_15, %c0_16] : memref<512x128xbf16, #tpu.memory_space<vmem>>, vector<512x128xbf16>
      tpu.vector_store %arg6[%c0_15, %c0_16], %18 {strides = array<i32>} : memref<512x128xbf16, #tpu.memory_space<vmem>>, vector<512x128xbf16>,
    } else {
    }
    return
  }
  func.func @transform_0(%arg0: i32, %arg1: i32, %arg2: i32) -> (i32, i32) {
    %c0_i32 = arith.constant 0 : i32
    return %arg0, %arg2 : i32, i32
  }
  func.func @transform_1(%arg0: i32, %arg1: i32, %arg2: i32) -> (i32, i32) {
    %c0_i32 = arith.constant 0 : i32
    return %arg2, %arg1 : i32, i32
  }
  func.func @transform_2(%arg0: i32, %arg1: i32, %arg2: i32) -> (i32, i32) {
    %c0_i32 = arith.constant 0 : i32
    %c0_i32_0 = arith.constant 0 : i32
    return %c0_i32, %arg1 : i32, i32
  }
  func.func @transform_3(%arg0: i32, %arg1: i32, %arg2: i32) -> (i32, i32) {
    %c0_i32 = arith.constant 0 : i32
    return %arg0, %arg1 : i32, i32
  }
}

module attributes {stable_mosaic.version = 11 : i64} {
  func.func @_fused_mm_kernel(%arg0: i32, %arg1: i32, %arg2: i32, %arg3: memref<128x128xbf16, #tpu.memory_space<vmem>>, %arg4: memref<128x128xbf16, #tpu.memory_space<vmem>>, %arg5: memref<1x128xf32, #tpu.memory_space<vmem>>, %arg6: memref<128x128xbf16, #tpu.memory_space<vmem>>, %arg7: memref<128x128xbf16, #tpu.memory_space<vmem>>, %arg8: memref<128x128xf32, #tpu.memory_space<vmem>>) attributes {dimension_semantics = [#tpu.dimension_semantics<parallel>, #tpu.dimension_semantics<parallel>, #tpu.dimension_semantics<arbitrary>], iteration_bounds = array<i64: 1, 1, 1>, scalar_prefetch = 0 : i64, scratch_operands = 1 : i64, tpu.core_type = #tpu.core_type<tc>, window_params = [{transform_indices = @transform_0, window_bounds = array<i64: 128, 128>}, {transform_indices = @transform_1, window_bounds = array<i64: 128, 128>}, {transform_indices = @transform_2, window_bounds = array<i64: 1, 128>}, {transform_indices = @transform_3, window_bounds = array<i64: 128, 128>}, {transform_indices = @transform_4, window_bounds = array<i64: 128, 128>}]} {
    %c0_i32 = arith.constant 0 : i32
    %0 = arith.cmpi eq, %arg2, %c0_i32 : i32
    %1 = arith.extui %0 : i1 to i32
    %c0_i32_0 = arith.constant 0 : i32
    %2 = arith.cmpi ne, %1, %c0_i32_0 : i32
    scf.if %2 {
      %cst_10 = arith.constant 0.000000e+00 : f32
      %12 = vector.broadcast %cst_10 : f32 to vector<128x128xf32>
      %c0_11 = arith.constant 0 : index
      %c0_12 = arith.constant 0 : index
      %13 = vector.load %arg8[%c0_11, %c0_12] : memref<128x128xf32, #tpu.memory_space<vmem>>, vector<128x128xf32>
      tpu.vector_store %arg8[%c0_11, %c0_12], %12 {strides = array<i32>} : memref<128x128xf32, #tpu.memory_space<vmem>>, vector<128x128xf32>,
    } else {
    }
    %c0 = arith.constant 0 : index
    %c0_1 = arith.constant 0 : index
    %3 = vector.load %arg8[%c0, %c0_1] : memref<128x128xf32, #tpu.memory_space<vmem>>, vector<128x128xf32>
    %c0_2 = arith.constant 0 : index
    %c0_3 = arith.constant 0 : index
    %4 = vector.load %arg3[%c0_2, %c0_3] : memref<128x128xbf16, #tpu.memory_space<vmem>>, vector<128x128xbf16>
    %c0_4 = arith.constant 0 : index
    %c0_5 = arith.constant 0 : index
    %5 = vector.load %arg4[%c0_4, %c0_5] : memref<128x128xbf16, #tpu.memory_space<vmem>>, vector<128x128xbf16>
    %cst = arith.constant dense<0.000000e+00> : vector<128x128xf32>
    %6 = tpu.matmul %4, %5, %cst {dimension_numbers = #tpu.dot_dimension_numbers<[1], [0], [0], [1], [0, 0, 1, 1], [], []>} : vector<128x128xbf16>, vector<128x128xbf16>, vector<128x128xf32> -> vector<128x128xf32>
    %7 = arith.addf %3, %6 : vector<128x128xf32>
    %c0_6 = arith.constant 0 : index
    %c0_7 = arith.constant 0 : index
    %8 = vector.load %arg8[%c0_6, %c0_7] : memref<128x128xf32, #tpu.memory_space<vmem>>, vector<128x128xf32>
    tpu.vector_store %arg8[%c0_6, %c0_7], %7 {strides = array<i32>} : memref<128x128xf32, #tpu.memory_space<vmem>>, vector<128x128xf32>,
    %c0_i32_8 = arith.constant 0 : i32
    %9 = arith.cmpi eq, %arg2, %c0_i32_8 : i32
    %10 = arith.extui %9 : i1 to i32
    %c0_i32_9 = arith.constant 0 : i32
    %11 = arith.cmpi ne, %10, %c0_i32_9 : i32
    scf.if %11 {
      %c0_10 = arith.constant 0 : index
      %c0_11 = arith.constant 0 : index
      %12 = vector.load %arg8[%c0_10, %c0_11] : memref<128x128xf32, #tpu.memory_space<vmem>>, vector<128x128xf32>
      %c0_12 = arith.constant 0 : index
      %c0_13 = arith.constant 0 : index
      %13 = vector.load %arg5[%c0_12, %c0_13] : memref<1x128xf32, #tpu.memory_space<vmem>>, vector<1x128xf32>
      %14 = vector.broadcast %13 : vector<1x128xf32> to vector<128x128xf32>
      %15 = arith.addf %12, %14 : vector<128x128xf32>
      %c0_14 = arith.constant 0 : index
      %c0_15 = arith.constant 0 : index
      %16 = vector.load %arg6[%c0_14, %c0_15] : memref<128x128xbf16, #tpu.memory_space<vmem>>, vector<128x128xbf16>
      %17 = arith.extf %16 : vector<128x128xbf16> to vector<128x128xf32>
      %18 = arith.addf %15, %17 : vector<128x128xf32>
      %cst_16 = arith.constant 0.000000e+00 : f32
      %19 = vector.broadcast %cst_16 : f32 to vector<128x128xf32>
      %20 = arith.maximumf %18, %19 : vector<128x128xf32>
      %21 = arith.truncf %20 : vector<128x128xf32> to vector<128x128xbf16>
      %c0_17 = arith.constant 0 : index
      %c0_18 = arith.constant 0 : index
      %22 = vector.load %arg7[%c0_17, %c0_18] : memref<128x128xbf16, #tpu.memory_space<vmem>>, vector<128x128xbf16>
      tpu.vector_store %arg7[%c0_17, %c0_18], %21 {strides = array<i32>} : memref<128x128xbf16, #tpu.memory_space<vmem>>, vector<128x128xbf16>,
    } else {
    }
    return
  }
  func.func @transform_0(%arg0: i32, %arg1: i32, %arg2: i32) -> (i32, i32) {
    %c0_i32 = arith.constant 0 : i32
    return %arg0, %arg2 : i32, i32
  }
  func.func @transform_1(%arg0: i32, %arg1: i32, %arg2: i32) -> (i32, i32) {
    %c0_i32 = arith.constant 0 : i32
    return %arg2, %arg1 : i32, i32
  }
  func.func @transform_2(%arg0: i32, %arg1: i32, %arg2: i32) -> (i32, i32) {
    %c0_i32 = arith.constant 0 : i32
    %c0_i32_0 = arith.constant 0 : i32
    return %c0_i32, %arg1 : i32, i32
  }
  func.func @transform_3(%arg0: i32, %arg1: i32, %arg2: i32) -> (i32, i32) {
    %c0_i32 = arith.constant 0 : i32
    return %arg0, %arg1 : i32, i32
  }
  func.func @transform_4(%arg0: i32, %arg1: i32, %arg2: i32) -> (i32, i32) {
    %c0_i32 = arith.constant 0 : i32
    return %arg0, %arg1 : i32, i32
  }
}

module attributes {stable_mosaic.version = 11 : i64} {
  func.func @_fused_mm_kernel(%arg0: i32, %arg1: i32, %arg2: i32, %arg3: memref<128x384xbf16, #tpu.memory_space<vmem>>, %arg4: memref<384x128xbf16, #tpu.memory_space<vmem>>, %arg5: memref<1x128xf32, #tpu.memory_space<vmem>>, %arg6: memref<128x128xbf16, #tpu.memory_space<vmem>>, %arg7: memref<128x128xf32, #tpu.memory_space<vmem>>) attributes {dimension_semantics = [#tpu.dimension_semantics<parallel>, #tpu.dimension_semantics<parallel>, #tpu.dimension_semantics<arbitrary>], iteration_bounds = array<i64: 1, 1, 3>, scalar_prefetch = 0 : i64, scratch_operands = 1 : i64, tpu.core_type = #tpu.core_type<tc>, window_params = [{transform_indices = @transform_0, window_bounds = array<i64: 128, 384>}, {transform_indices = @transform_1, window_bounds = array<i64: 384, 128>}, {transform_indices = @transform_2, window_bounds = array<i64: 1, 128>}, {transform_indices = @transform_3, window_bounds = array<i64: 128, 128>}]} {
    %c0_i32 = arith.constant 0 : i32
    %0 = arith.cmpi eq, %arg2, %c0_i32 : i32
    %1 = arith.extui %0 : i1 to i32
    %c0_i32_0 = arith.constant 0 : i32
    %2 = arith.cmpi ne, %1, %c0_i32_0 : i32
    scf.if %2 {
      %cst_9 = arith.constant 0.000000e+00 : f32
      %12 = vector.broadcast %cst_9 : f32 to vector<128x128xf32>
      %c0_10 = arith.constant 0 : index
      %c0_11 = arith.constant 0 : index
      %13 = vector.load %arg7[%c0_10, %c0_11] : memref<128x128xf32, #tpu.memory_space<vmem>>, vector<128x128xf32>
      tpu.vector_store %arg7[%c0_10, %c0_11], %12 {strides = array<i32>} : memref<128x128xf32, #tpu.memory_space<vmem>>, vector<128x128xf32>,
    } else {
    }
    %c0 = arith.constant 0 : index
    %c0_1 = arith.constant 0 : index
    %3 = vector.load %arg7[%c0, %c0_1] : memref<128x128xf32, #tpu.memory_space<vmem>>, vector<128x128xf32>
    %c0_2 = arith.constant 0 : index
    %c0_3 = arith.constant 0 : index
    %4 = vector.load %arg3[%c0_2, %c0_3] : memref<128x384xbf16, #tpu.memory_space<vmem>>, vector<128x384xbf16>
    %c0_4 = arith.constant 0 : index
    %c0_5 = arith.constant 0 : index
    %5 = vector.load %arg4[%c0_4, %c0_5] : memref<384x128xbf16, #tpu.memory_space<vmem>>, vector<384x128xbf16>
    %cst = arith.constant dense<0.000000e+00> : vector<128x128xf32>
    %6 = tpu.matmul %4, %5, %cst {dimension_numbers = #tpu.dot_dimension_numbers<[1], [0], [0], [1], [0, 0, 1, 1], [], []>} : vector<128x384xbf16>, vector<384x128xbf16>, vector<128x128xf32> -> vector<128x128xf32>
    %7 = arith.addf %3, %6 : vector<128x128xf32>
    %c0_6 = arith.constant 0 : index
    %c0_7 = arith.constant 0 : index
    %8 = vector.load %arg7[%c0_6, %c0_7] : memref<128x128xf32, #tpu.memory_space<vmem>>, vector<128x128xf32>
    tpu.vector_store %arg7[%c0_6, %c0_7], %7 {strides = array<i32>} : memref<128x128xf32, #tpu.memory_space<vmem>>, vector<128x128xf32>,
    %c2_i32 = arith.constant 2 : i32
    %9 = arith.cmpi eq, %arg2, %c2_i32 : i32
    %10 = arith.extui %9 : i1 to i32
    %c0_i32_8 = arith.constant 0 : i32
    %11 = arith.cmpi ne, %10, %c0_i32_8 : i32
    scf.if %11 {
      %c0_9 = arith.constant 0 : index
      %c0_10 = arith.constant 0 : index
      %12 = vector.load %arg7[%c0_9, %c0_10] : memref<128x128xf32, #tpu.memory_space<vmem>>, vector<128x128xf32>
      %c0_11 = arith.constant 0 : index
      %c0_12 = arith.constant 0 : index
      %13 = vector.load %arg5[%c0_11, %c0_12] : memref<1x128xf32, #tpu.memory_space<vmem>>, vector<1x128xf32>
      %14 = vector.broadcast %13 : vector<1x128xf32> to vector<128x128xf32>
      %15 = arith.addf %12, %14 : vector<128x128xf32>
      %cst_13 = arith.constant 0.000000e+00 : f32
      %16 = vector.broadcast %cst_13 : f32 to vector<128x128xf32>
      %17 = arith.maximumf %15, %16 : vector<128x128xf32>
      %18 = arith.truncf %17 : vector<128x128xf32> to vector<128x128xbf16>
      %c0_14 = arith.constant 0 : index
      %c0_15 = arith.constant 0 : index
      %19 = vector.load %arg6[%c0_14, %c0_15] : memref<128x128xbf16, #tpu.memory_space<vmem>>, vector<128x128xbf16>
      tpu.vector_store %arg6[%c0_14, %c0_15], %18 {strides = array<i32>} : memref<128x128xbf16, #tpu.memory_space<vmem>>, vector<128x128xbf16>,
    } else {
    }
    return
  }
  func.func @transform_0(%arg0: i32, %arg1: i32, %arg2: i32) -> (i32, i32) {
    %c0_i32 = arith.constant 0 : i32
    return %arg0, %arg2 : i32, i32
  }
  func.func @transform_1(%arg0: i32, %arg1: i32, %arg2: i32) -> (i32, i32) {
    %c0_i32 = arith.constant 0 : i32
    return %arg2, %arg1 : i32, i32
  }
  func.func @transform_2(%arg0: i32, %arg1: i32, %arg2: i32) -> (i32, i32) {
    %c0_i32 = arith.constant 0 : i32
    %c0_i32_0 = arith.constant 0 : i32
    return %c0_i32, %arg1 : i32, i32
  }
  func.func @transform_3(%arg0: i32, %arg1: i32, %arg2: i32) -> (i32, i32) {
    %c0_i32 = arith.constant 0 : i32
    return %arg0, %arg1 : i32, i32
  }
}

module attributes {stable_mosaic.version = 11 : i64} {
  func.func @_fused_mm_kernel(%arg0: i32, %arg1: i32, %arg2: i32, %arg3: memref<128x128xbf16, #tpu.memory_space<vmem>>, %arg4: memref<128x128xbf16, #tpu.memory_space<vmem>>, %arg5: memref<1x128xf32, #tpu.memory_space<vmem>>, %arg6: memref<128x128xbf16, #tpu.memory_space<vmem>>, %arg7: memref<128x128xf32, #tpu.memory_space<vmem>>) attributes {dimension_semantics = [#tpu.dimension_semantics<parallel>, #tpu.dimension_semantics<parallel>, #tpu.dimension_semantics<arbitrary>], iteration_bounds = array<i64: 1, 1, 1>, scalar_prefetch = 0 : i64, scratch_operands = 1 : i64, tpu.core_type = #tpu.core_type<tc>, window_params = [{transform_indices = @transform_0, window_bounds = array<i64: 128, 128>}, {transform_indices = @transform_1, window_bounds = array<i64: 128, 128>}, {transform_indices = @transform_2, window_bounds = array<i64: 1, 128>}, {transform_indices = @transform_3, window_bounds = array<i64: 128, 128>}]} {
    %c0_i32 = arith.constant 0 : i32
    %0 = arith.cmpi eq, %arg2, %c0_i32 : i32
    %1 = arith.extui %0 : i1 to i32
    %c0_i32_0 = arith.constant 0 : i32
    %2 = arith.cmpi ne, %1, %c0_i32_0 : i32
    scf.if %2 {
      %cst_10 = arith.constant 0.000000e+00 : f32
      %12 = vector.broadcast %cst_10 : f32 to vector<128x128xf32>
      %c0_11 = arith.constant 0 : index
      %c0_12 = arith.constant 0 : index
      %13 = vector.load %arg7[%c0_11, %c0_12] : memref<128x128xf32, #tpu.memory_space<vmem>>, vector<128x128xf32>
      tpu.vector_store %arg7[%c0_11, %c0_12], %12 {strides = array<i32>} : memref<128x128xf32, #tpu.memory_space<vmem>>, vector<128x128xf32>,
    } else {
    }
    %c0 = arith.constant 0 : index
    %c0_1 = arith.constant 0 : index
    %3 = vector.load %arg7[%c0, %c0_1] : memref<128x128xf32, #tpu.memory_space<vmem>>, vector<128x128xf32>
    %c0_2 = arith.constant 0 : index
    %c0_3 = arith.constant 0 : index
    %4 = vector.load %arg3[%c0_2, %c0_3] : memref<128x128xbf16, #tpu.memory_space<vmem>>, vector<128x128xbf16>
    %c0_4 = arith.constant 0 : index
    %c0_5 = arith.constant 0 : index
    %5 = vector.load %arg4[%c0_4, %c0_5] : memref<128x128xbf16, #tpu.memory_space<vmem>>, vector<128x128xbf16>
    %cst = arith.constant dense<0.000000e+00> : vector<128x128xf32>
    %6 = tpu.matmul %4, %5, %cst {dimension_numbers = #tpu.dot_dimension_numbers<[1], [0], [0], [1], [0, 0, 1, 1], [], []>} : vector<128x128xbf16>, vector<128x128xbf16>, vector<128x128xf32> -> vector<128x128xf32>
    %7 = arith.addf %3, %6 : vector<128x128xf32>
    %c0_6 = arith.constant 0 : index
    %c0_7 = arith.constant 0 : index
    %8 = vector.load %arg7[%c0_6, %c0_7] : memref<128x128xf32, #tpu.memory_space<vmem>>, vector<128x128xf32>
    tpu.vector_store %arg7[%c0_6, %c0_7], %7 {strides = array<i32>} : memref<128x128xf32, #tpu.memory_space<vmem>>, vector<128x128xf32>,
    %c0_i32_8 = arith.constant 0 : i32
    %9 = arith.cmpi eq, %arg2, %c0_i32_8 : i32
    %10 = arith.extui %9 : i1 to i32
    %c0_i32_9 = arith.constant 0 : i32
    %11 = arith.cmpi ne, %10, %c0_i32_9 : i32
    scf.if %11 {
      %c0_10 = arith.constant 0 : index
      %c0_11 = arith.constant 0 : index
      %12 = vector.load %arg7[%c0_10, %c0_11] : memref<128x128xf32, #tpu.memory_space<vmem>>, vector<128x128xf32>
      %c0_12 = arith.constant 0 : index
      %c0_13 = arith.constant 0 : index
      %13 = vector.load %arg5[%c0_12, %c0_13] : memref<1x128xf32, #tpu.memory_space<vmem>>, vector<1x128xf32>
      %14 = vector.broadcast %13 : vector<1x128xf32> to vector<128x128xf32>
      %15 = arith.addf %12, %14 : vector<128x128xf32>
      %cst_14 = arith.constant 0.000000e+00 : f32
      %16 = vector.broadcast %cst_14 : f32 to vector<128x128xf32>
      %17 = arith.maximumf %15, %16 : vector<128x128xf32>
      %18 = arith.truncf %17 : vector<128x128xf32> to vector<128x128xbf16>
      %c0_15 = arith.constant 0 : index
      %c0_16 = arith.constant 0 : index
      %19 = vector.load %arg6[%c0_15, %c0_16] : memref<128x128xbf16, #tpu.memory_space<vmem>>, vector<128x128xbf16>
      tpu.vector_store %arg6[%c0_15, %c0_16], %18 {strides = array<i32>} : memref<128x128xbf16, #tpu.memory_space<vmem>>, vector<128x128xbf16>,
    } else {
    }
    return
  }
  func.func @transform_0(%arg0: i32, %arg1: i32, %arg2: i32) -> (i32, i32) {
    %c0_i32 = arith.constant 0 : i32
    return %arg0, %arg2 : i32, i32
  }
  func.func @transform_1(%arg0: i32, %arg1: i32, %arg2: i32) -> (i32, i32) {
    %c0_i32 = arith.constant 0 : i32
    return %arg2, %arg1 : i32, i32
  }
  func.func @transform_2(%arg0: i32, %arg1: i32, %arg2: i32) -> (i32, i32) {
    %c0_i32 = arith.constant 0 : i32
    %c0_i32_0 = arith.constant 0 : i32
    return %c0_i32, %arg1 : i32, i32
  }
  func.func @transform_3(%arg0: i32, %arg1: i32, %arg2: i32) -> (i32, i32) {
    %c0_i32 = arith.constant 0 : i32
    return %arg0, %arg1 : i32, i32
  }
}

</mosaic_0001>

<llo_original>
// kernel: _lambda_.9
$region0: #{_lambda_.9}
  #allocation0 [shape = 'u32[]', space=smem, size = 0x4, offset = 0x4, fixed_abs, tag = 'smem constant byte address 0x4 - core index']
  #allocation1 [shape = 'u32[144,128]{1,0:T(1,128)}', space=vmem, size = 0x12000, scoped, tag = 'internal scratch']
  #allocation2 [shape = 'f32[128,128]{1,0:T(8,128)}', space=vmem, size = 0x10000, scoped, tag = 'scratch operand']
  %s0 = inlined_call_operand.vmem [shape: bf16[128,128], index: 0, kind: input, shape index: {}]
  %s1 = inlined_call_operand.vmem [shape: bf16[128,128], index: 1, kind: input, shape index: {}]
  %s2 = inlined_call_operand.vmem [shape: f32[1,128], index: 2, kind: input, shape index: {}]
  %s3 = inlined_call_operand.vmem [shape: bf16[128,128], index: 3, kind: output, shape index: {}]
  %s4 = sld [smem:[#allocation0]]
  $region30: #{_lambda_.9} parent=0
    _
  %s6 = ssub.s32 1, %s4
  %s7 = scalar_select 0, %s6, %s4
  // Predicated region
  $region2: #{_lambda_.9} parent=0 // pred_check
    _
  $region3: #{_lambda_.9} parent=0 // pred_check_branch
    %9 = sbr.rel (0) target = $region5
  $region4: #{_lambda_.9} parent=0 // pred_region
    _
  $region5: #{_lambda_.9} parent=0 // pred_fallthru
    _
  // Predicated region
  $region6: #{_lambda_.9} parent=0 // pred_check
    _
  $region7: #{_lambda_.9} parent=0 // pred_check_branch
    %11 = sbr.rel (0) target = $region9
  $region8: #{_lambda_.9} parent=0 // pred_region
    _
  $region9: #{_lambda_.9} parent=0 // pred_fallthru
    _
  // Predicated region
  $region10: #{_lambda_.9} parent=0 // pred_check
    _
  $region11: #{_lambda_.9} parent=0 // pred_check_branch
    %13 = sbr.rel (0) target = $region13
  $region12: #{_lambda_.9} parent=0 // pred_region
    _
  $region13: #{_lambda_.9} parent=0 // pred_fallthru
    _
  %p15 = scmp.eq.s32.totalorder 0, 0
  // Predicated region
  $region14: #{_lambda_.9} parent=0 // pred_check
    %p16 = pneg %p15
  $region15: #{_lambda_.9} parent=0 // pred_check_branch
    %18 = sbr.rel (%p16) target = $region17
  $region16: #{_lambda_.9} parent=0 // pred_region
    %19 = vst [vmem:[#allocation2] sm:$0xff] 0.0
    %20 = vst [vmem:[#allocation2 + $0x8] sm:$0xff] 0.0
    %21 = vst [vmem:[#allocation2 + $0x10] sm:$0xff] 0.0
    %22 = vst [vmem:[#allocation2 + $0x18] sm:$0xff] 0.0
    %23 = vst [vmem:[#allocation2 + $0x20] sm:$0xff] 0.0
    %24 = vst [vmem:[#allocation2 + $0x28] sm:$0xff] 0.0
    %25 = vst [vmem:[#allocation2 + $0x30] sm:$0xff] 0.0
    %26 = vst [vmem:[#allocation2 + $0x38] sm:$0xff] 0.0
    %27 = vst [vmem:[#allocation2 + $0x40] sm:$0xff] 0.0
    %28 = vst [vmem:[#allocation2 + $0x48] sm:$0xff] 0.0
    %29 = vst [vmem:[#allocation2 + $0x50] sm:$0xff] 0.0
    %30 = vst [vmem:[#allocation2 + $0x58] sm:$0xff] 0.0
    %31 = vst [vmem:[#allocation2 + $0x60] sm:$0xff] 0.0
    %32 = vst [vmem:[#allocation2 + $0x68] sm:$0xff] 0.0
    %33 = vst [vmem:[#allocation2 + $0x70] sm:$0xff] 0.0
    %34 = vst [vmem:[#allocation2 + $0x78] sm:$0xff] 0.0
  $region17: #{_lambda_.9} parent=0 // pred_fallthru
    _
  %v35 = vld [vmem:[#allocation2] sm:$0xff]
  %v36 = vld [vmem:[#allocation2 + $0x8] sm:$0xff]
  %v37 = vld [vmem:[#allocation2 + $0x10] sm:$0xff]
  %v38 = vld [vmem:[#allocation2 + $0x18] sm:$0xff]
  %v39 = vld [vmem:[#allocation2 + $0x20] sm:$0xff]
  %v40 = vld [vmem:[#allocation2 + $0x28] sm:$0xff]
  %v41 = vld [vmem:[#allocation2 + $0x30] sm:$0xff]
  %v42 = vld [vmem:[#allocation2 + $0x38] sm:$0xff]
  %v43 = vld [vmem:[#allocation2 + $0x40] sm:$0xff]
  %v44 = vld [vmem:[#allocation2 + $0x48] sm:$0xff]
  %v45 = vld [vmem:[#allocation2 + $0x50] sm:$0xff]
  %v46 = vld [vmem:[#allocation2 + $0x58] sm:$0xff]
  %v47 = vld [vmem:[#allocation2 + $0x60] sm:$0xff]
  %v48 = vld [vmem:[#allocation2 + $0x68] sm:$0xff]
  %v49 = vld [vmem:[#allocation2 + $0x70] sm:$0xff]
  %v50 = vld [vmem:[#allocation2 + $0x78] sm:$0xff]
  %v51 = vld [vmem:[%s0] sm:$0xf]
  %v52 = vld [vmem:[%s0 + $0x4] sm:$0xf]
  %v53 = vld [vmem:[%s0 + $0x8] sm:$0xf]
  %v54 = vld [vmem:[%s0 + $0xc] sm:$0xf]
  %v55 = vld [vmem:[%s0 + $0x10] sm:$0xf]
  %v56 = vld [vmem:[%s0 + $0x14] sm:$0xf]
  %v57 = vld [vmem:[%s0 + $0x18] sm:$0xf]
  %v58 = vld [vmem:[%s0 + $0x1c] sm:$0xf]
  %v59 = vld [vmem:[%s0 + $0x20] sm:$0xf]
  %v60 = vld [vmem:[%s0 + $0x24] sm:$0xf]
  %v61 = vld [vmem:[%s0 + $0x28] sm:$0xf]
  %v62 = vld [vmem:[%s0 + $0x2c] sm:$0xf]
  %v63 = vld [vmem:[%s0 + $0x30] sm:$0xf]
  %v64 = vld [vmem:[%s0 + $0x34] sm:$0xf]
  %v65 = vld [vmem:[%s0 + $0x38] sm:$0xf]
  %v66 = vld [vmem:[%s0 + $0x3c] sm:$0xf]
  %v67 = vld [vmem:[%s1] sm:$0xf]
  %v68 = vld [vmem:[%s1 + $0x4] sm:$0xf]
  %v69 = vld [vmem:[%s1 + $0x8] sm:$0xf]
  %v70 = vld [vmem:[%s1 + $0xc] sm:$0xf]
  %v71 = vld [vmem:[%s1 + $0x10] sm:$0xf]
  %v72 = vld [vmem:[%s1 + $0x14] sm:$0xf]
  %v73 = vld [vmem:[%s1 + $0x18] sm:$0xf]
  %v74 = vld [vmem:[%s1 + $0x1c] sm:$0xf]
  %v75 = vld [vmem:[%s1 + $0x20] sm:$0xf]
  %v76 = vld [vmem:[%s1 + $0x24] sm:$0xf]
  %v77 = vld [vmem:[%s1 + $0x28] sm:$0xf]
  %v78 = vld [vmem:[%s1 + $0x2c] sm:$0xf]
  %v79 = vld [vmem:[%s1 + $0x30] sm:$0xf]
  %v80 = vld [vmem:[%s1 + $0x34] sm:$0xf]
  %v81 = vld [vmem:[%s1 + $0x38] sm:$0xf]
  %v82 = vld [vmem:[%s1 + $0x3c] sm:$0xf]
  %v99 = vunpack.c.l.b16 %v51
  %v100 = vunpack.c.l.b16 %v52
  %v101 = vunpack.c.l.b16 %v53
  %v102 = vunpack.c.l.b16 %v54
  %v103 = vunpack.c.l.b16 %v55
  %v104 = vunpack.c.l.b16 %v56
  %v105 = vunpack.c.l.b16 %v57
  %v106 = vunpack.c.l.b16 %v58
  %v107 = vunpack.c.l.b16 %v59
  %v108 = vunpack.c.l.b16 %v60
  %v109 = vunpack.c.l.b16 %v61
  %v110 = vunpack.c.l.b16 %v62
  %v111 = vunpack.c.l.b16 %v63
  %v112 = vunpack.c.l.b16 %v64
  %v113 = vunpack.c.l.b16 %v65
  %v114 = vunpack.c.l.b16 %v66
  %v115 = vpack.c.b16 %v100, %v99
  %v116 = vpack.c.b16 %v102, %v101
  %v117 = vpack.c.b16 %v104, %v103
  %v118 = vpack.c.b16 %v106, %v105
  %v119 = vpack.c.b16 %v108, %v107
  %v120 = vpack.c.b16 %v110, %v109
  %v121 = vpack.c.b16 %v112, %v111
  %v122 = vpack.c.b16 %v114, %v113
  %v147 = vunpack.c.l.b16 %v67
  %v148 = vunpack.c.l.b16 %v68
  %v149 = vunpack.c.l.b16 %v69
  %v150 = vunpack.c.l.b16 %v70
  %v151 = vunpack.c.l.b16 %v71
  %v152 = vunpack.c.l.b16 %v72
  %v153 = vunpack.c.l.b16 %v73
  %v154 = vunpack.c.l.b16 %v74
  %v155 = vunpack.c.l.b16 %v75
  %v156 = vunpack.c.l.b16 %v76
  %v157 = vunpack.c.l.b16 %v77
  %v158 = vunpack.c.l.b16 %v78
  %v159 = vunpack.c.l.b16 %v79
  %v160 = vunpack.c.l.b16 %v80
  %v161 = vunpack.c.l.b16 %v81
  %v162 = vunpack.c.l.b16 %v82
  %v163 = vpack.c.b16 %v148, %v147
  %v164 = vpack.c.b16 %v150, %v149
  %v165 = vpack.c.b16 %v152, %v151
  %v166 = vpack.c.b16 %v154, %v153
  %v167 = vpack.c.b16 %v156, %v155
  %v168 = vpack.c.b16 %v158, %v157
  %v169 = vpack.c.b16 %v160, %v159
  %v170 = vpack.c.b16 %v162, %v161
  %179 = vmatprep.subr.bf16.mxu0 0
  %180 = vmatpush1.bf16.msra.mxu0 %v170
  %181 = vmatprep.subr.bf16.mxu0 0
  %182 = vmatpush1.bf16.msra.mxu0 %v169
  %183 = vmatprep.subr.bf16.mxu0 0
  %184 = vmatpush1.bf16.msra.mxu0 %v168
  %185 = vmatprep.subr.bf16.mxu0 0
  %186 = vmatpush1.bf16.msra.mxu0 %v167
  %187 = vmatprep.subr.bf16.mxu0 0
  %188 = vmatpush1.bf16.msra.mxu0 %v166
  %189 = vmatprep.subr.bf16.mxu0 0
  %190 = vmatpush1.bf16.msra.mxu0 %v165
  %191 = vmatprep.subr.bf16.mxu0 0
  %192 = vmatpush1.bf16.msra.mxu0 %v164
  %193 = vmatprep.subr.bf16.mxu0 0
  %194 = vmatpush1.bf16.msra.mxu0 %v163
  %195 = vmatprep.subr.bf16.mxu0 0
  %196 = vmatpush2.bf16.msra.mxu0 0
  %197 = vmatprep.subr.bf16.mxu0 0
  %198 = vmatpush2.bf16.msra.mxu0 0
  %199 = vmatprep.subr.bf16.mxu0 0
  %200 = vmatpush2.bf16.msra.mxu0 0
  %201 = vmatprep.subr.bf16.mxu0 0
  %202 = vmatpush2.bf16.msra.mxu0 0
  %203 = vmatprep.subr.bf16.mxu0 0
  %204 = vmatpush2.bf16.msra.mxu0 0
  %205 = vmatprep.subr.bf16.mxu0 0
  %206 = vmatpush2.bf16.msra.mxu0 0
  %207 = vmatprep.subr.bf16.mxu0 0
  %208 = vmatpush2.bf16.msra.mxu0 0
  %209 = vmatprep.subr.bf16.mxu0 0
  %210 = vmatpush2.bf16.msra.mxu0 0
  %211 = vmatprep.mubr.bf16.mxu0 0
  %212 = vmatmul.mubr.bf16.gmra.mxu0 %v115
  %v213 = vpop.f32.mrf.mxu0
  %v214 = vadd.f32 0.0, %v213
  %v215 = vpop.f32.mrf.mxu0
  %v216 = vpop.f32.mrf.mxu0
  %v217 = vadd.f32 0.0, %v216
  %v218 = vpop.f32.mrf.mxu0
  %219 = vmatprep.mubr.bf16.mxu0 0
  %220 = vmatmul.mubr.bf16.gmra.mxu0 %v116
  %v221 = vpop.f32.mrf.mxu0
  %v222 = vadd.f32 0.0, %v221
  %v223 = vpop.f32.mrf.mxu0
  %v224 = vpop.f32.mrf.mxu0
  %v225 = vadd.f32 0.0, %v224
  %v226 = vpop.f32.mrf.mxu0
  %227 = vmatprep.mubr.bf16.mxu0 0
  %228 = vmatmul.mubr.bf16.gmra.mxu0 %v117
  %v229 = vpop.f32.mrf.mxu0
  %v230 = vadd.f32 0.0, %v229
  %v231 = vpop.f32.mrf.mxu0
  %v232 = vpop.f32.mrf.mxu0
  %v233 = vadd.f32 0.0, %v232
  %v234 = vpop.f32.mrf.mxu0
  %235 = vmatprep.mubr.bf16.mxu0 0
  %236 = vmatmul.mubr.bf16.gmra.mxu0 %v118
  %v237 = vpop.f32.mrf.mxu0
  %v238 = vadd.f32 0.0, %v237
  %v239 = vpop.f32.mrf.mxu0
  %v240 = vpop.f32.mrf.mxu0
  %v241 = vadd.f32 0.0, %v240
  %v242 = vpop.f32.mrf.mxu0
  %243 = vmatprep.mubr.bf16.mxu0 0
  %244 = vmatmul.mubr.bf16.gmra.mxu0 %v119
  %v245 = vpop.f32.mrf.mxu0
  %v246 = vadd.f32 0.0, %v245
  %v247 = vpop.f32.mrf.mxu0
  %v248 = vpop.f32.mrf.mxu0
  %v249 = vadd.f32 0.0, %v248
  %v250 = vpop.f32.mrf.mxu0
  %251 = vmatprep.mubr.bf16.mxu0 0
  %252 = vmatmul.mubr.bf16.gmra.mxu0 %v120
  %v253 = vpop.f32.mrf.mxu0
  %v254 = vadd.f32 0.0, %v253
  %v255 = vpop.f32.mrf.mxu0
  %v256 = vpop.f32.mrf.mxu0
  %v257 = vadd.f32 0.0, %v256
  %v258 = vpop.f32.mrf.mxu0
  %259 = vmatprep.mubr.bf16.mxu0 0
  %260 = vmatmul.mubr.bf16.gmra.mxu0 %v121
  %v261 = vpop.f32.mrf.mxu0
  %v262 = vadd.f32 0.0, %v261
  %v263 = vpop.f32.mrf.mxu0
  %v264 = vpop.f32.mrf.mxu0
  %v265 = vadd.f32 0.0, %v264
  %v266 = vpop.f32.mrf.mxu0
  %267 = vmatprep.mubr.bf16.mxu0 0
  %268 = vmatmul.mubr.bf16.gmra.mxu0 %v122
  %v269 = vpop.f32.mrf.mxu0
  %v270 = vadd.f32 0.0, %v269
  %v271 = vpop.f32.mrf.mxu0
  %v272 = vpop.f32.mrf.mxu0
  %v273 = vadd.f32 0.0, %v272
  %v274 = vpop.f32.mrf.mxu0
  %275 = vdwg.mxu0
  %v276 = vadd.f32 %v35, %v214
  %v277 = vadd.f32 %v36, %v217
  %v278 = vadd.f32 %v37, %v222
  %v279 = vadd.f32 %v38, %v225
  %v280 = vadd.f32 %v39, %v230
  %v281 = vadd.f32 %v40, %v233
  %v282 = vadd.f32 %v41, %v238
  %v283 = vadd.f32 %v42, %v241
  %v284 = vadd.f32 %v43, %v246
  %v285 = vadd.f32 %v44, %v249
  %v286 = vadd.f32 %v45, %v254
  %v287 = vadd.f32 %v46, %v257
  %v288 = vadd.f32 %v47, %v262
  %v289 = vadd.f32 %v48, %v265
  %v290 = vadd.f32 %v49, %v270
  %v291 = vadd.f32 %v50, %v273
  %292 = vst [vmem:[#allocation2] sm:$0xff] %v276
  %293 = vst [vmem:[#allocation2 + $0x8] sm:$0xff] %v277
  %294 = vst [vmem:[#allocation2 + $0x10] sm:$0xff] %v278
  %295 = vst [vmem:[#allocation2 + $0x18] sm:$0xff] %v279
  %296 = vst [vmem:[#allocation2 + $0x20] sm:$0xff] %v280
  %297 = vst [vmem:[#allocation2 + $0x28] sm:$0xff] %v281
  %298 = vst [vmem:[#allocation2 + $0x30] sm:$0xff] %v282
  %299 = vst [vmem:[#allocation2 + $0x38] sm:$0xff] %v283
  %300 = vst [vmem:[#allocation2 + $0x40] sm:$0xff] %v284
  %301 = vst [vmem:[#allocation2 + $0x48] sm:$0xff] %v285
  %302 = vst [vmem:[#allocation2 + $0x50] sm:$0xff] %v286
  %303 = vst [vmem:[#allocation2 + $0x58] sm:$0xff] %v287
  %304 = vst [vmem:[#allocation2 + $0x60] sm:$0xff] %v288
  %305 = vst [vmem:[#allocation2 + $0x68] sm:$0xff] %v289
  %306 = vst [vmem:[#allocation2 + $0x70] sm:$0xff] %v290
  %307 = vst [vmem:[#allocation2 + $0x78] sm:$0xff] %v291
  // Predicated region
  $region18: #{_lambda_.9} parent=0 // pred_check
    %p308 = pneg %p15
  $region19: #{_lambda_.9} parent=0 // pred_check_branch
    %310 = sbr.rel (%p308) target = $region21
  $region20: #{_lambda_.9} parent=0 // pred_region
    %v311 = vld [vmem:[#allocation2] sm:$0xff]
    %v312 = vld [vmem:[#allocation2 + $0x8] sm:$0xff]
    %v313 = vld [vmem:[#allocation2 + $0x10] sm:$0xff]
    %v314 = vld [vmem:[#allocation2 + $0x18] sm:$0xff]
    %v315 = vld [vmem:[#allocation2 + $0x20] sm:$0xff]
    %v316 = vld [vmem:[#allocation2 + $0x28] sm:$0xff]
    %v317 = vld [vmem:[#allocation2 + $0x30] sm:$0xff]
    %v318 = vld [vmem:[#allocation2 + $0x38] sm:$0xff]
    %v319 = vld [vmem:[#allocation2 + $0x40] sm:$0xff]
    %v320 = vld [vmem:[#allocation2 + $0x48] sm:$0xff]
    %v321 = vld [vmem:[#allocation2 + $0x50] sm:$0xff]
    %v322 = vld [vmem:[#allocation2 + $0x58] sm:$0xff]
    %v323 = vld [vmem:[#allocation2 + $0x60] sm:$0xff]
    %v324 = vld [vmem:[#allocation2 + $0x68] sm:$0xff]
    %v325 = vld [vmem:[#allocation2 + $0x70] sm:$0xff]
    %v326 = vld [vmem:[#allocation2 + $0x78] sm:$0xff]
    %v327 = vld [vmem:[%s2] sm:$0x1]
    %v329 = vlaneseq
    %v330 = vshrl.u32 %v329, 7
    %v331 = vsub.s32 0, %v330
    %v332 = vrot.slane %v327, %v331
    %v334 = vadd.f32 %v311, %v332
    %v335 = vadd.f32 %v312, %v332
    %v336 = vadd.f32 %v313, %v332
    %v337 = vadd.f32 %v314, %v332
    %v338 = vadd.f32 %v315, %v332
    %v339 = vadd.f32 %v316, %v332
    %v340 = vadd.f32 %v317, %v332
    %v341 = vadd.f32 %v318, %v332
    %v342 = vadd.f32 %v319, %v332
    %v343 = vadd.f32 %v320, %v332
    %v344 = vadd.f32 %v321, %v332
    %v345 = vadd.f32 %v322, %v332
    %v346 = vadd.f32 %v323, %v332
    %v347 = vadd.f32 %v324, %v332
    %v348 = vadd.f32 %v325, %v332
    %v349 = vadd.f32 %v326, %v332
    %v350 = vpack.c.bf16 %v335, %v334
    %v351 = vpack.c.bf16 %v337, %v336
    %v352 = vpack.c.bf16 %v339, %v338
    %v353 = vpack.c.bf16 %v341, %v340
    %v354 = vpack.c.bf16 %v343, %v342
    %v355 = vpack.c.bf16 %v345, %v344
    %v356 = vpack.c.bf16 %v347, %v346
    %v357 = vpack.c.bf16 %v349, %v348
    %v366 = vunpack.c.l.b16 %v350
    %v367 = vunpack.c.h.b16 %v350
    %v368 = vunpack.c.l.b16 %v351
    %v369 = vunpack.c.h.b16 %v351
    %v370 = vunpack.c.l.b16 %v352
    %v371 = vunpack.c.h.b16 %v352
    %v372 = vunpack.c.l.b16 %v353
    %v373 = vunpack.c.h.b16 %v353
    %v374 = vunpack.c.l.b16 %v354
    %v375 = vunpack.c.h.b16 %v354
    %v376 = vunpack.c.l.b16 %v355
    %v377 = vunpack.c.h.b16 %v355
    %v378 = vunpack.c.l.b16 %v356
    %v379 = vunpack.c.h.b16 %v356
    %v380 = vunpack.c.l.b16 %v357
    %v381 = vunpack.c.h.b16 %v357
    %v382 = vpack.c.b16 %v366, %v366
    %v383 = vpack.c.b16 %v367, %v367
    %v384 = vpack.c.b16 %v368, %v368
    %v385 = vpack.c.b16 %v369, %v369
    %v386 = vpack.c.b16 %v370, %v370
    %v387 = vpack.c.b16 %v371, %v371
    %v388 = vpack.c.b16 %v372, %v372
    %v389 = vpack.c.b16 %v373, %v373
    %v390 = vpack.c.b16 %v374, %v374
    %v391 = vpack.c.b16 %v375, %v375
    %v392 = vpack.c.b16 %v376, %v376
    %v393 = vpack.c.b16 %v377, %v377
    %v394 = vpack.c.b16 %v378, %v378
    %v395 = vpack.c.b16 %v379, %v379
    %v396 = vpack.c.b16 %v380, %v380
    %v397 = vpack.c.b16 %v381, %v381
    %414 = vst [vmem:[%s3] sm:$0xf] %v382
    %415 = vst [vmem:[%s3 + $0x4] sm:$0xf] %v383
    %416 = vst [vmem:[%s3 + $0x8] sm:$0xf] %v384
    %417 = vst [vmem:[%s3 + $0xc] sm:$0xf] %v385
    %418 = vst [vmem:[%s3 + $0x10] sm:$0xf] %v386
    %419 = vst [vmem:[%s3 + $0x14] sm:$0xf] %v387
    %420 = vst [vmem:[%s3 + $0x18] sm:$0xf] %v388
    %421 = vst [vmem:[%s3 + $0x1c] sm:$0xf] %v389
    %422 = vst [vmem:[%s3 + $0x20] sm:$0xf] %v390
    %423 = vst [vmem:[%s3 + $0x24] sm:$0xf] %v391
    %424 = vst [vmem:[%s3 + $0x28] sm:$0xf] %v392
    %425 = vst [vmem:[%s3 + $0x2c] sm:$0xf] %v393
    %426 = vst [vmem:[%s3 + $0x30] sm:$0xf] %v394
    %427 = vst [vmem:[%s3 + $0x34] sm:$0xf] %v395
    %428 = vst [vmem:[%s3 + $0x38] sm:$0xf] %v396
    %429 = vst [vmem:[%s3 + $0x3c] sm:$0xf] %v397
  $region21: #{_lambda_.9} parent=0 // pred_fallthru
    _
  // Predicated region
  $region22: #{_lambda_.9} parent=0 // pred_check
    _
  $region23: #{_lambda_.9} parent=0 // pred_check_branch
    %431 = sbr.rel (0) target = $region25
  $region24: #{_lambda_.9} parent=0 // pred_region
    _
  $region25: #{_lambda_.9} parent=0 // pred_fallthru
    _
  // Predicated region
  $region26: #{_lambda_.9} parent=0 // pred_check
    _
  $region27: #{_lambda_.9} parent=0 // pred_check_branch
    %433 = sbr.rel (0) target = $region29
  $region28: #{_lambda_.9} parent=0 // pred_region
    _
  $region29: #{_lambda_.9} parent=0 // pred_fallthru
    _

// kernel: _lambda_.8
$region0: #{_lambda_.8}
  #allocation0 [shape = 'u32[]', space=smem, size = 0x4, offset = 0x4, fixed_abs, tag = 'smem constant byte address 0x4 - core index']
  #allocation1 [shape = 'u32[144,128]{1,0:T(1,128)}', space=vmem, size = 0x12000, scoped, tag = 'internal scratch']
  #allocation2 [shape = 'f32[512,128]{1,0:T(8,128)}', space=vmem, size = 0x40000, scoped, tag = 'scratch operand']
  %s0 = inlined_call_operand.vmem [shape: bf16[512,128], index: 0, kind: input, shape index: {}]
  %s1 = inlined_call_operand.vmem [shape: bf16[128,128], index: 1, kind: input, shape index: {}]
  %s2 = inlined_call_operand.vmem [shape: bf16[512,128], index: 2, kind: output, shape index: {}]
  %s3 = sld [smem:[#allocation0]]
  $region26: #{_lambda_.8} parent=0
    _
  %s5 = ssub.s32 1, %s3
  %s6 = scalar_select 0, %s5, %s3
  // Predicated region
  $region2: #{_lambda_.8} parent=0 // pred_check
    _
  $region3: #{_lambda_.8} parent=0 // pred_check_branch
    %8 = sbr.rel (0) target = $region5
  $region4: #{_lambda_.8} parent=0 // pred_region
    _
  $region5: #{_lambda_.8} parent=0 // pred_fallthru
    _
  // Predicated region
  $region6: #{_lambda_.8} parent=0 // pred_check
    _
  $region7: #{_lambda_.8} parent=0 // pred_check_branch
    %10 = sbr.rel (0) target = $region9
  $region8: #{_lambda_.8} parent=0 // pred_region
    _
  $region9: #{_lambda_.8} parent=0 // pred_fallthru
    _
  %p12 = scmp.eq.s32.totalorder 0, 0
  // Predicated region
  $region10: #{_lambda_.8} parent=0 // pred_check
    %p13 = pneg %p12
  $region11: #{_lambda_.8} parent=0 // pred_check_branch
    %15 = sbr.rel (%p13) target = $region13
  $region12: #{_lambda_.8} parent=0 // pred_region
    %16 = vst [vmem:[#allocation2] sm:$0xff] 0.0
    %17 = vst [vmem:[#allocation2 + $0x8] sm:$0xff] 0.0
    %18 = vst [vmem:[#allocation2 + $0x10] sm:$0xff] 0.0
    %19 = vst [vmem:[#allocation2 + $0x18] sm:$0xff] 0.0
    %20 = vst [vmem:[#allocation2 + $0x20] sm:$0xff] 0.0
    %21 = vst [vmem:[#allocation2 + $0x28] sm:$0xff] 0.0
    %22 = vst [vmem:[#allocation2 + $0x30] sm:$0xff] 0.0
    %23 = vst [vmem:[#allocation2 + $0x38] sm:$0xff] 0.0
    %24 = vst [vmem:[#allocation2 + $0x40] sm:$0xff] 0.0
    %25 = vst [vmem:[#allocation2 + $0x48] sm:$0xff] 0.0
    %26 = vst [vmem:[#allocation2 + $0x50] sm:$0xff] 0.0
    %27 = vst [vmem:[#allocation2 + $0x58] sm:$0xff] 0.0
    %28 = vst [vmem:[#allocation2 + $0x60] sm:$0xff] 0.0
    %29 = vst [vmem:[#allocation2 + $0x68] sm:$0xff] 0.0
    %30 = vst [vmem:[#allocation2 + $0x70] sm:$0xff] 0.0
    %31 = vst [vmem:[#allocation2 + $0x78] sm:$0xff] 0.0
    %32 = vst [vmem:[#allocation2 + $0x80] sm:$0xff] 0.0
    %33 = vst [vmem:[#allocation2 + $0x88] sm:$0xff] 0.0
    %34 = vst [vmem:[#allocation2 + $0x90] sm:$0xff] 0.0
    %35 = vst [vmem:[#allocation2 + $0x98] sm:$0xff] 0.0
    %36 = vst [vmem:[#allocation2 + $0xa0] sm:$0xff] 0.0
    %37 = vst [vmem:[#allocation2 + $0xa8] sm:$0xff] 0.0
    %38 = vst [vmem:[#allocation2 + $0xb0] sm:$0xff] 0.0
    %39 = vst [vmem:[#allocation2 + $0xb8] sm:$0xff] 0.0
    %40 = vst [vmem:[#allocation2 + $0xc0] sm:$0xff] 0.0
    %41 = vst [vmem:[#allocation2 + $0xc8] sm:$0xff] 0.0
    %42 = vst [vmem:[#allocation2 + $0xd0] sm:$0xff] 0.0
    %43 = vst [vmem:[#allocation2 + $0xd8] sm:$0xff] 0.0
    %44 = vst [vmem:[#allocation2 + $0xe0] sm:$0xff] 0.0
    %45 = vst [vmem:[#allocation2 + $0xe8] sm:$0xff] 0.0
    %46 = vst [vmem:[#allocation2 + $0xf0] sm:$0xff] 0.0
    %47 = vst [vmem:[#allocation2 + $0xf8] sm:$0xff] 0.0
    %48 = vst [vmem:[#allocation2 + $0x100] sm:$0xff] 0.0
    %49 = vst [vmem:[#allocation2 + $0x108] sm:$0xff] 0.0
    %50 = vst [vmem:[#allocation2 + $0x110] sm:$0xff] 0.0
    %51 = vst [vmem:[#allocation2 + $0x118] sm:$0xff] 0.0
    %52 = vst [vmem:[#allocation2 + $0x120] sm:$0xff] 0.0
    %53 = vst [vmem:[#allocation2 + $0x128] sm:$0xff] 0.0
    %54 = vst [vmem:[#allocation2 + $0x130] sm:$0xff] 0.0
    %55 = vst [vmem:[#allocation2 + $0x138] sm:$0xff] 0.0
    %56 = vst [vmem:[#allocation2 + $0x140] sm:$0xff] 0.0
    %57 = vst [vmem:[#allocation2 + $0x148] sm:$0xff] 0.0
    %58 = vst [vmem:[#allocation2 + $0x150] sm:$0xff] 0.0
    %59 = vst [vmem:[#allocation2 + $0x158] sm:$0xff] 0.0
    %60 = vst [vmem:[#allocation2 + $0x160] sm:$0xff] 0.0
    %61 = vst [vmem:[#allocation2 + $0x168] sm:$0xff] 0.0
    %62 = vst [vmem:[#allocation2 + $0x170] sm:$0xff] 0.0
    %63 = vst [vmem:[#allocation2 + $0x178] sm:$0xff] 0.0
    %64 = vst [vmem:[#allocation2 + $0x180] sm:$0xff] 0.0
    %65 = vst [vmem:[#allocation2 + $0x188] sm:$0xff] 0.0
    %66 = vst [vmem:[#allocation2 + $0x190] sm:$0xff] 0.0
    %67 = vst [vmem:[#allocation2 + $0x198] sm:$0xff] 0.0
    %68 = vst [vmem:[#allocation2 + $0x1a0] sm:$0xff] 0.0
    %69 = vst [vmem:[#allocation2 + $0x1a8] sm:$0xff] 0.0
    %70 = vst [vmem:[#allocation2 + $0x1b0] sm:$0xff] 0.0
    %71 = vst [vmem:[#allocation2 + $0x1b8] sm:$0xff] 0.0
    %72 = vst [vmem:[#allocation2 + $0x1c0] sm:$0xff] 0.0
    %73 = vst [vmem:[#allocation2 + $0x1c8] sm:$0xff] 0.0
    %74 = vst [vmem:[#allocation2 + $0x1d0] sm:$0xff] 0.0
    %75 = vst [vmem:[#allocation2 + $0x1d8] sm:$0xff] 0.0
    %76 = vst [vmem:[#allocation2 + $0x1e0] sm:$0xff] 0.0
    %77 = vst [vmem:[#allocation2 + $0x1e8] sm:$0xff] 0.0
    %78 = vst [vmem:[#allocation2 + $0x1f0] sm:$0xff] 0.0
    %79 = vst [vmem:[#allocation2 + $0x1f8] sm:$0xff] 0.0
  $region13: #{_lambda_.8} parent=0 // pred_fallthru
    _
  %v80 = vld [vmem:[#allocation2] sm:$0xff]
  %v81 = vld [vmem:[#allocation2 + $0x8] sm:$0xff]
  %v82 = vld [vmem:[#allocation2 + $0x10] sm:$0xff]
  %v83 = vld [vmem:[#allocation2 + $0x18] sm:$0xff]
  %v84 = vld [vmem:[#allocation2 + $0x20] sm:$0xff]
  %v85 = vld [vmem:[#allocation2 + $0x28] sm:$0xff]
  %v86 = vld [vmem:[#allocation2 + $0x30] sm:$0xff]
  %v87 = vld [vmem:[#allocation2 + $0x38] sm:$0xff]
  %v88 = vld [vmem:[#allocation2 + $0x40] sm:$0xff]
  %v89 = vld [vmem:[#allocation2 + $0x48] sm:$0xff]
  %v90 = vld [vmem:[#allocation2 + $0x50] sm:$0xff]
  %v91 = vld [vmem:[#allocation2 + $0x58] sm:$0xff]
  %v92 = vld [vmem:[#allocation2 + $0x60] sm:$0xff]
  %v93 = vld [vmem:[#allocation2 + $0x68] sm:$0xff]
  %v94 = vld [vmem:[#allocation2 + $0x70] sm:$0xff]
  %v95 = vld [vmem:[#allocation2 + $0x78] sm:$0xff]
  %v96 = vld [vmem:[#allocation2 + $0x80] sm:$0xff]
  %v97 = vld [vmem:[#allocation2 + $0x88] sm:$0xff]
  %v98 = vld [vmem:[#allocation2 + $0x90] sm:$0xff]
  %v99 = vld [vmem:[#allocation2 + $0x98] sm:$0xff]
  %v100 = vld [vmem:[#allocation2 + $0xa0] sm:$0xff]
  %v101 = vld [vmem:[#allocation2 + $0xa8] sm:$0xff]
  %v102 = vld [vmem:[#allocation2 + $0xb0] sm:$0xff]
  %v103 = vld [vmem:[#allocation2 + $0xb8] sm:$0xff]
  %v104 = vld [vmem:[#allocation2 + $0xc0] sm:$0xff]
  %v105 = vld [vmem:[#allocation2 + $0xc8] sm:$0xff]
  %v106 = vld [vmem:[#allocation2 + $0xd0] sm:$0xff]
  %v107 = vld [vmem:[#allocation2 + $0xd8] sm:$0xff]
  %v108 = vld [vmem:[#allocation2 + $0xe0] sm:$0xff]
  %v109 = vld [vmem:[#allocation2 + $0xe8] sm:$0xff]
  %v110 = vld [vmem:[#allocation2 + $0xf0] sm:$0xff]
  %v111 = vld [vmem:[#allocation2 + $0xf8] sm:$0xff]
  %v112 = vld [vmem:[#allocation2 + $0x100] sm:$0xff]
  %v113 = vld [vmem:[#allocation2 + $0x108] sm:$0xff]
  %v114 = vld [vmem:[#allocation2 + $0x110] sm:$0xff]
  %v115 = vld [vmem:[#allocation2 + $0x118] sm:$0xff]
  %v116 = vld [vmem:[#allocation2 + $0x120] sm:$0xff]
  %v117 = vld [vmem:[#allocation2 + $0x128] sm:$0xff]
  %v118 = vld [vmem:[#allocation2 + $0x130] sm:$0xff]
  %v119 = vld [vmem:[#allocation2 + $0x138] sm:$0xff]
  %v120 = vld [vmem:[#allocation2 + $0x140] sm:$0xff]
  %v121 = vld [vmem:[#allocation2 + $0x148] sm:$0xff]
  %v122 = vld [vmem:[#allocation2 + $0x150] sm:$0xff]
  %v123 = vld [vmem:[#allocation2 + $0x158] sm:$0xff]
  %v124 = vld [vmem:[#allocation2 + $0x160] sm:$0xff]
  %v125 = vld [vmem:[#allocation2 + $0x168] sm:$0xff]
  %v126 = vld [vmem:[#allocation2 + $0x170] sm:$0xff]
  %v127 = vld [vmem:[#allocation2 + $0x178] sm:$0xff]
  %v128 = vld [vmem:[#allocation2 + $0x180] sm:$0xff]
  %v129 = vld [vmem:[#allocation2 + $0x188] sm:$0xff]
  %v130 = vld [vmem:[#allocation2 + $0x190] sm:$0xff]
  %v131 = vld [vmem:[#allocation2 + $0x198] sm:$0xff]
  %v132 = vld [vmem:[#allocation2 + $0x1a0] sm:$0xff]
  %v133 = vld [vmem:[#allocation2 + $0x1a8] sm:$0xff]
  %v134 = vld [vmem:[#allocation2 + $0x1b0] sm:$0xff]
  %v135 = vld [vmem:[#allocation2 + $0x1b8] sm:$0xff]
  %v136 = vld [vmem:[#allocation2 + $0x1c0] sm:$0xff]
  %v137 = vld [vmem:[#allocation2 + $0x1c8] sm:$0xff]
  %v138 = vld [vmem:[#allocation2 + $0x1d0] sm:$0xff]
  %v139 = vld [vmem:[#allocation2 + $0x1d8] sm:$0xff]
  %v140 = vld [vmem:[#allocation2 + $0x1e0] sm:$0xff]
  %v141 = vld [vmem:[#allocation2 + $0x1e8] sm:$0xff]
  %v142 = vld [vmem:[#allocation2 + $0x1f0] sm:$0xff]
  %v143 = vld [vmem:[#allocation2 + $0x1f8] sm:$0xff]
  %v144 = vld [vmem:[%s0] sm:$0xf]
  %v145 = vld [vmem:[%s0 + $0x4] sm:$0xf]
  %v146 = vld [vmem:[%s0 + $0x8] sm:$0xf]
  %v147 = vld [vmem:[%s0 + $0xc] sm:$0xf]
  %v148 = vld [vmem:[%s0 + $0x10] sm:$0xf]
  %v149 = vld [vmem:[%s0 + $0x14] sm:$0xf]
  %v150 = vld [vmem:[%s0 + $0x18] sm:$0xf]
  %v151 = vld [vmem:[%s0 + $0x1c] sm:$0xf]
  %v152 = vld [vmem:[%s0 + $0x20] sm:$0xf]
  %v153 = vld [vmem:[%s0 + $0x24] sm:$0xf]
  %v154 = vld [vmem:[%s0 + $0x28] sm:$0xf]
  %v155 = vld [vmem:[%s0 + $0x2c] sm:$0xf]
  %v156 = vld [vmem:[%s0 + $0x30] sm:$0xf]
  %v157 = vld [vmem:[%s0 + $0x34] sm:$0xf]
  %v158 = vld [vmem:[%s0 + $0x38] sm:$0xf]
  %v159 = vld [vmem:[%s0 + $0x3c] sm:$0xf]
  %v160 = vld [vmem:[%s0 + $0x40] sm:$0xf]
  %v161 = vld [vmem:[%s0 + $0x44] sm:$0xf]
  %v162 = vld [vmem:[%s0 + $0x48] sm:$0xf]
  %v163 = vld [vmem:[%s0 + $0x4c] sm:$0xf]
  %v164 = vld [vmem:[%s0 + $0x50] sm:$0xf]
  %v165 = vld [vmem:[%s0 + $0x54] sm:$0xf]
  %v166 = vld [vmem:[%s0 + $0x58] sm:$0xf]
  %v167 = vld [vmem:[%s0 + $0x5c] sm:$0xf]
  %v168 = vld [vmem:[%s0 + $0x60] sm:$0xf]
  %v169 = vld [vmem:[%s0 + $0x64] sm:$0xf]
  %v170 = vld [vmem:[%s0 + $0x68] sm:$0xf]
  %v171 = vld [vmem:[%s0 + $0x6c] sm:$0xf]
  %v172 = vld [vmem:[%s0 + $0x70] sm:$0xf]
  %v173 = vld [vmem:[%s0 + $0x74] sm:$0xf]
  %v174 = vld [vmem:[%s0 + $0x78] sm:$0xf]
  %v175 = vld [vmem:[%s0 + $0x7c] sm:$0xf]
  %v176 = vld [vmem:[%s0 + $0x80] sm:$0xf]
  %v177 = vld [vmem:[%s0 + $0x84] sm:$0xf]
  %v178 = vld [vmem:[%s0 + $0x88] sm:$0xf]
  %v179 = vld [vmem:[%s0 + $0x8c] sm:$0xf]
  %v180 = vld [vmem:[%s0 + $0x90] sm:$0xf]
  %v181 = vld [vmem:[%s0 + $0x94] sm:$0xf]
  %v182 = vld [vmem:[%s0 + $0x98] sm:$0xf]
  %v183 = vld [vmem:[%s0 + $0x9c] sm:$0xf]
  %v184 = vld [vmem:[%s0 + $0xa0] sm:$0xf]
  %v185 = vld [vmem:[%s0 + $0xa4] sm:$0xf]
  %v186 = vld [vmem:[%s0 + $0xa8] sm:$0xf]
  %v187 = vld [vmem:[%s0 + $0xac] sm:$0xf]
  %v188 = vld [vmem:[%s0 + $0xb0] sm:$0xf]
  %v189 = vld [vmem:[%s0 + $0xb4] sm:$0xf]
  %v190 = vld [vmem:[%s0 + $0xb8] sm:$0xf]
  %v191 = vld [vmem:[%s0 + $0xbc] sm:$0xf]
  %v192 = vld [vmem:[%s0 + $0xc0] sm:$0xf]
  %v193 = vld [vmem:[%s0 + $0xc4] sm:$0xf]
  %v194 = vld [vmem:[%s0 + $0xc8] sm:$0xf]
  %v195 = vld [vmem:[%s0 + $0xcc] sm:$0xf]
  %v196 = vld [vmem:[%s0 + $0xd0] sm:$0xf]
  %v197 = vld [vmem:[%s0 + $0xd4] sm:$0xf]
  %v198 = vld [vmem:[%s0 + $0xd8] sm:$0xf]
  %v199 = vld [vmem:[%s0 + $0xdc] sm:$0xf]
  %v200 = vld [vmem:[%s0 + $0xe0] sm:$0xf]
  %v201 = vld [vmem:[%s0 + $0xe4] sm:$0xf]
  %v202 = vld [vmem:[%s0 + $0xe8] sm:$0xf]
  %v203 = vld [vmem:[%s0 + $0xec] sm:$0xf]
  %v204 = vld [vmem:[%s0 + $0xf0] sm:$0xf]
  %v205 = vld [vmem:[%s0 + $0xf4] sm:$0xf]
  %v206 = vld [vmem:[%s0 + $0xf8] sm:$0xf]
  %v207 = vld [vmem:[%s0 + $0xfc] sm:$0xf]
  %v208 = vld [vmem:[%s1] sm:$0xf]
  %v209 = vld [vmem:[%s1 + $0x4] sm:$0xf]
  %v210 = vld [vmem:[%s1 + $0x8] sm:$0xf]
  %v211 = vld [vmem:[%s1 + $0xc] sm:$0xf]
  %v212 = vld [vmem:[%s1 + $0x10] sm:$0xf]
  %v213 = vld [vmem:[%s1 + $0x14] sm:$0xf]
  %v214 = vld [vmem:[%s1 + $0x18] sm:$0xf]
  %v215 = vld [vmem:[%s1 + $0x1c] sm:$0xf]
  %v216 = vld [vmem:[%s1 + $0x20] sm:$0xf]
  %v217 = vld [vmem:[%s1 + $0x24] sm:$0xf]
  %v218 = vld [vmem:[%s1 + $0x28] sm:$0xf]
  %v219 = vld [vmem:[%s1 + $0x2c] sm:$0xf]
  %v220 = vld [vmem:[%s1 + $0x30] sm:$0xf]
  %v221 = vld [vmem:[%s1 + $0x34] sm:$0xf]
  %v222 = vld [vmem:[%s1 + $0x38] sm:$0xf]
  %v223 = vld [vmem:[%s1 + $0x3c] sm:$0xf]
  %v288 = vunpack.c.l.b16 %v144
  %v289 = vunpack.c.l.b16 %v145
  %v290 = vunpack.c.l.b16 %v146
  %v291 = vunpack.c.l.b16 %v147
  %v292 = vunpack.c.l.b16 %v148
  %v293 = vunpack.c.l.b16 %v149
  %v294 = vunpack.c.l.b16 %v150
  %v295 = vunpack.c.l.b16 %v151
  %v296 = vunpack.c.l.b16 %v152
  %v297 = vunpack.c.l.b16 %v153
  %v298 = vunpack.c.l.b16 %v154
  %v299 = vunpack.c.l.b16 %v155
  %v300 = vunpack.c.l.b16 %v156
  %v301 = vunpack.c.l.b16 %v157
  %v302 = vunpack.c.l.b16 %v158
  %v303 = vunpack.c.l.b16 %v159
  %v304 = vunpack.c.l.b16 %v160
  %v305 = vunpack.c.l.b16 %v161
  %v306 = vunpack.c.l.b16 %v162
  %v307 = vunpack.c.l.b16 %v163
  %v308 = vunpack.c.l.b16 %v164
  %v309 = vunpack.c.l.b16 %v165
  %v310 = vunpack.c.l.b16 %v166
  %v311 = vunpack.c.l.b16 %v167
  %v312 = vunpack.c.l.b16 %v168
  %v313 = vunpack.c.l.b16 %v169
  %v314 = vunpack.c.l.b16 %v170
  %v315 = vunpack.c.l.b16 %v171
  %v316 = vunpack.c.l.b16 %v172
  %v317 = vunpack.c.l.b16 %v173
  %v318 = vunpack.c.l.b16 %v174
  %v319 = vunpack.c.l.b16 %v175
  %v320 = vunpack.c.l.b16 %v176
  %v321 = vunpack.c.l.b16 %v177
  %v322 = vunpack.c.l.b16 %v178
  %v323 = vunpack.c.l.b16 %v179
  %v324 = vunpack.c.l.b16 %v180
  %v325 = vunpack.c.l.b16 %v181
  %v326 = vunpack.c.l.b16 %v182
  %v327 = vunpack.c.l.b16 %v183
  %v328 = vunpack.c.l.b16 %v184
  %v329 = vunpack.c.l.b16 %v185
  %v330 = vunpack.c.l.b16 %v186
  %v331 = vunpack.c.l.b16 %v187
  %v332 = vunpack.c.l.b16 %v188
  %v333 = vunpack.c.l.b16 %v189
  %v334 = vunpack.c.l.b16 %v190
  %v335 = vunpack.c.l.b16 %v191
  %v336 = vunpack.c.l.b16 %v192
  %v337 = vunpack.c.l.b16 %v193
  %v338 = vunpack.c.l.b16 %v194
  %v339 = vunpack.c.l.b16 %v195
  %v340 = vunpack.c.l.b16 %v196
  %v341 = vunpack.c.l.b16 %v197
  %v342 = vunpack.c.l.b16 %v198
  %v343 = vunpack.c.l.b16 %v199
  %v344 = vunpack.c.l.b16 %v200
  %v345 = vunpack.c.l.b16 %v201
  %v346 = vunpack.c.l.b16 %v202
  %v347 = vunpack.c.l.b16 %v203
  %v348 = vunpack.c.l.b16 %v204
  %v349 = vunpack.c.l.b16 %v205
  %v350 = vunpack.c.l.b16 %v206
  %v351 = vunpack.c.l.b16 %v207
  %v352 = vpack.c.b16 %v289, %v288
  %v353 = vpack.c.b16 %v291, %v290
  %v354 = vpack.c.b16 %v293, %v292
  %v355 = vpack.c.b16 %v295, %v294
  %v356 = vpack.c.b16 %v297, %v296
  %v357 = vpack.c.b16 %v299, %v298
  %v358 = vpack.c.b16 %v301, %v300
  %v359 = vpack.c.b16 %v303, %v302
  %v360 = vpack.c.b16 %v305, %v304
  %v361 = vpack.c.b16 %v307, %v306
  %v362 = vpack.c.b16 %v309, %v308
  %v363 = vpack.c.b16 %v311, %v310
  %v364 = vpack.c.b16 %v313, %v312
  %v365 = vpack.c.b16 %v315, %v314
  %v366 = vpack.c.b16 %v317, %v316
  %v367 = vpack.c.b16 %v319, %v318
  %v368 = vpack.c.b16 %v321, %v320
  %v369 = vpack.c.b16 %v323, %v322
  %v370 = vpack.c.b16 %v325, %v324
  %v371 = vpack.c.b16 %v327, %v326
  %v372 = vpack.c.b16 %v329, %v328
  %v373 = vpack.c.b16 %v331, %v330
  %v374 = vpack.c.b16 %v333, %v332
  %v375 = vpack.c.b16 %v335, %v334
  %v376 = vpack.c.b16 %v337, %v336
  %v377 = vpack.c.b16 %v339, %v338
  %v378 = vpack.c.b16 %v341, %v340
  %v379 = vpack.c.b16 %v343, %v342
  %v380 = vpack.c.b16 %v345, %v344
  %v381 = vpack.c.b16 %v347, %v346
  %v382 = vpack.c.b16 %v349, %v348
  %v383 = vpack.c.b16 %v351, %v350
  %v432 = vunpack.c.l.b16 %v208
  %v433 = vunpack.c.l.b16 %v209
  %v434 = vunpack.c.l.b16 %v210
  %v435 = vunpack.c.l.b16 %v211
  %v436 = vunpack.c.l.b16 %v212
  %v437 = vunpack.c.l.b16 %v213
  %v438 = vunpack.c.l.b16 %v214
  %v439 = vunpack.c.l.b16 %v215
  %v440 = vunpack.c.l.b16 %v216
  %v441 = vunpack.c.l.b16 %v217
  %v442 = vunpack.c.l.b16 %v218
  %v443 = vunpack.c.l.b16 %v219
  %v444 = vunpack.c.l.b16 %v220
  %v445 = vunpack.c.l.b16 %v221
  %v446 = vunpack.c.l.b16 %v222
  %v447 = vunpack.c.l.b16 %v223
  %v448 = vpack.c.b16 %v433, %v432
  %v449 = vpack.c.b16 %v435, %v434
  %v450 = vpack.c.b16 %v437, %v436
  %v451 = vpack.c.b16 %v439, %v438
  %v452 = vpack.c.b16 %v441, %v440
  %v453 = vpack.c.b16 %v443, %v442
  %v454 = vpack.c.b16 %v445, %v444
  %v455 = vpack.c.b16 %v447, %v446
  %464 = vmatprep.subr.bf16.mxu0 0
  %465 = vmatpush1.bf16.msra.mxu0 %v455
  %466 = vmatprep.subr.bf16.mxu0 0
  %467 = vmatpush1.bf16.msra.mxu0 %v454
  %468 = vmatprep.subr.bf16.mxu0 0
  %469 = vmatpush1.bf16.msra.mxu0 %v453
  %470 = vmatprep.subr.bf16.mxu0 0
  %471 = vmatpush1.bf16.msra.mxu0 %v452
  %472 = vmatprep.subr.bf16.mxu0 0
  %473 = vmatpush1.bf16.msra.mxu0 %v451
  %474 = vmatprep.subr.bf16.mxu0 0
  %475 = vmatpush1.bf16.msra.mxu0 %v450
  %476 = vmatprep.subr.bf16.mxu0 0
  %477 = vmatpush1.bf16.msra.mxu0 %v449
  %478 = vmatprep.subr.bf16.mxu0 0
  %479 = vmatpush1.bf16.msra.mxu0 %v448
  %480 = vmatprep.subr.bf16.mxu0 0
  %481 = vmatpush2.bf16.msra.mxu0 0
  %482 = vmatprep.subr.bf16.mxu0 0
  %483 = vmatpush2.bf16.msra.mxu0 0
  %484 = vmatprep.subr.bf16.mxu0 0
  %485 = vmatpush2.bf16.msra.mxu0 0
  %486 = vmatprep.subr.bf16.mxu0 0
  %487 = vmatpush2.bf16.msra.mxu0 0
  %488 = vmatprep.subr.bf16.mxu0 0
  %489 = vmatpush2.bf16.msra.mxu0 0
  %490 = vmatprep.subr.bf16.mxu0 0
  %491 = vmatpush2.bf16.msra.mxu0 0
  %492 = vmatprep.subr.bf16.mxu0 0
  %493 = vmatpush2.bf16.msra.mxu0 0
  %494 = vmatprep.subr.bf16.mxu0 0
  %495 = vmatpush2.bf16.msra.mxu0 0
  %496 = vmatprep.mubr.bf16.mxu0 0
  %497 = vmatmul.mubr.bf16.gmra.mxu0 %v352
  %v498 = vpop.f32.mrf.mxu0
  %v499 = vadd.f32 0.0, %v498
  %v500 = vpop.f32.mrf.mxu0
  %v501 = vpop.f32.mrf.mxu0
  %v502 = vadd.f32 0.0, %v501
  %v503 = vpop.f32.mrf.mxu0
  %504 = vmatprep.mubr.bf16.mxu0 0
  %505 = vmatmul.mubr.bf16.gmra.mxu0 %v353
  %v506 = vpop.f32.mrf.mxu0
  %v507 = vadd.f32 0.0, %v506
  %v508 = vpop.f32.mrf.mxu0
  %v509 = vpop.f32.mrf.mxu0
  %v510 = vadd.f32 0.0, %v509
  %v511 = vpop.f32.mrf.mxu0
  %512 = vmatprep.mubr.bf16.mxu0 0
  %513 = vmatmul.mubr.bf16.gmra.mxu0 %v354
  %v514 = vpop.f32.mrf.mxu0
  %v515 = vadd.f32 0.0, %v514
  %v516 = vpop.f32.mrf.mxu0
  %v517 = vpop.f32.mrf.mxu0
  %v518 = vadd.f32 0.0, %v517
  %v519 = vpop.f32.mrf.mxu0
  %520 = vmatprep.mubr.bf16.mxu0 0
  %521 = vmatmul.mubr.bf16.gmra.mxu0 %v355
  %v522 = vpop.f32.mrf.mxu0
  %v523 = vadd.f32 0.0, %v522
  %v524 = vpop.f32.mrf.mxu0
  %v525 = vpop.f32.mrf.mxu0
  %v526 = vadd.f32 0.0, %v525
  %v527 = vpop.f32.mrf.mxu0
  %528 = vmatprep.mubr.bf16.mxu0 0
  %529 = vmatmul.mubr.bf16.gmra.mxu0 %v356
  %v530 = vpop.f32.mrf.mxu0
  %v531 = vadd.f32 0.0, %v530
  %v532 = vpop.f32.mrf.mxu0
  %v533 = vpop.f32.mrf.mxu0
  %v534 = vadd.f32 0.0, %v533
  %v535 = vpop.f32.mrf.mxu0
  %536 = vmatprep.mubr.bf16.mxu0 0
  %537 = vmatmul.mubr.bf16.gmra.mxu0 %v357
  %v538 = vpop.f32.mrf.mxu0
  %v539 = vadd.f32 0.0, %v538
  %v540 = vpop.f32.mrf.mxu0
  %v541 = vpop.f32.mrf.mxu0
  %v542 = vadd.f32 0.0, %v541
  %v543 = vpop.f32.mrf.mxu0
  %544 = vmatprep.mubr.bf16.mxu0 0
  %545 = vmatmul.mubr.bf16.gmra.mxu0 %v358
  %v546 = vpop.f32.mrf.mxu0
  %v547 = vadd.f32 0.0, %v546
  %v548 = vpop.f32.mrf.mxu0
  %v549 = vpop.f32.mrf.mxu0
  %v550 = vadd.f32 0.0, %v549
  %v551 = vpop.f32.mrf.mxu0
  %552 = vmatprep.mubr.bf16.mxu0 0
  %553 = vmatmul.mubr.bf16.gmra.mxu0 %v359
  %v554 = vpop.f32.mrf.mxu0
  %v555 = vadd.f32 0.0, %v554
  %v556 = vpop.f32.mrf.mxu0
  %v557 = vpop.f32.mrf.mxu0
  %v558 = vadd.f32 0.0, %v557
  %v559 = vpop.f32.mrf.mxu0
  %560 = vmatprep.mubr.bf16.mxu0 0
  %561 = vmatmul.mubr.bf16.gmra.mxu0 %v360
  %v562 = vpop.f32.mrf.mxu0
  %v563 = vadd.f32 0.0, %v562
  %v564 = vpop.f32.mrf.mxu0
  %v565 = vpop.f32.mrf.mxu0
  %v566 = vadd.f32 0.0, %v565
  %v567 = vpop.f32.mrf.mxu0
  %568 = vmatprep.mubr.bf16.mxu0 0
  %569 = vmatmul.mubr.bf16.gmra.mxu0 %v361
  %v570 = vpop.f32.mrf.mxu0
  %v571 = vadd.f32 0.0, %v570
  %v572 = vpop.f32.mrf.mxu0
  %v573 = vpop.f32.mrf.mxu0
  %v574 = vadd.f32 0.0, %v573
  %v575 = vpop.f32.mrf.mxu0
  %576 = vmatprep.mubr.bf16.mxu0 0
  %577 = vmatmul.mubr.bf16.gmra.mxu0 %v362
  %v578 = vpop.f32.mrf.mxu0
  %v579 = vadd.f32 0.0, %v578
  %v580 = vpop.f32.mrf.mxu0
  %v581 = vpop.f32.mrf.mxu0
  %v582 = vadd.f32 0.0, %v581
  %v583 = vpop.f32.mrf.mxu0
  %584 = vmatprep.mubr.bf16.mxu0 0
  %585 = vmatmul.mubr.bf16.gmra.mxu0 %v363
  %v586 = vpop.f32.mrf.mxu0
  %v587 = vadd.f32 0.0, %v586
  %v588 = vpop.f32.mrf.mxu0
  %v589 = vpop.f32.mrf.mxu0
  %v590 = vadd.f32 0.0, %v589
  %v591 = vpop.f32.mrf.mxu0
  %592 = vmatprep.mubr.bf16.mxu0 0
  %593 = vmatmul.mubr.bf16.gmra.mxu0 %v364
  %v594 = vpop.f32.mrf.mxu0
  %v595 = vadd.f32 0.0, %v594
  %v596 = vpop.f32.mrf.mxu0
  %v597 = vpop.f32.mrf.mxu0
  %v598 = vadd.f32 0.0, %v597
  %v599 = vpop.f32.mrf.mxu0
  %600 = vmatprep.mubr.bf16.mxu0 0
  %601 = vmatmul.mubr.bf16.gmra.mxu0 %v365
  %v602 = vpop.f32.mrf.mxu0
  %v603 = vadd.f32 0.0, %v602
  %v604 = vpop.f32.mrf.mxu0
  %v605 = vpop.f32.mrf.mxu0
  %v606 = vadd.f32 0.0, %v605
  %v607 = vpop.f32.mrf.mxu0
  %608 = vmatprep.mubr.bf16.mxu0 0
  %609 = vmatmul.mubr.bf16.gmra.mxu0 %v366
  %v610 = vpop.f32.mrf.mxu0
  %v611 = vadd.f32 0.0, %v610
  %v612 = vpop.f32.mrf.mxu0
  %v613 = vpop.f32.mrf.mxu0
  %v614 = vadd.f32 0.0, %v613
  %v615 = vpop.f32.mrf.mxu0
  %616 = vmatprep.mubr.bf16.mxu0 0
  %617 = vmatmul.mubr.bf16.gmra.mxu0 %v367
  %v618 = vpop.f32.mrf.mxu0
  %v619 = vadd.f32 0.0, %v618
  %v620 = vpop.f32.mrf.mxu0
  %v621 = vpop.f32.mrf.mxu0
  %v622 = vadd.f32 0.0, %v621
  %v623 = vpop.f32.mrf.mxu0
  %624 = vmatprep.mubr.bf16.mxu0 0
  %625 = vmatmul.mubr.bf16.gmra.mxu0 %v368
  %v626 = vpop.f32.mrf.mxu0
  %v627 = vadd.f32 0.0, %v626
  %v628 = vpop.f32.mrf.mxu0
  %v629 = vpop.f32.mrf.mxu0
  %v630 = vadd.f32 0.0, %v629
  %v631 = vpop.f32.mrf.mxu0
  %632 = vmatprep.mubr.bf16.mxu0 0
  %633 = vmatmul.mubr.bf16.gmra.mxu0 %v369
  %v634 = vpop.f32.mrf.mxu0
  %v635 = vadd.f32 0.0, %v634
  %v636 = vpop.f32.mrf.mxu0
  %v637 = vpop.f32.mrf.mxu0
  %v638 = vadd.f32 0.0, %v637
  %v639 = vpop.f32.mrf.mxu0
  %640 = vmatprep.mubr.bf16.mxu0 0
  %641 = vmatmul.mubr.bf16.gmra.mxu0 %v370
  %v642 = vpop.f32.mrf.mxu0
  %v643 = vadd.f32 0.0, %v642
  %v644 = vpop.f32.mrf.mxu0
  %v645 = vpop.f32.mrf.mxu0
  %v646 = vadd.f32 0.0, %v645
  %v647 = vpop.f32.mrf.mxu0
  %648 = vmatprep.mubr.bf16.mxu0 0
  %649 = vmatmul.mubr.bf16.gmra.mxu0 %v371
  %v650 = vpop.f32.mrf.mxu0
  %v651 = vadd.f32 0.0, %v650
  %v652 = vpop.f32.mrf.mxu0
  %v653 = vpop.f32.mrf.mxu0
  %v654 = vadd.f32 0.0, %v653
  %v655 = vpop.f32.mrf.mxu0
  %656 = vmatprep.mubr.bf16.mxu0 0
  %657 = vmatmul.mubr.bf16.gmra.mxu0 %v372
  %v658 = vpop.f32.mrf.mxu0
  %v659 = vadd.f32 0.0, %v658
  %v660 = vpop.f32.mrf.mxu0
  %v661 = vpop.f32.mrf.mxu0
  %v662 = vadd.f32 0.0, %v661
  %v663 = vpop.f32.mrf.mxu0
  %664 = vmatprep.mubr.bf16.mxu0 0
  %665 = vmatmul.mubr.bf16.gmra.mxu0 %v373
  %v666 = vpop.f32.mrf.mxu0
  %v667 = vadd.f32 0.0, %v666
  %v668 = vpop.f32.mrf.mxu0
  %v669 = vpop.f32.mrf.mxu0
  %v670 = vadd.f32 0.0, %v669
  %v671 = vpop.f32.mrf.mxu0
  %672 = vmatprep.mubr.bf16.mxu0 0
  %673 = vmatmul.mubr.bf16.gmra.mxu0 %v374
  %v674 = vpop.f32.mrf.mxu0
  %v675 = vadd.f32 0.0, %v674
  %v676 = vpop.f32.mrf.mxu0
  %v677 = vpop.f32.mrf.mxu0
  %v678 = vadd.f32 0.0, %v677
  %v679 = vpop.f32.mrf.mxu0
  %680 = vmatprep.mubr.bf16.mxu0 0
  %681 = vmatmul.mubr.bf16.gmra.mxu0 %v375
  %v682 = vpop.f32.mrf.mxu0
  %v683 = vadd.f32 0.0, %v682
  %v684 = vpop.f32.mrf.mxu0
  %v685 = vpop.f32.mrf.mxu0
  %v686 = vadd.f32 0.0, %v685
  %v687 = vpop.f32.mrf.mxu0
  %688 = vmatprep.mubr.bf16.mxu0 0
  %689 = vmatmul.mubr.bf16.gmra.mxu0 %v376
  %v690 = vpop.f32.mrf.mxu0
  %v691 = vadd.f32 0.0, %v690
  %v692 = vpop.f32.mrf.mxu0
  %v693 = vpop.f32.mrf.mxu0
  %v694 = vadd.f32 0.0, %v693
  %v695 = vpop.f32.mrf.mxu0
  %696 = vmatprep.mubr.bf16.mxu0 0
  %697 = vmatmul.mubr.bf16.gmra.mxu0 %v377
  %v698 = vpop.f32.mrf.mxu0
  %v699 = vadd.f32 0.0, %v698
  %v700 = vpop.f32.mrf.mxu0
  %v701 = vpop.f32.mrf.mxu0
  %v702 = vadd.f32 0.0, %v701
  %v703 = vpop.f32.mrf.mxu0
  %704 = vmatprep.mubr.bf16.mxu0 0
  %705 = vmatmul.mubr.bf16.gmra.mxu0 %v378
  %v706 = vpop.f32.mrf.mxu0
  %v707 = vadd.f32 0.0, %v706
  %v708 = vpop.f32.mrf.mxu0
  %v709 = vpop.f32.mrf.mxu0
  %v710 = vadd.f32 0.0, %v709
  %v711 = vpop.f32.mrf.mxu0
  %712 = vmatprep.mubr.bf16.mxu0 0
  %713 = vmatmul.mubr.bf16.gmra.mxu0 %v379
  %v714 = vpop.f32.mrf.mxu0
  %v715 = vadd.f32 0.0, %v714
  %v716 = vpop.f32.mrf.mxu0
  %v717 = vpop.f32.mrf.mxu0
  %v718 = vadd.f32 0.0, %v717
  %v719 = vpop.f32.mrf.mxu0
  %720 = vmatprep.mubr.bf16.mxu0 0
  %721 = vmatmul.mubr.bf16.gmra.mxu0 %v380
  %v722 = vpop.f32.mrf.mxu0
  %v723 = vadd.f32 0.0, %v722
  %v724 = vpop.f32.mrf.mxu0
  %v725 = vpop.f32.mrf.mxu0
  %v726 = vadd.f32 0.0, %v725
  %v727 = vpop.f32.mrf.mxu0
  %728 = vmatprep.mubr.bf16.mxu0 0
  %729 = vmatmul.mubr.bf16.gmra.mxu0 %v381
  %v730 = vpop.f32.mrf.mxu0
  %v731 = vadd.f32 0.0, %v730
  %v732 = vpop.f32.mrf.mxu0
  %v733 = vpop.f32.mrf.mxu0
  %v734 = vadd.f32 0.0, %v733
  %v735 = vpop.f32.mrf.mxu0
  %736 = vmatprep.mubr.bf16.mxu0 0
  %737 = vmatmul.mubr.bf16.gmra.mxu0 %v382
  %v738 = vpop.f32.mrf.mxu0
  %v739 = vadd.f32 0.0, %v738
  %v740 = vpop.f32.mrf.mxu0
  %v741 = vpop.f32.mrf.mxu0
  %v742 = vadd.f32 0.0, %v741
  %v743 = vpop.f32.mrf.mxu0
  %744 = vmatprep.mubr.bf16.mxu0 0
  %745 = vmatmul.mubr.bf16.gmra.mxu0 %v383
  %v746 = vpop.f32.mrf.mxu0
  %v747 = vadd.f32 0.0, %v746
  %v748 = vpop.f32.mrf.mxu0
  %v749 = vpop.f32.mrf.mxu0
  %v750 = vadd.f32 0.0, %v749
  %v751 = vpop.f32.mrf.mxu0
  %752 = vdwg.mxu0
  %v753 = vadd.f32 %v80, %v499
  %v754 = vadd.f32 %v81, %v502
  %v755 = vadd.f32 %v82, %v507
  %v756 = vadd.f32 %v83, %v510
  %v757 = vadd.f32 %v84, %v515
  %v758 = vadd.f32 %v85, %v518
  %v759 = vadd.f32 %v86, %v523
  %v760 = vadd.f32 %v87, %v526
  %v761 = vadd.f32 %v88, %v531
  %v762 = vadd.f32 %v89, %v534
  %v763 = vadd.f32 %v90, %v539
  %v764 = vadd.f32 %v91, %v542
  %v765 = vadd.f32 %v92, %v547
  %v766 = vadd.f32 %v93, %v550
  %v767 = vadd.f32 %v94, %v555
  %v768 = vadd.f32 %v95, %v558
  %v769 = vadd.f32 %v96, %v563
  %v770 = vadd.f32 %v97, %v566
  %v771 = vadd.f32 %v98, %v571
  %v772 = vadd.f32 %v99, %v574
  %v773 = vadd.f32 %v100, %v579
  %v774 = vadd.f32 %v101, %v582
  %v775 = vadd.f32 %v102, %v587
  %v776 = vadd.f32 %v103, %v590
  %v777 = vadd.f32 %v104, %v595
  %v778 = vadd.f32 %v105, %v598
  %v779 = vadd.f32 %v106, %v603
  %v780 = vadd.f32 %v107, %v606
  %v781 = vadd.f32 %v108, %v611
  %v782 = vadd.f32 %v109, %v614
  %v783 = vadd.f32 %v110, %v619
  %v784 = vadd.f32 %v111, %v622
  %v785 = vadd.f32 %v112, %v627
  %v786 = vadd.f32 %v113, %v630
  %v787 = vadd.f32 %v114, %v635
  %v788 = vadd.f32 %v115, %v638
  %v789 = vadd.f32 %v116, %v643
  %v790 = vadd.f32 %v117, %v646
  %v791 = vadd.f32 %v118, %v651
  %v792 = vadd.f32 %v119, %v654
  %v793 = vadd.f32 %v120, %v659
  %v794 = vadd.f32 %v121, %v662
  %v795 = vadd.f32 %v122, %v667
  %v796 = vadd.f32 %v123, %v670
  %v797 = vadd.f32 %v124, %v675
  %v798 = vadd.f32 %v125, %v678
  %v799 = vadd.f32 %v126, %v683
  %v800 = vadd.f32 %v127, %v686
  %v801 = vadd.f32 %v128, %v691
  %v802 = vadd.f32 %v129, %v694
  %v803 = vadd.f32 %v130, %v699
  %v804 = vadd.f32 %v131, %v702
  %v805 = vadd.f32 %v132, %v707
  %v806 = vadd.f32 %v133, %v710
  %v807 = vadd.f32 %v134, %v715
  %v808 = vadd.f32 %v135, %v718
  %v809 = vadd.f32 %v136, %v723
  %v810 = vadd.f32 %v137, %v726
  %v811 = vadd.f32 %v138, %v731
  %v812 = vadd.f32 %v139, %v734
  %v813 = vadd.f32 %v140, %v739
  %v814 = vadd.f32 %v141, %v742
  %v815 = vadd.f32 %v142, %v747
  %v816 = vadd.f32 %v143, %v750
  %817 = vst [vmem:[#allocation2] sm:$0xff] %v753
  %818 = vst [vmem:[#allocation2 + $0x8] sm:$0xff] %v754
  %819 = vst [vmem:[#allocation2 + $0x10] sm:$0xff] %v755
  %820 = vst [vmem:[#allocation2 + $0x18] sm:$0xff] %v756
  %821 = vst [vmem:[#allocation2 + $0x20] sm:$0xff] %v757
  %822 = vst [vmem:[#allocation2 + $0x28] sm:$0xff] %v758
  %823 = vst [vmem:[#allocation2 + $0x30] sm:$0xff] %v759
  %824 = vst [vmem:[#allocation2 + $0x38] sm:$0xff] %v760
  %825 = vst [vmem:[#allocation2 + $0x40] sm:$0xff] %v761
  %826 = vst [vmem:[#allocation2 + $0x48] sm:$0xff] %v762
  %827 = vst [vmem:[#allocation2 + $0x50] sm:$0xff] %v763
  %828 = vst [vmem:[#allocation2 + $0x58] sm:$0xff] %v764
  %829 = vst [vmem:[#allocation2 + $0x60] sm:$0xff] %v765
  %830 = vst [vmem:[#allocation2 + $0x68] sm:$0xff] %v766
  %831 = vst [vmem:[#allocation2 + $0x70] sm:$0xff] %v767
  %832 = vst [vmem:[#allocation2 + $0x78] sm:$0xff] %v768
  %833 = vst [vmem:[#allocation2 + $0x80] sm:$0xff] %v769
  %834 = vst [vmem:[#allocation2 + $0x88] sm:$0xff] %v770
  %835 = vst [vmem:[#allocation2 + $0x90] sm:$0xff] %v771
  %836 = vst [vmem:[#allocation2 + $0x98] sm:$0xff] %v772
  %837 = vst [vmem:[#allocation2 + $0xa0] sm:$0xff] %v773
  %838 = vst [vmem:[#allocation2 + $0xa8] sm:$0xff] %v774
  %839 = vst [vmem:[#allocation2 + $0xb0] sm:$0xff] %v775
  %840 = vst [vmem:[#allocation2 + $0xb8] sm:$0xff] %v776
  %841 = vst [vmem:[#allocation2 + $0xc0] sm:$0xff] %v777
  %842 = vst [vmem:[#allocation2 + $0xc8] sm:$0xff] %v778
  %843 = vst [vmem:[#allocation2 + $0xd0] sm:$0xff] %v779
  %844 = vst [vmem:[#allocation2 + $0xd8] sm:$0xff] %v780
  %845 = vst [vmem:[#allocation2 + $0xe0] sm:$0xff] %v781
  %846 = vst [vmem:[#allocation2 + $0xe8] sm:$0xff] %v782
  %847 = vst [vmem:[#allocation2 + $0xf0] sm:$0xff] %v783
  %848 = vst [vmem:[#allocation2 + $0xf8] sm:$0xff] %v784
  %849 = vst [vmem:[#allocation2 + $0x100] sm:$0xff] %v785
  %850 = vst [vmem:[#allocation2 + $0x108] sm:$0xff] %v786
  %851 = vst [vmem:[#allocation2 + $0x110] sm:$0xff] %v787
  %852 = vst [vmem:[#allocation2 + $0x118] sm:$0xff] %v788
  %853 = vst [vmem:[#allocation2 + $0x120] sm:$0xff] %v789
  %854 = vst [vmem:[#allocation2 + $0x128] sm:$0xff] %v790
  %855 = vst [vmem:[#allocation2 + $0x130] sm:$0xff] %v791
  %856 = vst [vmem:[#allocation2 + $0x138] sm:$0xff] %v792
  %857 = vst [vmem:[#allocation2 + $0x140] sm:$0xff] %v793
  %858 = vst [vmem:[#allocation2 + $0x148] sm:$0xff] %v794
  %859 = vst [vmem:[#allocation2 + $0x150] sm:$0xff] %v795
  %860 = vst [vmem:[#allocation2 + $0x158] sm:$0xff] %v796
  %861 = vst [vmem:[#allocation2 + $0x160] sm:$0xff] %v797
  %862 = vst [vmem:[#allocation2 + $0x168] sm:$0xff] %v798
  %863 = vst [vmem:[#allocation2 + $0x170] sm:$0xff] %v799
  %864 = vst [vmem:[#allocation2 + $0x178] sm:$0xff] %v800
  %865 = vst [vmem:[#allocation2 + $0x180] sm:$0xff] %v801
  %866 = vst [vmem:[#allocation2 + $0x188] sm:$0xff] %v802
  %867 = vst [vmem:[#allocation2 + $0x190] sm:$0xff] %v803
  %868 = vst [vmem:[#allocation2 + $0x198] sm:$0xff] %v804
  %869 = vst [vmem:[#allocation2 + $0x1a0] sm:$0xff] %v805
  %870 = vst [vmem:[#allocation2 + $0x1a8] sm:$0xff] %v806
  %871 = vst [vmem:[#allocation2 + $0x1b0] sm:$0xff] %v807
  %872 = vst [vmem:[#allocation2 + $0x1b8] sm:$0xff] %v808
  %873 = vst [vmem:[#allocation2 + $0x1c0] sm:$0xff] %v809
  %874 = vst [vmem:[#allocation2 + $0x1c8] sm:$0xff] %v810
  %875 = vst [vmem:[#allocation2 + $0x1d0] sm:$0xff] %v811
  %876 = vst [vmem:[#allocation2 + $0x1d8] sm:$0xff] %v812
  %877 = vst [vmem:[#allocation2 + $0x1e0] sm:$0xff] %v813
  %878 = vst [vmem:[#allocation2 + $0x1e8] sm:$0xff] %v814
  %879 = vst [vmem:[#allocation2 + $0x1f0] sm:$0xff] %v815
  %880 = vst [vmem:[#allocation2 + $0x1f8] sm:$0xff] %v816
  // Predicated region
  $region14: #{_lambda_.8} parent=0 // pred_check
    %p881 = pneg %p12
  $region15: #{_lambda_.8} parent=0 // pred_check_branch
    %883 = sbr.rel (%p881) target = $region17
  $region16: #{_lambda_.8} parent=0 // pred_region
    %v884 = vld [vmem:[#allocation2] sm:$0xff]
    %v885 = vld [vmem:[#allocation2 + $0x8] sm:$0xff]
    %v886 = vld [vmem:[#allocation2 + $0x10] sm:$0xff]
    %v887 = vld [vmem:[#allocation2 + $0x18] sm:$0xff]
    %v888 = vld [vmem:[#allocation2 + $0x20] sm:$0xff]
    %v889 = vld [vmem:[#allocation2 + $0x28] sm:$0xff]
    %v890 = vld [vmem:[#allocation2 + $0x30] sm:$0xff]
    %v891 = vld [vmem:[#allocation2 + $0x38] sm:$0xff]
    %v892 = vld [vmem:[#allocation2 + $0x40] sm:$0xff]
    %v893 = vld [vmem:[#allocation2 + $0x48] sm:$0xff]
    %v894 = vld [vmem:[#allocation2 + $0x50] sm:$0xff]
    %v895 = vld [vmem:[#allocation2 + $0x58] sm:$0xff]
    %v896 = vld [vmem:[#allocation2 + $0x60] sm:$0xff]
    %v897 = vld [vmem:[#allocation2 + $0x68] sm:$0xff]
    %v898 = vld [vmem:[#allocation2 + $0x70] sm:$0xff]
    %v899 = vld [vmem:[#allocation2 + $0x78] sm:$0xff]
    %v900 = vld [vmem:[#allocation2 + $0x80] sm:$0xff]
    %v901 = vld [vmem:[#allocation2 + $0x88] sm:$0xff]
    %v902 = vld [vmem:[#allocation2 + $0x90] sm:$0xff]
    %v903 = vld [vmem:[#allocation2 + $0x98] sm:$0xff]
    %v904 = vld [vmem:[#allocation2 + $0xa0] sm:$0xff]
    %v905 = vld [vmem:[#allocation2 + $0xa8] sm:$0xff]
    %v906 = vld [vmem:[#allocation2 + $0xb0] sm:$0xff]
    %v907 = vld [vmem:[#allocation2 + $0xb8] sm:$0xff]
    %v908 = vld [vmem:[#allocation2 + $0xc0] sm:$0xff]
    %v909 = vld [vmem:[#allocation2 + $0xc8] sm:$0xff]
    %v910 = vld [vmem:[#allocation2 + $0xd0] sm:$0xff]
    %v911 = vld [vmem:[#allocation2 + $0xd8] sm:$0xff]
    %v912 = vld [vmem:[#allocation2 + $0xe0] sm:$0xff]
    %v913 = vld [vmem:[#allocation2 + $0xe8] sm:$0xff]
    %v914 = vld [vmem:[#allocation2 + $0xf0] sm:$0xff]
    %v915 = vld [vmem:[#allocation2 + $0xf8] sm:$0xff]
    %v916 = vld [vmem:[#allocation2 + $0x100] sm:$0xff]
    %v917 = vld [vmem:[#allocation2 + $0x108] sm:$0xff]
    %v918 = vld [vmem:[#allocation2 + $0x110] sm:$0xff]
    %v919 = vld [vmem:[#allocation2 + $0x118] sm:$0xff]
    %v920 = vld [vmem:[#allocation2 + $0x120] sm:$0xff]
    %v921 = vld [vmem:[#allocation2 + $0x128] sm:$0xff]
    %v922 = vld [vmem:[#allocation2 + $0x130] sm:$0xff]
    %v923 = vld [vmem:[#allocation2 + $0x138] sm:$0xff]
    %v924 = vld [vmem:[#allocation2 + $0x140] sm:$0xff]
    %v925 = vld [vmem:[#allocation2 + $0x148] sm:$0xff]
    %v926 = vld [vmem:[#allocation2 + $0x150] sm:$0xff]
    %v927 = vld [vmem:[#allocation2 + $0x158] sm:$0xff]
    %v928 = vld [vmem:[#allocation2 + $0x160] sm:$0xff]
    %v929 = vld [vmem:[#allocation2 + $0x168] sm:$0xff]
    %v930 = vld [vmem:[#allocation2 + $0x170] sm:$0xff]
    %v931 = vld [vmem:[#allocation2 + $0x178] sm:$0xff]
    %v932 = vld [vmem:[#allocation2 + $0x180] sm:$0xff]
    %v933 = vld [vmem:[#allocation2 + $0x188] sm:$0xff]
    %v934 = vld [vmem:[#allocation2 + $0x190] sm:$0xff]
    %v935 = vld [vmem:[#allocation2 + $0x198] sm:$0xff]
    %v936 = vld [vmem:[#allocation2 + $0x1a0] sm:$0xff]
    %v937 = vld [vmem:[#allocation2 + $0x1a8] sm:$0xff]
    %v938 = vld [vmem:[#allocation2 + $0x1b0] sm:$0xff]
    %v939 = vld [vmem:[#allocation2 + $0x1b8] sm:$0xff]
    %v940 = vld [vmem:[#allocation2 + $0x1c0] sm:$0xff]
    %v941 = vld [vmem:[#allocation2 + $0x1c8] sm:$0xff]
    %v942 = vld [vmem:[#allocation2 + $0x1d0] sm:$0xff]
    %v943 = vld [vmem:[#allocation2 + $0x1d8] sm:$0xff]
    %v944 = vld [vmem:[#allocation2 + $0x1e0] sm:$0xff]
    %v945 = vld [vmem:[#allocation2 + $0x1e8] sm:$0xff]
    %v946 = vld [vmem:[#allocation2 + $0x1f0] sm:$0xff]
    %v947 = vld [vmem:[#allocation2 + $0x1f8] sm:$0xff]
    %v948 = vpack.c.bf16 %v885, %v884
    %v949 = vpack.c.bf16 %v887, %v886
    %v950 = vpack.c.bf16 %v889, %v888
    %v951 = vpack.c.bf16 %v891, %v890
    %v952 = vpack.c.bf16 %v893, %v892
    %v953 = vpack.c.bf16 %v895, %v894
    %v954 = vpack.c.bf16 %v897, %v896
    %v955 = vpack.c.bf16 %v899, %v898
    %v956 = vpack.c.bf16 %v901, %v900
    %v957 = vpack.c.bf16 %v903, %v902
    %v958 = vpack.c.bf16 %v905, %v904
    %v959 = vpack.c.bf16 %v907, %v906
    %v960 = vpack.c.bf16 %v909, %v908
    %v961 = vpack.c.bf16 %v911, %v910
    %v962 = vpack.c.bf16 %v913, %v912
    %v963 = vpack.c.bf16 %v915, %v914
    %v964 = vpack.c.bf16 %v917, %v916
    %v965 = vpack.c.bf16 %v919, %v918
    %v966 = vpack.c.bf16 %v921, %v920
    %v967 = vpack.c.bf16 %v923, %v922
    %v968 = vpack.c.bf16 %v925, %v924
    %v969 = vpack.c.bf16 %v927, %v926
    %v970 = vpack.c.bf16 %v929, %v928
    %v971 = vpack.c.bf16 %v931, %v930
    %v972 = vpack.c.bf16 %v933, %v932
    %v973 = vpack.c.bf16 %v935, %v934
    %v974 = vpack.c.bf16 %v937, %v936
    %v975 = vpack.c.bf16 %v939, %v938
    %v976 = vpack.c.bf16 %v941, %v940
    %v977 = vpack.c.bf16 %v943, %v942
    %v978 = vpack.c.bf16 %v945, %v944
    %v979 = vpack.c.bf16 %v947, %v946
    %v1012 = vunpack.c.l.b16 %v948
    %v1013 = vunpack.c.h.b16 %v948
    %v1014 = vunpack.c.l.b16 %v949
    %v1015 = vunpack.c.h.b16 %v949
    %v1016 = vunpack.c.l.b16 %v950
    %v1017 = vunpack.c.h.b16 %v950
    %v1018 = vunpack.c.l.b16 %v951
    %v1019 = vunpack.c.h.b16 %v951
    %v1020 = vunpack.c.l.b16 %v952
    %v1021 = vunpack.c.h.b16 %v952
    %v1022 = vunpack.c.l.b16 %v953
    %v1023 = vunpack.c.h.b16 %v953
    %v1024 = vunpack.c.l.b16 %v954
    %v1025 = vunpack.c.h.b16 %v954
    %v1026 = vunpack.c.l.b16 %v955
    %v1027 = vunpack.c.h.b16 %v955
    %v1028 = vunpack.c.l.b16 %v956
    %v1029 = vunpack.c.h.b16 %v956
    %v1030 = vunpack.c.l.b16 %v957
    %v1031 = vunpack.c.h.b16 %v957
    %v1032 = vunpack.c.l.b16 %v958
    %v1033 = vunpack.c.h.b16 %v958
    %v1034 = vunpack.c.l.b16 %v959
    %v1035 = vunpack.c.h.b16 %v959
    %v1036 = vunpack.c.l.b16 %v960
    %v1037 = vunpack.c.h.b16 %v960
    %v1038 = vunpack.c.l.b16 %v961
    %v1039 = vunpack.c.h.b16 %v961
    %v1040 = vunpack.c.l.b16 %v962
    %v1041 = vunpack.c.h.b16 %v962
    %v1042 = vunpack.c.l.b16 %v963
    %v1043 = vunpack.c.h.b16 %v963
    %v1044 = vunpack.c.l.b16 %v964
    %v1045 = vunpack.c.h.b16 %v964
    %v1046 = vunpack.c.l.b16 %v965
    %v1047 = vunpack.c.h.b16 %v965
    %v1048 = vunpack.c.l.b16 %v966
    %v1049 = vunpack.c.h.b16 %v966
    %v1050 = vunpack.c.l.b16 %v967
    %v1051 = vunpack.c.h.b16 %v967
    %v1052 = vunpack.c.l.b16 %v968
    %v1053 = vunpack.c.h.b16 %v968
    %v1054 = vunpack.c.l.b16 %v969
    %v1055 = vunpack.c.h.b16 %v969
    %v1056 = vunpack.c.l.b16 %v970
    %v1057 = vunpack.c.h.b16 %v970
    %v1058 = vunpack.c.l.b16 %v971
    %v1059 = vunpack.c.h.b16 %v971
    %v1060 = vunpack.c.l.b16 %v972
    %v1061 = vunpack.c.h.b16 %v972
    %v1062 = vunpack.c.l.b16 %v973
    %v1063 = vunpack.c.h.b16 %v973
    %v1064 = vunpack.c.l.b16 %v974
    %v1065 = vunpack.c.h.b16 %v974
    %v1066 = vunpack.c.l.b16 %v975
    %v1067 = vunpack.c.h.b16 %v975
    %v1068 = vunpack.c.l.b16 %v976
    %v1069 = vunpack.c.h.b16 %v976
    %v1070 = vunpack.c.l.b16 %v977
    %v1071 = vunpack.c.h.b16 %v977
    %v1072 = vunpack.c.l.b16 %v978
    %v1073 = vunpack.c.h.b16 %v978
    %v1074 = vunpack.c.l.b16 %v979
    %v1075 = vunpack.c.h.b16 %v979
    %v1076 = vpack.c.b16 %v1012, %v1012
    %v1077 = vpack.c.b16 %v1013, %v1013
    %v1078 = vpack.c.b16 %v1014, %v1014
    %v1079 = vpack.c.b16 %v1015, %v1015
    %v1080 = vpack.c.b16 %v1016, %v1016
    %v1081 = vpack.c.b16 %v1017, %v1017
    %v1082 = vpack.c.b16 %v1018, %v1018
    %v1083 = vpack.c.b16 %v1019, %v1019
    %v1084 = vpack.c.b16 %v1020, %v1020
    %v1085 = vpack.c.b16 %v1021, %v1021
    %v1086 = vpack.c.b16 %v1022, %v1022
    %v1087 = vpack.c.b16 %v1023, %v1023
    %v1088 = vpack.c.b16 %v1024, %v1024
    %v1089 = vpack.c.b16 %v1025, %v1025
    %v1090 = vpack.c.b16 %v1026, %v1026
    %v1091 = vpack.c.b16 %v1027, %v1027
    %v1092 = vpack.c.b16 %v1028, %v1028
    %v1093 = vpack.c.b16 %v1029, %v1029
    %v1094 = vpack.c.b16 %v1030, %v1030
    %v1095 = vpack.c.b16 %v1031, %v1031
    %v1096 = vpack.c.b16 %v1032, %v1032
    %v1097 = vpack.c.b16 %v1033, %v1033
    %v1098 = vpack.c.b16 %v1034, %v1034
    %v1099 = vpack.c.b16 %v1035, %v1035
    %v1100 = vpack.c.b16 %v1036, %v1036
    %v1101 = vpack.c.b16 %v1037, %v1037
    %v1102 = vpack.c.b16 %v1038, %v1038
    %v1103 = vpack.c.b16 %v1039, %v1039
    %v1104 = vpack.c.b16 %v1040, %v1040
    %v1105 = vpack.c.b16 %v1041, %v1041
    %v1106 = vpack.c.b16 %v1042, %v1042
    %v1107 = vpack.c.b16 %v1043, %v1043
    %v1108 = vpack.c.b16 %v1044, %v1044
    %v1109 = vpack.c.b16 %v1045, %v1045
    %v1110 = vpack.c.b16 %v1046, %v1046
    %v1111 = vpack.c.b16 %v1047, %v1047
    %v1112 = vpack.c.b16 %v1048, %v1048
    %v1113 = vpack.c.b16 %v1049, %v1049
    %v1114 = vpack.c.b16 %v1050, %v1050
    %v1115 = vpack.c.b16 %v1051, %v1051
    %v1116 = vpack.c.b16 %v1052, %v1052
    %v1117 = vpack.c.b16 %v1053, %v1053
    %v1118 = vpack.c.b16 %v1054, %v1054
    %v1119 = vpack.c.b16 %v1055, %v1055
    %v1120 = vpack.c.b16 %v1056, %v1056
    %v1121 = vpack.c.b16 %v1057, %v1057
    %v1122 = vpack.c.b16 %v1058, %v1058
    %v1123 = vpack.c.b16 %v1059, %v1059
    %v1124 = vpack.c.b16 %v1060, %v1060
    %v1125 = vpack.c.b16 %v1061, %v1061
    %v1126 = vpack.c.b16 %v1062, %v1062
    %v1127 = vpack.c.b16 %v1063, %v1063
    %v1128 = vpack.c.b16 %v1064, %v1064
    %v1129 = vpack.c.b16 %v1065, %v1065
    %v1130 = vpack.c.b16 %v1066, %v1066
    %v1131 = vpack.c.b16 %v1067, %v1067
    %v1132 = vpack.c.b16 %v1068, %v1068
    %v1133 = vpack.c.b16 %v1069, %v1069
    %v1134 = vpack.c.b16 %v1070, %v1070
    %v1135 = vpack.c.b16 %v1071, %v1071
    %v1136 = vpack.c.b16 %v1072, %v1072
    %v1137 = vpack.c.b16 %v1073, %v1073
    %v1138 = vpack.c.b16 %v1074, %v1074
    %v1139 = vpack.c.b16 %v1075, %v1075
    %1204 = vst [vmem:[%s2] sm:$0xf] %v1076
    %1205 = vst [vmem:[%s2 + $0x4] sm:$0xf] %v1077
    %1206 = vst [vmem:[%s2 + $0x8] sm:$0xf] %v1078
    %1207 = vst [vmem:[%s2 + $0xc] sm:$0xf] %v1079
    %1208 = vst [vmem:[%s2 + $0x10] sm:$0xf] %v1080
    %1209 = vst [vmem:[%s2 + $0x14] sm:$0xf] %v1081
    %1210 = vst [vmem:[%s2 + $0x18] sm:$0xf] %v1082
    %1211 = vst [vmem:[%s2 + $0x1c] sm:$0xf] %v1083
    %1212 = vst [vmem:[%s2 + $0x20] sm:$0xf] %v1084
    %1213 = vst [vmem:[%s2 + $0x24] sm:$0xf] %v1085
    %1214 = vst [vmem:[%s2 + $0x28] sm:$0xf] %v1086
    %1215 = vst [vmem:[%s2 + $0x2c] sm:$0xf] %v1087
    %1216 = vst [vmem:[%s2 + $0x30] sm:$0xf] %v1088
    %1217 = vst [vmem:[%s2 + $0x34] sm:$0xf] %v1089
    %1218 = vst [vmem:[%s2 + $0x38] sm:$0xf] %v1090
    %1219 = vst [vmem:[%s2 + $0x3c] sm:$0xf] %v1091
    %1220 = vst [vmem:[%s2 + $0x40] sm:$0xf] %v1092
    %1221 = vst [vmem:[%s2 + $0x44] sm:$0xf] %v1093
    %1222 = vst [vmem:[%s2 + $0x48] sm:$0xf] %v1094
    %1223 = vst [vmem:[%s2 + $0x4c] sm:$0xf] %v1095
    %1224 = vst [vmem:[%s2 + $0x50] sm:$0xf] %v1096
    %1225 = vst [vmem:[%s2 + $0x54] sm:$0xf] %v1097
    %1226 = vst [vmem:[%s2 + $0x58] sm:$0xf] %v1098
    %1227 = vst [vmem:[%s2 + $0x5c] sm:$0xf] %v1099
    %1228 = vst [vmem:[%s2 + $0x60] sm:$0xf] %v1100
    %1229 = vst [vmem:[%s2 + $0x64] sm:$0xf] %v1101
    %1230 = vst [vmem:[%s2 + $0x68] sm:$0xf] %v1102
    %1231 = vst [vmem:[%s2 + $0x6c] sm:$0xf] %v1103
    %1232 = vst [vmem:[%s2 + $0x70] sm:$0xf] %v1104
    %1233 = vst [vmem:[%s2 + $0x74] sm:$0xf] %v1105
    %1234 = vst [vmem:[%s2 + $0x78] sm:$0xf] %v1106
    %1235 = vst [vmem:[%s2 + $0x7c] sm:$0xf] %v1107
    %1236 = vst [vmem:[%s2 + $0x80] sm:$0xf] %v1108
    %1237 = vst [vmem:[%s2 + $0x84] sm:$0xf] %v1109
    %1238 = vst [vmem:[%s2 + $0x88] sm:$0xf] %v1110
    %1239 = vst [vmem:[%s2 + $0x8c] sm:$0xf] %v1111
    %1240 = vst [vmem:[%s2 + $0x90] sm:$0xf] %v1112
    %1241 = vst [vmem:[%s2 + $0x94] sm:$0xf] %v1113
    %1242 = vst [vmem:[%s2 + $0x98] sm:$0xf] %v1114
    %1243 = vst [vmem:[%s2 + $0x9c] sm:$0xf] %v1115
    %1244 = vst [vmem:[%s2 + $0xa0] sm:$0xf] %v1116
    %1245 = vst [vmem:[%s2 + $0xa4] sm:$0xf] %v1117
    %1246 = vst [vmem:[%s2 + $0xa8] sm:$0xf] %v1118
    %1247 = vst [vmem:[%s2 + $0xac] sm:$0xf] %v1119
    %1248 = vst [vmem:[%s2 + $0xb0] sm:$0xf] %v1120
    %1249 = vst [vmem:[%s2 + $0xb4] sm:$0xf] %v1121
    %1250 = vst [vmem:[%s2 + $0xb8] sm:$0xf] %v1122
    %1251 = vst [vmem:[%s2 + $0xbc] sm:$0xf] %v1123
    %1252 = vst [vmem:[%s2 + $0xc0] sm:$0xf] %v1124
    %1253 = vst [vmem:[%s2 + $0xc4] sm:$0xf] %v1125
    %1254 = vst [vmem:[%s2 + $0xc8] sm:$0xf] %v1126
    %1255 = vst [vmem:[%s2 + $0xcc] sm:$0xf] %v1127
    %1256 = vst [vmem:[%s2 + $0xd0] sm:$0xf] %v1128
    %1257 = vst [vmem:[%s2 + $0xd4] sm:$0xf] %v1129
    %1258 = vst [vmem:[%s2 + $0xd8] sm:$0xf] %v1130
    %1259 = vst [vmem:[%s2 + $0xdc] sm:$0xf] %v1131
    %1260 = vst [vmem:[%s2 + $0xe0] sm:$0xf] %v1132
    %1261 = vst [vmem:[%s2 + $0xe4] sm:$0xf] %v1133
    %1262 = vst [vmem:[%s2 + $0xe8] sm:$0xf] %v1134
    %1263 = vst [vmem:[%s2 + $0xec] sm:$0xf] %v1135
    %1264 = vst [vmem:[%s2 + $0xf0] sm:$0xf] %v1136
    %1265 = vst [vmem:[%s2 + $0xf4] sm:$0xf] %v1137
    %1266 = vst [vmem:[%s2 + $0xf8] sm:$0xf] %v1138
    %1267 = vst [vmem:[%s2 + $0xfc] sm:$0xf] %v1139
  $region17: #{_lambda_.8} parent=0 // pred_fallthru
    _
  // Predicated region
  $region18: #{_lambda_.8} parent=0 // pred_check
    _
  $region19: #{_lambda_.8} parent=0 // pred_check_branch
    %1269 = sbr.rel (0) target = $region21
  $region20: #{_lambda_.8} parent=0 // pred_region
    _
  $region21: #{_lambda_.8} parent=0 // pred_fallthru
    _
  // Predicated region
  $region22: #{_lambda_.8} parent=0 // pred_check
    _
  $region23: #{_lambda_.8} parent=0 // pred_check_branch
    %1271 = sbr.rel (0) target = $region25
  $region24: #{_lambda_.8} parent=0 // pred_region
    _
  $region25: #{_lambda_.8} parent=0 // pred_fallthru
    _

// kernel: _lambda_.10
$region0: #{_lambda_.10}
  #allocation0 [shape = 'u32[]', space=smem, size = 0x4, offset = 0x4, fixed_abs, tag = 'smem constant byte address 0x4 - core index']
  #allocation1 [shape = 'u32[144,128]{1,0:T(1,128)}', space=vmem, size = 0x12000, scoped, tag = 'internal scratch']
  #allocation2 [shape = 'f32[512,128]{1,0:T(8,128)}', space=vmem, size = 0x40000, scoped, tag = 'scratch operand']
  %s0 = inlined_call_operand.vmem [shape: bf16[512,128], index: 0, kind: input, shape index: {}]
  %s1 = inlined_call_operand.vmem [shape: bf16[128,128], index: 1, kind: input, shape index: {}]
  %s2 = inlined_call_operand.vmem [shape: f32[1,128], index: 2, kind: input, shape index: {}]
  %s3 = inlined_call_operand.vmem [shape: bf16[512,128], index: 3, kind: output, shape index: {}]
  %s4 = sld [smem:[#allocation0]]
  $region30: #{_lambda_.10} parent=0
    _
  %s6 = ssub.s32 1, %s4
  %s7 = scalar_select 0, %s6, %s4
  // Predicated region
  $region2: #{_lambda_.10} parent=0 // pred_check
    _
  $region3: #{_lambda_.10} parent=0 // pred_check_branch
    %9 = sbr.rel (0) target = $region5
  $region4: #{_lambda_.10} parent=0 // pred_region
    _
  $region5: #{_lambda_.10} parent=0 // pred_fallthru
    _
  // Predicated region
  $region6: #{_lambda_.10} parent=0 // pred_check
    _
  $region7: #{_lambda_.10} parent=0 // pred_check_branch
    %11 = sbr.rel (0) target = $region9
  $region8: #{_lambda_.10} parent=0 // pred_region
    _
  $region9: #{_lambda_.10} parent=0 // pred_fallthru
    _
  // Predicated region
  $region10: #{_lambda_.10} parent=0 // pred_check
    _
  $region11: #{_lambda_.10} parent=0 // pred_check_branch
    %13 = sbr.rel (0) target = $region13
  $region12: #{_lambda_.10} parent=0 // pred_region
    _
  $region13: #{_lambda_.10} parent=0 // pred_fallthru
    _
  %p15 = scmp.eq.s32.totalorder 0, 0
  // Predicated region
  $region14: #{_lambda_.10} parent=0 // pred_check
    %p16 = pneg %p15
  $region15: #{_lambda_.10} parent=0 // pred_check_branch
    %18 = sbr.rel (%p16) target = $region17
  $region16: #{_lambda_.10} parent=0 // pred_region
    %19 = vst [vmem:[#allocation2] sm:$0xff] 0.0
    %20 = vst [vmem:[#allocation2 + $0x8] sm:$0xff] 0.0
    %21 = vst [vmem:[#allocation2 + $0x10] sm:$0xff] 0.0
    %22 = vst [vmem:[#allocation2 + $0x18] sm:$0xff] 0.0
    %23 = vst [vmem:[#allocation2 + $0x20] sm:$0xff] 0.0
    %24 = vst [vmem:[#allocation2 + $0x28] sm:$0xff] 0.0
    %25 = vst [vmem:[#allocation2 + $0x30] sm:$0xff] 0.0
    %26 = vst [vmem:[#allocation2 + $0x38] sm:$0xff] 0.0
    %27 = vst [vmem:[#allocation2 + $0x40] sm:$0xff] 0.0
    %28 = vst [vmem:[#allocation2 + $0x48] sm:$0xff] 0.0
    %29 = vst [vmem:[#allocation2 + $0x50] sm:$0xff] 0.0
    %30 = vst [vmem:[#allocation2 + $0x58] sm:$0xff] 0.0
    %31 = vst [vmem:[#allocation2 + $0x60] sm:$0xff] 0.0
    %32 = vst [vmem:[#allocation2 + $0x68] sm:$0xff] 0.0
    %33 = vst [vmem:[#allocation2 + $0x70] sm:$0xff] 0.0
    %34 = vst [vmem:[#allocation2 + $0x78] sm:$0xff] 0.0
    %35 = vst [vmem:[#allocation2 + $0x80] sm:$0xff] 0.0
    %36 = vst [vmem:[#allocation2 + $0x88] sm:$0xff] 0.0
    %37 = vst [vmem:[#allocation2 + $0x90] sm:$0xff] 0.0
    %38 = vst [vmem:[#allocation2 + $0x98] sm:$0xff] 0.0
    %39 = vst [vmem:[#allocation2 + $0xa0] sm:$0xff] 0.0
    %40 = vst [vmem:[#allocation2 + $0xa8] sm:$0xff] 0.0
    %41 = vst [vmem:[#allocation2 + $0xb0] sm:$0xff] 0.0
    %42 = vst [vmem:[#allocation2 + $0xb8] sm:$0xff] 0.0
    %43 = vst [vmem:[#allocation2 + $0xc0] sm:$0xff] 0.0
    %44 = vst [vmem:[#allocation2 + $0xc8] sm:$0xff] 0.0
    %45 = vst [vmem:[#allocation2 + $0xd0] sm:$0xff] 0.0
    %46 = vst [vmem:[#allocation2 + $0xd8] sm:$0xff] 0.0
    %47 = vst [vmem:[#allocation2 + $0xe0] sm:$0xff] 0.0
    %48 = vst [vmem:[#allocation2 + $0xe8] sm:$0xff] 0.0
    %49 = vst [vmem:[#allocation2 + $0xf0] sm:$0xff] 0.0
    %50 = vst [vmem:[#allocation2 + $0xf8] sm:$0xff] 0.0
    %51 = vst [vmem:[#allocation2 + $0x100] sm:$0xff] 0.0
    %52 = vst [vmem:[#allocation2 + $0x108] sm:$0xff] 0.0
    %53 = vst [vmem:[#allocation2 + $0x110] sm:$0xff] 0.0
    %54 = vst [vmem:[#allocation2 + $0x118] sm:$0xff] 0.0
    %55 = vst [vmem:[#allocation2 + $0x120] sm:$0xff] 0.0
    %56 = vst [vmem:[#allocation2 + $0x128] sm:$0xff] 0.0
    %57 = vst [vmem:[#allocation2 + $0x130] sm:$0xff] 0.0
    %58 = vst [vmem:[#allocation2 + $0x138] sm:$0xff] 0.0
    %59 = vst [vmem:[#allocation2 + $0x140] sm:$0xff] 0.0
    %60 = vst [vmem:[#allocation2 + $0x148] sm:$0xff] 0.0
    %61 = vst [vmem:[#allocation2 + $0x150] sm:$0xff] 0.0
    %62 = vst [vmem:[#allocation2 + $0x158] sm:$0xff] 0.0
    %63 = vst [vmem:[#allocation2 + $0x160] sm:$0xff] 0.0
    %64 = vst [vmem:[#allocation2 + $0x168] sm:$0xff] 0.0
    %65 = vst [vmem:[#allocation2 + $0x170] sm:$0xff] 0.0
    %66 = vst [vmem:[#allocation2 + $0x178] sm:$0xff] 0.0
    %67 = vst [vmem:[#allocation2 + $0x180] sm:$0xff] 0.0
    %68 = vst [vmem:[#allocation2 + $0x188] sm:$0xff] 0.0
    %69 = vst [vmem:[#allocation2 + $0x190] sm:$0xff] 0.0
    %70 = vst [vmem:[#allocation2 + $0x198] sm:$0xff] 0.0
    %71 = vst [vmem:[#allocation2 + $0x1a0] sm:$0xff] 0.0
    %72 = vst [vmem:[#allocation2 + $0x1a8] sm:$0xff] 0.0
    %73 = vst [vmem:[#allocation2 + $0x1b0] sm:$0xff] 0.0
    %74 = vst [vmem:[#allocation2 + $0x1b8] sm:$0xff] 0.0
    %75 = vst [vmem:[#allocation2 + $0x1c0] sm:$0xff] 0.0
    %76 = vst [vmem:[#allocation2 + $0x1c8] sm:$0xff] 0.0
    %77 = vst [vmem:[#allocation2 + $0x1d0] sm:$0xff] 0.0
    %78 = vst [vmem:[#allocation2 + $0x1d8] sm:$0xff] 0.0
    %79 = vst [vmem:[#allocation2 + $0x1e0] sm:$0xff] 0.0
    %80 = vst [vmem:[#allocation2 + $0x1e8] sm:$0xff] 0.0
    %81 = vst [vmem:[#allocation2 + $0x1f0] sm:$0xff] 0.0
    %82 = vst [vmem:[#allocation2 + $0x1f8] sm:$0xff] 0.0
  $region17: #{_lambda_.10} parent=0 // pred_fallthru
    _
  %v83 = vld [vmem:[#allocation2] sm:$0xff]
  %v84 = vld [vmem:[#allocation2 + $0x8] sm:$0xff]
  %v85 = vld [vmem:[#allocation2 + $0x10] sm:$0xff]
  %v86 = vld [vmem:[#allocation2 + $0x18] sm:$0xff]
  %v87 = vld [vmem:[#allocation2 + $0x20] sm:$0xff]
  %v88 = vld [vmem:[#allocation2 + $0x28] sm:$0xff]
  %v89 = vld [vmem:[#allocation2 + $0x30] sm:$0xff]
  %v90 = vld [vmem:[#allocation2 + $0x38] sm:$0xff]
  %v91 = vld [vmem:[#allocation2 + $0x40] sm:$0xff]
  %v92 = vld [vmem:[#allocation2 + $0x48] sm:$0xff]
  %v93 = vld [vmem:[#allocation2 + $0x50] sm:$0xff]
  %v94 = vld [vmem:[#allocation2 + $0x58] sm:$0xff]
  %v95 = vld [vmem:[#allocation2 + $0x60] sm:$0xff]
  %v96 = vld [vmem:[#allocation2 + $0x68] sm:$0xff]
  %v97 = vld [vmem:[#allocation2 + $0x70] sm:$0xff]
  %v98 = vld [vmem:[#allocation2 + $0x78] sm:$0xff]
  %v99 = vld [vmem:[#allocation2 + $0x80] sm:$0xff]
  %v100 = vld [vmem:[#allocation2 + $0x88] sm:$0xff]
  %v101 = vld [vmem:[#allocation2 + $0x90] sm:$0xff]
  %v102 = vld [vmem:[#allocation2 + $0x98] sm:$0xff]
  %v103 = vld [vmem:[#allocation2 + $0xa0] sm:$0xff]
  %v104 = vld [vmem:[#allocation2 + $0xa8] sm:$0xff]
  %v105 = vld [vmem:[#allocation2 + $0xb0] sm:$0xff]
  %v106 = vld [vmem:[#allocation2 + $0xb8] sm:$0xff]
  %v107 = vld [vmem:[#allocation2 + $0xc0] sm:$0xff]
  %v108 = vld [vmem:[#allocation2 + $0xc8] sm:$0xff]
  %v109 = vld [vmem:[#allocation2 + $0xd0] sm:$0xff]
  %v110 = vld [vmem:[#allocation2 + $0xd8] sm:$0xff]
  %v111 = vld [vmem:[#allocation2 + $0xe0] sm:$0xff]
  %v112 = vld [vmem:[#allocation2 + $0xe8] sm:$0xff]
  %v113 = vld [vmem:[#allocation2 + $0xf0] sm:$0xff]
  %v114 = vld [vmem:[#allocation2 + $0xf8] sm:$0xff]
  %v115 = vld [vmem:[#allocation2 + $0x100] sm:$0xff]
  %v116 = vld [vmem:[#allocation2 + $0x108] sm:$0xff]
  %v117 = vld [vmem:[#allocation2 + $0x110] sm:$0xff]
  %v118 = vld [vmem:[#allocation2 + $0x118] sm:$0xff]
  %v119 = vld [vmem:[#allocation2 + $0x120] sm:$0xff]
  %v120 = vld [vmem:[#allocation2 + $0x128] sm:$0xff]
  %v121 = vld [vmem:[#allocation2 + $0x130] sm:$0xff]
  %v122 = vld [vmem:[#allocation2 + $0x138] sm:$0xff]
  %v123 = vld [vmem:[#allocation2 + $0x140] sm:$0xff]
  %v124 = vld [vmem:[#allocation2 + $0x148] sm:$0xff]
  %v125 = vld [vmem:[#allocation2 + $0x150] sm:$0xff]
  %v126 = vld [vmem:[#allocation2 + $0x158] sm:$0xff]
  %v127 = vld [vmem:[#allocation2 + $0x160] sm:$0xff]
  %v128 = vld [vmem:[#allocation2 + $0x168] sm:$0xff]
  %v129 = vld [vmem:[#allocation2 + $0x170] sm:$0xff]
  %v130 = vld [vmem:[#allocation2 + $0x178] sm:$0xff]
  %v131 = vld [vmem:[#allocation2 + $0x180] sm:$0xff]
  %v132 = vld [vmem:[#allocation2 + $0x188] sm:$0xff]
  %v133 = vld [vmem:[#allocation2 + $0x190] sm:$0xff]
  %v134 = vld [vmem:[#allocation2 + $0x198] sm:$0xff]
  %v135 = vld [vmem:[#allocation2 + $0x1a0] sm:$0xff]
  %v136 = vld [vmem:[#allocation2 + $0x1a8] sm:$0xff]
  %v137 = vld [vmem:[#allocation2 + $0x1b0] sm:$0xff]
  %v138 = vld [vmem:[#allocation2 + $0x1b8] sm:$0xff]
  %v139 = vld [vmem:[#allocation2 + $0x1c0] sm:$0xff]
  %v140 = vld [vmem:[#allocation2 + $0x1c8] sm:$0xff]
  %v141 = vld [vmem:[#allocation2 + $0x1d0] sm:$0xff]
  %v142 = vld [vmem:[#allocation2 + $0x1d8] sm:$0xff]
  %v143 = vld [vmem:[#allocation2 + $0x1e0] sm:$0xff]
  %v144 = vld [vmem:[#allocation2 + $0x1e8] sm:$0xff]
  %v145 = vld [vmem:[#allocation2 + $0x1f0] sm:$0xff]
  %v146 = vld [vmem:[#allocation2 + $0x1f8] sm:$0xff]
  %v147 = vld [vmem:[%s0] sm:$0xf]
  %v148 = vld [vmem:[%s0 + $0x4] sm:$0xf]
  %v149 = vld [vmem:[%s0 + $0x8] sm:$0xf]
  %v150 = vld [vmem:[%s0 + $0xc] sm:$0xf]
  %v151 = vld [vmem:[%s0 + $0x10] sm:$0xf]
  %v152 = vld [vmem:[%s0 + $0x14] sm:$0xf]
  %v153 = vld [vmem:[%s0 + $0x18] sm:$0xf]
  %v154 = vld [vmem:[%s0 + $0x1c] sm:$0xf]
  %v155 = vld [vmem:[%s0 + $0x20] sm:$0xf]
  %v156 = vld [vmem:[%s0 + $0x24] sm:$0xf]
  %v157 = vld [vmem:[%s0 + $0x28] sm:$0xf]
  %v158 = vld [vmem:[%s0 + $0x2c] sm:$0xf]
  %v159 = vld [vmem:[%s0 + $0x30] sm:$0xf]
  %v160 = vld [vmem:[%s0 + $0x34] sm:$0xf]
  %v161 = vld [vmem:[%s0 + $0x38] sm:$0xf]
  %v162 = vld [vmem:[%s0 + $0x3c] sm:$0xf]
  %v163 = vld [vmem:[%s0 + $0x40] sm:$0xf]
  %v164 = vld [vmem:[%s0 + $0x44] sm:$0xf]
  %v165 = vld [vmem:[%s0 + $0x48] sm:$0xf]
  %v166 = vld [vmem:[%s0 + $0x4c] sm:$0xf]
  %v167 = vld [vmem:[%s0 + $0x50] sm:$0xf]
  %v168 = vld [vmem:[%s0 + $0x54] sm:$0xf]
  %v169 = vld [vmem:[%s0 + $0x58] sm:$0xf]
  %v170 = vld [vmem:[%s0 + $0x5c] sm:$0xf]
  %v171 = vld [vmem:[%s0 + $0x60] sm:$0xf]
  %v172 = vld [vmem:[%s0 + $0x64] sm:$0xf]
  %v173 = vld [vmem:[%s0 + $0x68] sm:$0xf]
  %v174 = vld [vmem:[%s0 + $0x6c] sm:$0xf]
  %v175 = vld [vmem:[%s0 + $0x70] sm:$0xf]
  %v176 = vld [vmem:[%s0 + $0x74] sm:$0xf]
  %v177 = vld [vmem:[%s0 + $0x78] sm:$0xf]
  %v178 = vld [vmem:[%s0 + $0x7c] sm:$0xf]
  %v179 = vld [vmem:[%s0 + $0x80] sm:$0xf]
  %v180 = vld [vmem:[%s0 + $0x84] sm:$0xf]
  %v181 = vld [vmem:[%s0 + $0x88] sm:$0xf]
  %v182 = vld [vmem:[%s0 + $0x8c] sm:$0xf]
  %v183 = vld [vmem:[%s0 + $0x90] sm:$0xf]
  %v184 = vld [vmem:[%s0 + $0x94] sm:$0xf]
  %v185 = vld [vmem:[%s0 + $0x98] sm:$0xf]
  %v186 = vld [vmem:[%s0 + $0x9c] sm:$0xf]
  %v187 = vld [vmem:[%s0 + $0xa0] sm:$0xf]
  %v188 = vld [vmem:[%s0 + $0xa4] sm:$0xf]
  %v189 = vld [vmem:[%s0 + $0xa8] sm:$0xf]
  %v190 = vld [vmem:[%s0 + $0xac] sm:$0xf]
  %v191 = vld [vmem:[%s0 + $0xb0] sm:$0xf]
  %v192 = vld [vmem:[%s0 + $0xb4] sm:$0xf]
  %v193 = vld [vmem:[%s0 + $0xb8] sm:$0xf]
  %v194 = vld [vmem:[%s0 + $0xbc] sm:$0xf]
  %v195 = vld [vmem:[%s0 + $0xc0] sm:$0xf]
  %v196 = vld [vmem:[%s0 + $0xc4] sm:$0xf]
  %v197 = vld [vmem:[%s0 + $0xc8] sm:$0xf]
  %v198 = vld [vmem:[%s0 + $0xcc] sm:$0xf]
  %v199 = vld [vmem:[%s0 + $0xd0] sm:$0xf]
  %v200 = vld [vmem:[%s0 + $0xd4] sm:$0xf]
  %v201 = vld [vmem:[%s0 + $0xd8] sm:$0xf]
  %v202 = vld [vmem:[%s0 + $0xdc] sm:$0xf]
  %v203 = vld [vmem:[%s0 + $0xe0] sm:$0xf]
  %v204 = vld [vmem:[%s0 + $0xe4] sm:$0xf]
  %v205 = vld [vmem:[%s0 + $0xe8] sm:$0xf]
  %v206 = vld [vmem:[%s0 + $0xec] sm:$0xf]
  %v207 = vld [vmem:[%s0 + $0xf0] sm:$0xf]
  %v208 = vld [vmem:[%s0 + $0xf4] sm:$0xf]
  %v209 = vld [vmem:[%s0 + $0xf8] sm:$0xf]
  %v210 = vld [vmem:[%s0 + $0xfc] sm:$0xf]
  %v211 = vld [vmem:[%s1] sm:$0xf]
  %v212 = vld [vmem:[%s1 + $0x4] sm:$0xf]
  %v213 = vld [vmem:[%s1 + $0x8] sm:$0xf]
  %v214 = vld [vmem:[%s1 + $0xc] sm:$0xf]
  %v215 = vld [vmem:[%s1 + $0x10] sm:$0xf]
  %v216 = vld [vmem:[%s1 + $0x14] sm:$0xf]
  %v217 = vld [vmem:[%s1 + $0x18] sm:$0xf]
  %v218 = vld [vmem:[%s1 + $0x1c] sm:$0xf]
  %v219 = vld [vmem:[%s1 + $0x20] sm:$0xf]
  %v220 = vld [vmem:[%s1 + $0x24] sm:$0xf]
  %v221 = vld [vmem:[%s1 + $0x28] sm:$0xf]
  %v222 = vld [vmem:[%s1 + $0x2c] sm:$0xf]
  %v223 = vld [vmem:[%s1 + $0x30] sm:$0xf]
  %v224 = vld [vmem:[%s1 + $0x34] sm:$0xf]
  %v225 = vld [vmem:[%s1 + $0x38] sm:$0xf]
  %v226 = vld [vmem:[%s1 + $0x3c] sm:$0xf]
  %v291 = vunpack.c.l.b16 %v147
  %v292 = vunpack.c.l.b16 %v148
  %v293 = vunpack.c.l.b16 %v149
  %v294 = vunpack.c.l.b16 %v150
  %v295 = vunpack.c.l.b16 %v151
  %v296 = vunpack.c.l.b16 %v152
  %v297 = vunpack.c.l.b16 %v153
  %v298 = vunpack.c.l.b16 %v154
  %v299 = vunpack.c.l.b16 %v155
  %v300 = vunpack.c.l.b16 %v156
  %v301 = vunpack.c.l.b16 %v157
  %v302 = vunpack.c.l.b16 %v158
  %v303 = vunpack.c.l.b16 %v159
  %v304 = vunpack.c.l.b16 %v160
  %v305 = vunpack.c.l.b16 %v161
  %v306 = vunpack.c.l.b16 %v162
  %v307 = vunpack.c.l.b16 %v163
  %v308 = vunpack.c.l.b16 %v164
  %v309 = vunpack.c.l.b16 %v165
  %v310 = vunpack.c.l.b16 %v166
  %v311 = vunpack.c.l.b16 %v167
  %v312 = vunpack.c.l.b16 %v168
  %v313 = vunpack.c.l.b16 %v169
  %v314 = vunpack.c.l.b16 %v170
  %v315 = vunpack.c.l.b16 %v171
  %v316 = vunpack.c.l.b16 %v172
  %v317 = vunpack.c.l.b16 %v173
  %v318 = vunpack.c.l.b16 %v174
  %v319 = vunpack.c.l.b16 %v175
  %v320 = vunpack.c.l.b16 %v176
  %v321 = vunpack.c.l.b16 %v177
  %v322 = vunpack.c.l.b16 %v178
  %v323 = vunpack.c.l.b16 %v179
  %v324 = vunpack.c.l.b16 %v180
  %v325 = vunpack.c.l.b16 %v181
  %v326 = vunpack.c.l.b16 %v182
  %v327 = vunpack.c.l.b16 %v183
  %v328 = vunpack.c.l.b16 %v184
  %v329 = vunpack.c.l.b16 %v185
  %v330 = vunpack.c.l.b16 %v186
  %v331 = vunpack.c.l.b16 %v187
  %v332 = vunpack.c.l.b16 %v188
  %v333 = vunpack.c.l.b16 %v189
  %v334 = vunpack.c.l.b16 %v190
  %v335 = vunpack.c.l.b16 %v191
  %v336 = vunpack.c.l.b16 %v192
  %v337 = vunpack.c.l.b16 %v193
  %v338 = vunpack.c.l.b16 %v194
  %v339 = vunpack.c.l.b16 %v195
  %v340 = vunpack.c.l.b16 %v196
  %v341 = vunpack.c.l.b16 %v197
  %v342 = vunpack.c.l.b16 %v198
  %v343 = vunpack.c.l.b16 %v199
  %v344 = vunpack.c.l.b16 %v200
  %v345 = vunpack.c.l.b16 %v201
  %v346 = vunpack.c.l.b16 %v202
  %v347 = vunpack.c.l.b16 %v203
  %v348 = vunpack.c.l.b16 %v204
  %v349 = vunpack.c.l.b16 %v205
  %v350 = vunpack.c.l.b16 %v206
  %v351 = vunpack.c.l.b16 %v207
  %v352 = vunpack.c.l.b16 %v208
  %v353 = vunpack.c.l.b16 %v209
  %v354 = vunpack.c.l.b16 %v210
  %v355 = vpack.c.b16 %v292, %v291
  %v356 = vpack.c.b16 %v294, %v293
  %v357 = vpack.c.b16 %v296, %v295
  %v358 = vpack.c.b16 %v298, %v297
  %v359 = vpack.c.b16 %v300, %v299
  %v360 = vpack.c.b16 %v302, %v301
  %v361 = vpack.c.b16 %v304, %v303
  %v362 = vpack.c.b16 %v306, %v305
  %v363 = vpack.c.b16 %v308, %v307
  %v364 = vpack.c.b16 %v310, %v309
  %v365 = vpack.c.b16 %v312, %v311
  %v366 = vpack.c.b16 %v314, %v313
  %v367 = vpack.c.b16 %v316, %v315
  %v368 = vpack.c.b16 %v318, %v317
  %v369 = vpack.c.b16 %v320, %v319
  %v370 = vpack.c.b16 %v322, %v321
  %v371 = vpack.c.b16 %v324, %v323
  %v372 = vpack.c.b16 %v326, %v325
  %v373 = vpack.c.b16 %v328, %v327
  %v374 = vpack.c.b16 %v330, %v329
  %v375 = vpack.c.b16 %v332, %v331
  %v376 = vpack.c.b16 %v334, %v333
  %v377 = vpack.c.b16 %v336, %v335
  %v378 = vpack.c.b16 %v338, %v337
  %v379 = vpack.c.b16 %v340, %v339
  %v380 = vpack.c.b16 %v342, %v341
  %v381 = vpack.c.b16 %v344, %v343
  %v382 = vpack.c.b16 %v346, %v345
  %v383 = vpack.c.b16 %v348, %v347
  %v384 = vpack.c.b16 %v350, %v349
  %v385 = vpack.c.b16 %v352, %v351
  %v386 = vpack.c.b16 %v354, %v353
  %v435 = vunpack.c.l.b16 %v211
  %v436 = vunpack.c.l.b16 %v212
  %v437 = vunpack.c.l.b16 %v213
  %v438 = vunpack.c.l.b16 %v214
  %v439 = vunpack.c.l.b16 %v215
  %v440 = vunpack.c.l.b16 %v216
  %v441 = vunpack.c.l.b16 %v217
  %v442 = vunpack.c.l.b16 %v218
  %v443 = vunpack.c.l.b16 %v219
  %v444 = vunpack.c.l.b16 %v220
  %v445 = vunpack.c.l.b16 %v221
  %v446 = vunpack.c.l.b16 %v222
  %v447 = vunpack.c.l.b16 %v223
  %v448 = vunpack.c.l.b16 %v224
  %v449 = vunpack.c.l.b16 %v225
  %v450 = vunpack.c.l.b16 %v226
  %v451 = vpack.c.b16 %v436, %v435
  %v452 = vpack.c.b16 %v438, %v437
  %v453 = vpack.c.b16 %v440, %v439
  %v454 = vpack.c.b16 %v442, %v441
  %v455 = vpack.c.b16 %v444, %v443
  %v456 = vpack.c.b16 %v446, %v445
  %v457 = vpack.c.b16 %v448, %v447
  %v458 = vpack.c.b16 %v450, %v449
  %467 = vmatprep.subr.bf16.mxu0 0
  %468 = vmatpush1.bf16.msra.mxu0 %v458
  %469 = vmatprep.subr.bf16.mxu0 0
  %470 = vmatpush1.bf16.msra.mxu0 %v457
  %471 = vmatprep.subr.bf16.mxu0 0
  %472 = vmatpush1.bf16.msra.mxu0 %v456
  %473 = vmatprep.subr.bf16.mxu0 0
  %474 = vmatpush1.bf16.msra.mxu0 %v455
  %475 = vmatprep.subr.bf16.mxu0 0
  %476 = vmatpush1.bf16.msra.mxu0 %v454
  %477 = vmatprep.subr.bf16.mxu0 0
  %478 = vmatpush1.bf16.msra.mxu0 %v453
  %479 = vmatprep.subr.bf16.mxu0 0
  %480 = vmatpush1.bf16.msra.mxu0 %v452
  %481 = vmatprep.subr.bf16.mxu0 0
  %482 = vmatpush1.bf16.msra.mxu0 %v451
  %483 = vmatprep.subr.bf16.mxu0 0
  %484 = vmatpush2.bf16.msra.mxu0 0
  %485 = vmatprep.subr.bf16.mxu0 0
  %486 = vmatpush2.bf16.msra.mxu0 0
  %487 = vmatprep.subr.bf16.mxu0 0
  %488 = vmatpush2.bf16.msra.mxu0 0
  %489 = vmatprep.subr.bf16.mxu0 0
  %490 = vmatpush2.bf16.msra.mxu0 0
  %491 = vmatprep.subr.bf16.mxu0 0
  %492 = vmatpush2.bf16.msra.mxu0 0
  %493 = vmatprep.subr.bf16.mxu0 0
  %494 = vmatpush2.bf16.msra.mxu0 0
  %495 = vmatprep.subr.bf16.mxu0 0
  %496 = vmatpush2.bf16.msra.mxu0 0
  %497 = vmatprep.subr.bf16.mxu0 0
  %498 = vmatpush2.bf16.msra.mxu0 0
  %499 = vmatprep.mubr.bf16.mxu0 0
  %500 = vmatmul.mubr.bf16.gmra.mxu0 %v355
  %v501 = vpop.f32.mrf.mxu0
  %v502 = vadd.f32 0.0, %v501
  %v503 = vpop.f32.mrf.mxu0
  %v504 = vpop.f32.mrf.mxu0
  %v505 = vadd.f32 0.0, %v504
  %v506 = vpop.f32.mrf.mxu0
  %507 = vmatprep.mubr.bf16.mxu0 0
  %508 = vmatmul.mubr.bf16.gmra.mxu0 %v356
  %v509 = vpop.f32.mrf.mxu0
  %v510 = vadd.f32 0.0, %v509
  %v511 = vpop.f32.mrf.mxu0
  %v512 = vpop.f32.mrf.mxu0
  %v513 = vadd.f32 0.0, %v512
  %v514 = vpop.f32.mrf.mxu0
  %515 = vmatprep.mubr.bf16.mxu0 0
  %516 = vmatmul.mubr.bf16.gmra.mxu0 %v357
  %v517 = vpop.f32.mrf.mxu0
  %v518 = vadd.f32 0.0, %v517
  %v519 = vpop.f32.mrf.mxu0
  %v520 = vpop.f32.mrf.mxu0
  %v521 = vadd.f32 0.0, %v520
  %v522 = vpop.f32.mrf.mxu0
  %523 = vmatprep.mubr.bf16.mxu0 0
  %524 = vmatmul.mubr.bf16.gmra.mxu0 %v358
  %v525 = vpop.f32.mrf.mxu0
  %v526 = vadd.f32 0.0, %v525
  %v527 = vpop.f32.mrf.mxu0
  %v528 = vpop.f32.mrf.mxu0
  %v529 = vadd.f32 0.0, %v528
  %v530 = vpop.f32.mrf.mxu0
  %531 = vmatprep.mubr.bf16.mxu0 0
  %532 = vmatmul.mubr.bf16.gmra.mxu0 %v359
  %v533 = vpop.f32.mrf.mxu0
  %v534 = vadd.f32 0.0, %v533
  %v535 = vpop.f32.mrf.mxu0
  %v536 = vpop.f32.mrf.mxu0
  %v537 = vadd.f32 0.0, %v536
  %v538 = vpop.f32.mrf.mxu0
  %539 = vmatprep.mubr.bf16.mxu0 0
  %540 = vmatmul.mubr.bf16.gmra.mxu0 %v360
  %v541 = vpop.f32.mrf.mxu0
  %v542 = vadd.f32 0.0, %v541
  %v543 = vpop.f32.mrf.mxu0
  %v544 = vpop.f32.mrf.mxu0
  %v545 = vadd.f32 0.0, %v544
  %v546 = vpop.f32.mrf.mxu0
  %547 = vmatprep.mubr.bf16.mxu0 0
  %548 = vmatmul.mubr.bf16.gmra.mxu0 %v361
  %v549 = vpop.f32.mrf.mxu0
  %v550 = vadd.f32 0.0, %v549
  %v551 = vpop.f32.mrf.mxu0
  %v552 = vpop.f32.mrf.mxu0
  %v553 = vadd.f32 0.0, %v552
  %v554 = vpop.f32.mrf.mxu0
  %555 = vmatprep.mubr.bf16.mxu0 0
  %556 = vmatmul.mubr.bf16.gmra.mxu0 %v362
  %v557 = vpop.f32.mrf.mxu0
  %v558 = vadd.f32 0.0, %v557
  %v559 = vpop.f32.mrf.mxu0
  %v560 = vpop.f32.mrf.mxu0
  %v561 = vadd.f32 0.0, %v560
  %v562 = vpop.f32.mrf.mxu0
  %563 = vmatprep.mubr.bf16.mxu0 0
  %564 = vmatmul.mubr.bf16.gmra.mxu0 %v363
  %v565 = vpop.f32.mrf.mxu0
  %v566 = vadd.f32 0.0, %v565
  %v567 = vpop.f32.mrf.mxu0
  %v568 = vpop.f32.mrf.mxu0
  %v569 = vadd.f32 0.0, %v568
  %v570 = vpop.f32.mrf.mxu0
  %571 = vmatprep.mubr.bf16.mxu0 0
  %572 = vmatmul.mubr.bf16.gmra.mxu0 %v364
  %v573 = vpop.f32.mrf.mxu0
  %v574 = vadd.f32 0.0, %v573
  %v575 = vpop.f32.mrf.mxu0
  %v576 = vpop.f32.mrf.mxu0
  %v577 = vadd.f32 0.0, %v576
  %v578 = vpop.f32.mrf.mxu0
  %579 = vmatprep.mubr.bf16.mxu0 0
  %580 = vmatmul.mubr.bf16.gmra.mxu0 %v365
  %v581 = vpop.f32.mrf.mxu0
  %v582 = vadd.f32 0.0, %v581
  %v583 = vpop.f32.mrf.mxu0
  %v584 = vpop.f32.mrf.mxu0
  %v585 = vadd.f32 0.0, %v584
  %v586 = vpop.f32.mrf.mxu0
  %587 = vmatprep.mubr.bf16.mxu0 0
  %588 = vmatmul.mubr.bf16.gmra.mxu0 %v366
  %v589 = vpop.f32.mrf.mxu0
  %v590 = vadd.f32 0.0, %v589
  %v591 = vpop.f32.mrf.mxu0
  %v592 = vpop.f32.mrf.mxu0
  %v593 = vadd.f32 0.0, %v592
  %v594 = vpop.f32.mrf.mxu0
  %595 = vmatprep.mubr.bf16.mxu0 0
  %596 = vmatmul.mubr.bf16.gmra.mxu0 %v367
  %v597 = vpop.f32.mrf.mxu0
  %v598 = vadd.f32 0.0, %v597
  %v599 = vpop.f32.mrf.mxu0
  %v600 = vpop.f32.mrf.mxu0
  %v601 = vadd.f32 0.0, %v600
  %v602 = vpop.f32.mrf.mxu0
  %603 = vmatprep.mubr.bf16.mxu0 0
  %604 = vmatmul.mubr.bf16.gmra.mxu0 %v368
  %v605 = vpop.f32.mrf.mxu0
  %v606 = vadd.f32 0.0, %v605
  %v607 = vpop.f32.mrf.mxu0
  %v608 = vpop.f32.mrf.mxu0
  %v609 = vadd.f32 0.0, %v608
  %v610 = vpop.f32.mrf.mxu0
  %611 = vmatprep.mubr.bf16.mxu0 0
  %612 = vmatmul.mubr.bf16.gmra.mxu0 %v369
  %v613 = vpop.f32.mrf.mxu0
  %v614 = vadd.f32 0.0, %v613
  %v615 = vpop.f32.mrf.mxu0
  %v616 = vpop.f32.mrf.mxu0
  %v617 = vadd.f32 0.0, %v616
  %v618 = vpop.f32.mrf.mxu0
  %619 = vmatprep.mubr.bf16.mxu0 0
  %620 = vmatmul.mubr.bf16.gmra.mxu0 %v370
  %v621 = vpop.f32.mrf.mxu0
  %v622 = vadd.f32 0.0, %v621
  %v623 = vpop.f32.mrf.mxu0
  %v624 = vpop.f32.mrf.mxu0
  %v625 = vadd.f32 0.0, %v624
  %v626 = vpop.f32.mrf.mxu0
  %627 = vmatprep.mubr.bf16.mxu0 0
  %628 = vmatmul.mubr.bf16.gmra.mxu0 %v371
  %v629 = vpop.f32.mrf.mxu0
  %v630 = vadd.f32 0.0, %v629
  %v631 = vpop.f32.mrf.mxu0
  %v632 = vpop.f32.mrf.mxu0
  %v633 = vadd.f32 0.0, %v632
  %v634 = vpop.f32.mrf.mxu0
  %635 = vmatprep.mubr.bf16.mxu0 0
  %636 = vmatmul.mubr.bf16.gmra.mxu0 %v372
  %v637 = vpop.f32.mrf.mxu0
  %v638 = vadd.f32 0.0, %v637
  %v639 = vpop.f32.mrf.mxu0
  %v640 = vpop.f32.mrf.mxu0
  %v641 = vadd.f32 0.0, %v640
  %v642 = vpop.f32.mrf.mxu0
  %643 = vmatprep.mubr.bf16.mxu0 0
  %644 = vmatmul.mubr.bf16.gmra.mxu0 %v373
  %v645 = vpop.f32.mrf.mxu0
  %v646 = vadd.f32 0.0, %v645
  %v647 = vpop.f32.mrf.mxu0
  %v648 = vpop.f32.mrf.mxu0
  %v649 = vadd.f32 0.0, %v648
  %v650 = vpop.f32.mrf.mxu0
  %651 = vmatprep.mubr.bf16.mxu0 0
  %652 = vmatmul.mubr.bf16.gmra.mxu0 %v374
  %v653 = vpop.f32.mrf.mxu0
  %v654 = vadd.f32 0.0, %v653
  %v655 = vpop.f32.mrf.mxu0
  %v656 = vpop.f32.mrf.mxu0
  %v657 = vadd.f32 0.0, %v656
  %v658 = vpop.f32.mrf.mxu0
  %659 = vmatprep.mubr.bf16.mxu0 0
  %660 = vmatmul.mubr.bf16.gmra.mxu0 %v375
  %v661 = vpop.f32.mrf.mxu0
  %v662 = vadd.f32 0.0, %v661
  %v663 = vpop.f32.mrf.mxu0
  %v664 = vpop.f32.mrf.mxu0
  %v665 = vadd.f32 0.0, %v664
  %v666 = vpop.f32.mrf.mxu0
  %667 = vmatprep.mubr.bf16.mxu0 0
  %668 = vmatmul.mubr.bf16.gmra.mxu0 %v376
  %v669 = vpop.f32.mrf.mxu0
  %v670 = vadd.f32 0.0, %v669
  %v671 = vpop.f32.mrf.mxu0
  %v672 = vpop.f32.mrf.mxu0
  %v673 = vadd.f32 0.0, %v672
  %v674 = vpop.f32.mrf.mxu0
  %675 = vmatprep.mubr.bf16.mxu0 0
  %676 = vmatmul.mubr.bf16.gmra.mxu0 %v377
  %v677 = vpop.f32.mrf.mxu0
  %v678 = vadd.f32 0.0, %v677
  %v679 = vpop.f32.mrf.mxu0
  %v680 = vpop.f32.mrf.mxu0
  %v681 = vadd.f32 0.0, %v680
  %v682 = vpop.f32.mrf.mxu0
  %683 = vmatprep.mubr.bf16.mxu0 0
  %684 = vmatmul.mubr.bf16.gmra.mxu0 %v378
  %v685 = vpop.f32.mrf.mxu0
  %v686 = vadd.f32 0.0, %v685
  %v687 = vpop.f32.mrf.mxu0
  %v688 = vpop.f32.mrf.mxu0
  %v689 = vadd.f32 0.0, %v688
  %v690 = vpop.f32.mrf.mxu0
  %691 = vmatprep.mubr.bf16.mxu0 0
  %692 = vmatmul.mubr.bf16.gmra.mxu0 %v379
  %v693 = vpop.f32.mrf.mxu0
  %v694 = vadd.f32 0.0, %v693
  %v695 = vpop.f32.mrf.mxu0
  %v696 = vpop.f32.mrf.mxu0
  %v697 = vadd.f32 0.0, %v696
  %v698 = vpop.f32.mrf.mxu0
  %699 = vmatprep.mubr.bf16.mxu0 0
  %700 = vmatmul.mubr.bf16.gmra.mxu0 %v380
  %v701 = vpop.f32.mrf.mxu0
  %v702 = vadd.f32 0.0, %v701
  %v703 = vpop.f32.mrf.mxu0
  %v704 = vpop.f32.mrf.mxu0
  %v705 = vadd.f32 0.0, %v704
  %v706 = vpop.f32.mrf.mxu0
  %707 = vmatprep.mubr.bf16.mxu0 0
  %708 = vmatmul.mubr.bf16.gmra.mxu0 %v381
  %v709 = vpop.f32.mrf.mxu0
  %v710 = vadd.f32 0.0, %v709
  %v711 = vpop.f32.mrf.mxu0
  %v712 = vpop.f32.mrf.mxu0
  %v713 = vadd.f32 0.0, %v712
  %v714 = vpop.f32.mrf.mxu0
  %715 = vmatprep.mubr.bf16.mxu0 0
  %716 = vmatmul.mubr.bf16.gmra.mxu0 %v382
  %v717 = vpop.f32.mrf.mxu0
  %v718 = vadd.f32 0.0, %v717
  %v719 = vpop.f32.mrf.mxu0
  %v720 = vpop.f32.mrf.mxu0
  %v721 = vadd.f32 0.0, %v720
  %v722 = vpop.f32.mrf.mxu0
  %723 = vmatprep.mubr.bf16.mxu0 0
  %724 = vmatmul.mubr.bf16.gmra.mxu0 %v383
  %v725 = vpop.f32.mrf.mxu0
  %v726 = vadd.f32 0.0, %v725
  %v727 = vpop.f32.mrf.mxu0
  %v728 = vpop.f32.mrf.mxu0
  %v729 = vadd.f32 0.0, %v728
  %v730 = vpop.f32.mrf.mxu0
  %731 = vmatprep.mubr.bf16.mxu0 0
  %732 = vmatmul.mubr.bf16.gmra.mxu0 %v384
  %v733 = vpop.f32.mrf.mxu0
  %v734 = vadd.f32 0.0, %v733
  %v735 = vpop.f32.mrf.mxu0
  %v736 = vpop.f32.mrf.mxu0
  %v737 = vadd.f32 0.0, %v736
  %v738 = vpop.f32.mrf.mxu0
  %739 = vmatprep.mubr.bf16.mxu0 0
  %740 = vmatmul.mubr.bf16.gmra.mxu0 %v385
  %v741 = vpop.f32.mrf.mxu0
  %v742 = vadd.f32 0.0, %v741
  %v743 = vpop.f32.mrf.mxu0
  %v744 = vpop.f32.mrf.mxu0
  %v745 = vadd.f32 0.0, %v744
  %v746 = vpop.f32.mrf.mxu0
  %747 = vmatprep.mubr.bf16.mxu0 0
  %748 = vmatmul.mubr.bf16.gmra.mxu0 %v386
  %v749 = vpop.f32.mrf.mxu0
  %v750 = vadd.f32 0.0, %v749
  %v751 = vpop.f32.mrf.mxu0
  %v752 = vpop.f32.mrf.mxu0
  %v753 = vadd.f32 0.0, %v752
  %v754 = vpop.f32.mrf.mxu0
  %755 = vdwg.mxu0
  %v756 = vadd.f32 %v83, %v502
  %v757 = vadd.f32 %v84, %v505
  %v758 = vadd.f32 %v85, %v510
  %v759 = vadd.f32 %v86, %v513
  %v760 = vadd.f32 %v87, %v518
  %v761 = vadd.f32 %v88, %v521
  %v762 = vadd.f32 %v89, %v526
  %v763 = vadd.f32 %v90, %v529
  %v764 = vadd.f32 %v91, %v534
  %v765 = vadd.f32 %v92, %v537
  %v766 = vadd.f32 %v93, %v542
  %v767 = vadd.f32 %v94, %v545
  %v768 = vadd.f32 %v95, %v550
  %v769 = vadd.f32 %v96, %v553
  %v770 = vadd.f32 %v97, %v558
  %v771 = vadd.f32 %v98, %v561
  %v772 = vadd.f32 %v99, %v566
  %v773 = vadd.f32 %v100, %v569
  %v774 = vadd.f32 %v101, %v574
  %v775 = vadd.f32 %v102, %v577
  %v776 = vadd.f32 %v103, %v582
  %v777 = vadd.f32 %v104, %v585
  %v778 = vadd.f32 %v105, %v590
  %v779 = vadd.f32 %v106, %v593
  %v780 = vadd.f32 %v107, %v598
  %v781 = vadd.f32 %v108, %v601
  %v782 = vadd.f32 %v109, %v606
  %v783 = vadd.f32 %v110, %v609
  %v784 = vadd.f32 %v111, %v614
  %v785 = vadd.f32 %v112, %v617
  %v786 = vadd.f32 %v113, %v622
  %v787 = vadd.f32 %v114, %v625
  %v788 = vadd.f32 %v115, %v630
  %v789 = vadd.f32 %v116, %v633
  %v790 = vadd.f32 %v117, %v638
  %v791 = vadd.f32 %v118, %v641
  %v792 = vadd.f32 %v119, %v646
  %v793 = vadd.f32 %v120, %v649
  %v794 = vadd.f32 %v121, %v654
  %v795 = vadd.f32 %v122, %v657
  %v796 = vadd.f32 %v123, %v662
  %v797 = vadd.f32 %v124, %v665
  %v798 = vadd.f32 %v125, %v670
  %v799 = vadd.f32 %v126, %v673
  %v800 = vadd.f32 %v127, %v678
  %v801 = vadd.f32 %v128, %v681
  %v802 = vadd.f32 %v129, %v686
  %v803 = vadd.f32 %v130, %v689
  %v804 = vadd.f32 %v131, %v694
  %v805 = vadd.f32 %v132, %v697
  %v806 = vadd.f32 %v133, %v702
  %v807 = vadd.f32 %v134, %v705
  %v808 = vadd.f32 %v135, %v710
  %v809 = vadd.f32 %v136, %v713
  %v810 = vadd.f32 %v137, %v718
  %v811 = vadd.f32 %v138, %v721
  %v812 = vadd.f32 %v139, %v726
  %v813 = vadd.f32 %v140, %v729
  %v814 = vadd.f32 %v141, %v734
  %v815 = vadd.f32 %v142, %v737
  %v816 = vadd.f32 %v143, %v742
  %v817 = vadd.f32 %v144, %v745
  %v818 = vadd.f32 %v145, %v750
  %v819 = vadd.f32 %v146, %v753
  %820 = vst [vmem:[#allocation2] sm:$0xff] %v756
  %821 = vst [vmem:[#allocation2 + $0x8] sm:$0xff] %v757
  %822 = vst [vmem:[#allocation2 + $0x10] sm:$0xff] %v758
  %823 = vst [vmem:[#allocation2 + $0x18] sm:$0xff] %v759
  %824 = vst [vmem:[#allocation2 + $0x20] sm:$0xff] %v760
  %825 = vst [vmem:[#allocation2 + $0x28] sm:$0xff] %v761
  %826 = vst [vmem:[#allocation2 + $0x30] sm:$0xff] %v762
  %827 = vst [vmem:[#allocation2 + $0x38] sm:$0xff] %v763
  %828 = vst [vmem:[#allocation2 + $0x40] sm:$0xff] %v764
  %829 = vst [vmem:[#allocation2 + $0x48] sm:$0xff] %v765
  %830 = vst [vmem:[#allocation2 + $0x50] sm:$0xff] %v766
  %831 = vst [vmem:[#allocation2 + $0x58] sm:$0xff] %v767
  %832 = vst [vmem:[#allocation2 + $0x60] sm:$0xff] %v768
  %833 = vst [vmem:[#allocation2 + $0x68] sm:$0xff] %v769
  %834 = vst [vmem:[#allocation2 + $0x70] sm:$0xff] %v770
  %835 = vst [vmem:[#allocation2 + $0x78] sm:$0xff] %v771
  %836 = vst [vmem:[#allocation2 + $0x80] sm:$0xff] %v772
  %837 = vst [vmem:[#allocation2 + $0x88] sm:$0xff] %v773
  %838 = vst [vmem:[#allocation2 + $0x90] sm:$0xff] %v774
  %839 = vst [vmem:[#allocation2 + $0x98] sm:$0xff] %v775
  %840 = vst [vmem:[#allocation2 + $0xa0] sm:$0xff] %v776
  %841 = vst [vmem:[#allocation2 + $0xa8] sm:$0xff] %v777
  %842 = vst [vmem:[#allocation2 + $0xb0] sm:$0xff] %v778
  %843 = vst [vmem:[#allocation2 + $0xb8] sm:$0xff] %v779
  %844 = vst [vmem:[#allocation2 + $0xc0] sm:$0xff] %v780
  %845 = vst [vmem:[#allocation2 + $0xc8] sm:$0xff] %v781
  %846 = vst [vmem:[#allocation2 + $0xd0] sm:$0xff] %v782
  %847 = vst [vmem:[#allocation2 + $0xd8] sm:$0xff] %v783
  %848 = vst [vmem:[#allocation2 + $0xe0] sm:$0xff] %v784
  %849 = vst [vmem:[#allocation2 + $0xe8] sm:$0xff] %v785
  %850 = vst [vmem:[#allocation2 + $0xf0] sm:$0xff] %v786
  %851 = vst [vmem:[#allocation2 + $0xf8] sm:$0xff] %v787
  %852 = vst [vmem:[#allocation2 + $0x100] sm:$0xff] %v788
  %853 = vst [vmem:[#allocation2 + $0x108] sm:$0xff] %v789
  %854 = vst [vmem:[#allocation2 + $0x110] sm:$0xff] %v790
  %855 = vst [vmem:[#allocation2 + $0x118] sm:$0xff] %v791
  %856 = vst [vmem:[#allocation2 + $0x120] sm:$0xff] %v792
  %857 = vst [vmem:[#allocation2 + $0x128] sm:$0xff] %v793
  %858 = vst [vmem:[#allocation2 + $0x130] sm:$0xff] %v794
  %859 = vst [vmem:[#allocation2 + $0x138] sm:$0xff] %v795
  %860 = vst [vmem:[#allocation2 + $0x140] sm:$0xff] %v796
  %861 = vst [vmem:[#allocation2 + $0x148] sm:$0xff] %v797
  %862 = vst [vmem:[#allocation2 + $0x150] sm:$0xff] %v798
  %863 = vst [vmem:[#allocation2 + $0x158] sm:$0xff] %v799
  %864 = vst [vmem:[#allocation2 + $0x160] sm:$0xff] %v800
  %865 = vst [vmem:[#allocation2 + $0x168] sm:$0xff] %v801
  %866 = vst [vmem:[#allocation2 + $0x170] sm:$0xff] %v802
  %867 = vst [vmem:[#allocation2 + $0x178] sm:$0xff] %v803
  %868 = vst [vmem:[#allocation2 + $0x180] sm:$0xff] %v804
  %869 = vst [vmem:[#allocation2 + $0x188] sm:$0xff] %v805
  %870 = vst [vmem:[#allocation2 + $0x190] sm:$0xff] %v806
  %871 = vst [vmem:[#allocation2 + $0x198] sm:$0xff] %v807
  %872 = vst [vmem:[#allocation2 + $0x1a0] sm:$0xff] %v808
  %873 = vst [vmem:[#allocation2 + $0x1a8] sm:$0xff] %v809
  %874 = vst [vmem:[#allocation2 + $0x1b0] sm:$0xff] %v810
  %875 = vst [vmem:[#allocation2 + $0x1b8] sm:$0xff] %v811
  %876 = vst [vmem:[#allocation2 + $0x1c0] sm:$0xff] %v812
  %877 = vst [vmem:[#allocation2 + $0x1c8] sm:$0xff] %v813
  %878 = vst [vmem:[#allocation2 + $0x1d0] sm:$0xff] %v814
  %879 = vst [vmem:[#allocation2 + $0x1d8] sm:$0xff] %v815
  %880 = vst [vmem:[#allocation2 + $0x1e0] sm:$0xff] %v816
  %881 = vst [vmem:[#allocation2 + $0x1e8] sm:$0xff] %v817
  %882 = vst [vmem:[#allocation2 + $0x1f0] sm:$0xff] %v818
  %883 = vst [vmem:[#allocation2 + $0x1f8] sm:$0xff] %v819
  // Predicated region
  $region18: #{_lambda_.10} parent=0 // pred_check
    %p884 = pneg %p15
  $region19: #{_lambda_.10} parent=0 // pred_check_branch
    %886 = sbr.rel (%p884) target = $region21
  $region20: #{_lambda_.10} parent=0 // pred_region
    %v887 = vld [vmem:[#allocation2] sm:$0xff]
    %v888 = vld [vmem:[#allocation2 + $0x8] sm:$0xff]
    %v889 = vld [vmem:[#allocation2 + $0x10] sm:$0xff]
    %v890 = vld [vmem:[#allocation2 + $0x18] sm:$0xff]
    %v891 = vld [vmem:[#allocation2 + $0x20] sm:$0xff]
    %v892 = vld [vmem:[#allocation2 + $0x28] sm:$0xff]
    %v893 = vld [vmem:[#allocation2 + $0x30] sm:$0xff]
    %v894 = vld [vmem:[#allocation2 + $0x38] sm:$0xff]
    %v895 = vld [vmem:[#allocation2 + $0x40] sm:$0xff]
    %v896 = vld [vmem:[#allocation2 + $0x48] sm:$0xff]
    %v897 = vld [vmem:[#allocation2 + $0x50] sm:$0xff]
    %v898 = vld [vmem:[#allocation2 + $0x58] sm:$0xff]
    %v899 = vld [vmem:[#allocation2 + $0x60] sm:$0xff]
    %v900 = vld [vmem:[#allocation2 + $0x68] sm:$0xff]
    %v901 = vld [vmem:[#allocation2 + $0x70] sm:$0xff]
    %v902 = vld [vmem:[#allocation2 + $0x78] sm:$0xff]
    %v903 = vld [vmem:[#allocation2 + $0x80] sm:$0xff]
    %v904 = vld [vmem:[#allocation2 + $0x88] sm:$0xff]
    %v905 = vld [vmem:[#allocation2 + $0x90] sm:$0xff]
    %v906 = vld [vmem:[#allocation2 + $0x98] sm:$0xff]
    %v907 = vld [vmem:[#allocation2 + $0xa0] sm:$0xff]
    %v908 = vld [vmem:[#allocation2 + $0xa8] sm:$0xff]
    %v909 = vld [vmem:[#allocation2 + $0xb0] sm:$0xff]
    %v910 = vld [vmem:[#allocation2 + $0xb8] sm:$0xff]
    %v911 = vld [vmem:[#allocation2 + $0xc0] sm:$0xff]
    %v912 = vld [vmem:[#allocation2 + $0xc8] sm:$0xff]
    %v913 = vld [vmem:[#allocation2 + $0xd0] sm:$0xff]
    %v914 = vld [vmem:[#allocation2 + $0xd8] sm:$0xff]
    %v915 = vld [vmem:[#allocation2 + $0xe0] sm:$0xff]
    %v916 = vld [vmem:[#allocation2 + $0xe8] sm:$0xff]
    %v917 = vld [vmem:[#allocation2 + $0xf0] sm:$0xff]
    %v918 = vld [vmem:[#allocation2 + $0xf8] sm:$0xff]
    %v919 = vld [vmem:[#allocation2 + $0x100] sm:$0xff]
    %v920 = vld [vmem:[#allocation2 + $0x108] sm:$0xff]
    %v921 = vld [vmem:[#allocation2 + $0x110] sm:$0xff]
    %v922 = vld [vmem:[#allocation2 + $0x118] sm:$0xff]
    %v923 = vld [vmem:[#allocation2 + $0x120] sm:$0xff]
    %v924 = vld [vmem:[#allocation2 + $0x128] sm:$0xff]
    %v925 = vld [vmem:[#allocation2 + $0x130] sm:$0xff]
    %v926 = vld [vmem:[#allocation2 + $0x138] sm:$0xff]
    %v927 = vld [vmem:[#allocation2 + $0x140] sm:$0xff]
    %v928 = vld [vmem:[#allocation2 + $0x148] sm:$0xff]
    %v929 = vld [vmem:[#allocation2 + $0x150] sm:$0xff]
    %v930 = vld [vmem:[#allocation2 + $0x158] sm:$0xff]
    %v931 = vld [vmem:[#allocation2 + $0x160] sm:$0xff]
    %v932 = vld [vmem:[#allocation2 + $0x168] sm:$0xff]
    %v933 = vld [vmem:[#allocation2 + $0x170] sm:$0xff]
    %v934 = vld [vmem:[#allocation2 + $0x178] sm:$0xff]
    %v935 = vld [vmem:[#allocation2 + $0x180] sm:$0xff]
    %v936 = vld [vmem:[#allocation2 + $0x188] sm:$0xff]
    %v937 = vld [vmem:[#allocation2 + $0x190] sm:$0xff]
    %v938 = vld [vmem:[#allocation2 + $0x198] sm:$0xff]
    %v939 = vld [vmem:[#allocation2 + $0x1a0] sm:$0xff]
    %v940 = vld [vmem:[#allocation2 + $0x1a8] sm:$0xff]
    %v941 = vld [vmem:[#allocation2 + $0x1b0] sm:$0xff]
    %v942 = vld [vmem:[#allocation2 + $0x1b8] sm:$0xff]
    %v943 = vld [vmem:[#allocation2 + $0x1c0] sm:$0xff]
    %v944 = vld [vmem:[#allocation2 + $0x1c8] sm:$0xff]
    %v945 = vld [vmem:[#allocation2 + $0x1d0] sm:$0xff]
    %v946 = vld [vmem:[#allocation2 + $0x1d8] sm:$0xff]
    %v947 = vld [vmem:[#allocation2 + $0x1e0] sm:$0xff]
    %v948 = vld [vmem:[#allocation2 + $0x1e8] sm:$0xff]
    %v949 = vld [vmem:[#allocation2 + $0x1f0] sm:$0xff]
    %v950 = vld [vmem:[#allocation2 + $0x1f8] sm:$0xff]
    %v951 = vld [vmem:[%s2] sm:$0x1]
    %v953 = vlaneseq
    %v954 = vshrl.u32 %v953, 7
    %v955 = vsub.s32 0, %v954
    %v956 = vrot.slane %v951, %v955
    %v958 = vadd.f32 %v887, %v956
    %v959 = vadd.f32 %v888, %v956
    %v960 = vadd.f32 %v889, %v956
    %v961 = vadd.f32 %v890, %v956
    %v962 = vadd.f32 %v891, %v956
    %v963 = vadd.f32 %v892, %v956
    %v964 = vadd.f32 %v893, %v956
    %v965 = vadd.f32 %v894, %v956
    %v966 = vadd.f32 %v895, %v956
    %v967 = vadd.f32 %v896, %v956
    %v968 = vadd.f32 %v897, %v956
    %v969 = vadd.f32 %v898, %v956
    %v970 = vadd.f32 %v899, %v956
    %v971 = vadd.f32 %v900, %v956
    %v972 = vadd.f32 %v901, %v956
    %v973 = vadd.f32 %v902, %v956
    %v974 = vadd.f32 %v903, %v956
    %v975 = vadd.f32 %v904, %v956
    %v976 = vadd.f32 %v905, %v956
    %v977 = vadd.f32 %v906, %v956
    %v978 = vadd.f32 %v907, %v956
    %v979 = vadd.f32 %v908, %v956
    %v980 = vadd.f32 %v909, %v956
    %v981 = vadd.f32 %v910, %v956
    %v982 = vadd.f32 %v911, %v956
    %v983 = vadd.f32 %v912, %v956
    %v984 = vadd.f32 %v913, %v956
    %v985 = vadd.f32 %v914, %v956
    %v986 = vadd.f32 %v915, %v956
    %v987 = vadd.f32 %v916, %v956
    %v988 = vadd.f32 %v917, %v956
    %v989 = vadd.f32 %v918, %v956
    %v990 = vadd.f32 %v919, %v956
    %v991 = vadd.f32 %v920, %v956
    %v992 = vadd.f32 %v921, %v956
    %v993 = vadd.f32 %v922, %v956
    %v994 = vadd.f32 %v923, %v956
    %v995 = vadd.f32 %v924, %v956
    %v996 = vadd.f32 %v925, %v956
    %v997 = vadd.f32 %v926, %v956
    %v998 = vadd.f32 %v927, %v956
    %v999 = vadd.f32 %v928, %v956
    %v1000 = vadd.f32 %v929, %v956
    %v1001 = vadd.f32 %v930, %v956
    %v1002 = vadd.f32 %v931, %v956
    %v1003 = vadd.f32 %v932, %v956
    %v1004 = vadd.f32 %v933, %v956
    %v1005 = vadd.f32 %v934, %v956
    %v1006 = vadd.f32 %v935, %v956
    %v1007 = vadd.f32 %v936, %v956
    %v1008 = vadd.f32 %v937, %v956
    %v1009 = vadd.f32 %v938, %v956
    %v1010 = vadd.f32 %v939, %v956
    %v1011 = vadd.f32 %v940, %v956
    %v1012 = vadd.f32 %v941, %v956
    %v1013 = vadd.f32 %v942, %v956
    %v1014 = vadd.f32 %v943, %v956
    %v1015 = vadd.f32 %v944, %v956
    %v1016 = vadd.f32 %v945, %v956
    %v1017 = vadd.f32 %v946, %v956
    %v1018 = vadd.f32 %v947, %v956
    %v1019 = vadd.f32 %v948, %v956
    %v1020 = vadd.f32 %v949, %v956
    %v1021 = vadd.f32 %v950, %v956
    %v1022 = vmax.f32 %v958, 0.0
    %v1023 = vmax.f32 %v959, 0.0
    %v1024 = vmax.f32 %v960, 0.0
    %v1025 = vmax.f32 %v961, 0.0
    %v1026 = vmax.f32 %v962, 0.0
    %v1027 = vmax.f32 %v963, 0.0
    %v1028 = vmax.f32 %v964, 0.0
    %v1029 = vmax.f32 %v965, 0.0
    %v1030 = vmax.f32 %v966, 0.0
    %v1031 = vmax.f32 %v967, 0.0
    %v1032 = vmax.f32 %v968, 0.0
    %v1033 = vmax.f32 %v969, 0.0
    %v1034 = vmax.f32 %v970, 0.0
    %v1035 = vmax.f32 %v971, 0.0
    %v1036 = vmax.f32 %v972, 0.0
    %v1037 = vmax.f32 %v973, 0.0
    %v1038 = vmax.f32 %v974, 0.0
    %v1039 = vmax.f32 %v975, 0.0
    %v1040 = vmax.f32 %v976, 0.0
    %v1041 = vmax.f32 %v977, 0.0
    %v1042 = vmax.f32 %v978, 0.0
    %v1043 = vmax.f32 %v979, 0.0
    %v1044 = vmax.f32 %v980, 0.0
    %v1045 = vmax.f32 %v981, 0.0
    %v1046 = vmax.f32 %v982, 0.0
    %v1047 = vmax.f32 %v983, 0.0
    %v1048 = vmax.f32 %v984, 0.0
    %v1049 = vmax.f32 %v985, 0.0
    %v1050 = vmax.f32 %v986, 0.0
    %v1051 = vmax.f32 %v987, 0.0
    %v1052 = vmax.f32 %v988, 0.0
    %v1053 = vmax.f32 %v989, 0.0
    %v1054 = vmax.f32 %v990, 0.0
    %v1055 = vmax.f32 %v991, 0.0
    %v1056 = vmax.f32 %v992, 0.0
    %v1057 = vmax.f32 %v993, 0.0
    %v1058 = vmax.f32 %v994, 0.0
    %v1059 = vmax.f32 %v995, 0.0
    %v1060 = vmax.f32 %v996, 0.0
    %v1061 = vmax.f32 %v997, 0.0
    %v1062 = vmax.f32 %v998, 0.0
    %v1063 = vmax.f32 %v999, 0.0
    %v1064 = vmax.f32 %v1000, 0.0
    %v1065 = vmax.f32 %v1001, 0.0
    %v1066 = vmax.f32 %v1002, 0.0
    %v1067 = vmax.f32 %v1003, 0.0
    %v1068 = vmax.f32 %v1004, 0.0
    %v1069 = vmax.f32 %v1005, 0.0
    %v1070 = vmax.f32 %v1006, 0.0
    %v1071 = vmax.f32 %v1007, 0.0
    %v1072 = vmax.f32 %v1008, 0.0
    %v1073 = vmax.f32 %v1009, 0.0
    %v1074 = vmax.f32 %v1010, 0.0
    %v1075 = vmax.f32 %v1011, 0.0
    %v1076 = vmax.f32 %v1012, 0.0
    %v1077 = vmax.f32 %v1013, 0.0
    %v1078 = vmax.f32 %v1014, 0.0
    %v1079 = vmax.f32 %v1015, 0.0
    %v1080 = vmax.f32 %v1016, 0.0
    %v1081 = vmax.f32 %v1017, 0.0
    %v1082 = vmax.f32 %v1018, 0.0
    %v1083 = vmax.f32 %v1019, 0.0
    %v1084 = vmax.f32 %v1020, 0.0
    %v1085 = vmax.f32 %v1021, 0.0
    %v1086 = vpack.c.bf16 %v1023, %v1022
    %v1087 = vpack.c.bf16 %v1025, %v1024
    %v1088 = vpack.c.bf16 %v1027, %v1026
    %v1089 = vpack.c.bf16 %v1029, %v1028
    %v1090 = vpack.c.bf16 %v1031, %v1030
    %v1091 = vpack.c.bf16 %v1033, %v1032
    %v1092 = vpack.c.bf16 %v1035, %v1034
    %v1093 = vpack.c.bf16 %v1037, %v1036
    %v1094 = vpack.c.bf16 %v1039, %v1038
    %v1095 = vpack.c.bf16 %v1041, %v1040
    %v1096 = vpack.c.bf16 %v1043, %v1042
    %v1097 = vpack.c.bf16 %v1045, %v1044
    %v1098 = vpack.c.bf16 %v1047, %v1046
    %v1099 = vpack.c.bf16 %v1049, %v1048
    %v1100 = vpack.c.bf16 %v1051, %v1050
    %v1101 = vpack.c.bf16 %v1053, %v1052
    %v1102 = vpack.c.bf16 %v1055, %v1054
    %v1103 = vpack.c.bf16 %v1057, %v1056
    %v1104 = vpack.c.bf16 %v1059, %v1058
    %v1105 = vpack.c.bf16 %v1061, %v1060
    %v1106 = vpack.c.bf16 %v1063, %v1062
    %v1107 = vpack.c.bf16 %v1065, %v1064
    %v1108 = vpack.c.bf16 %v1067, %v1066
    %v1109 = vpack.c.bf16 %v1069, %v1068
    %v1110 = vpack.c.bf16 %v1071, %v1070
    %v1111 = vpack.c.bf16 %v1073, %v1072
    %v1112 = vpack.c.bf16 %v1075, %v1074
    %v1113 = vpack.c.bf16 %v1077, %v1076
    %v1114 = vpack.c.bf16 %v1079, %v1078
    %v1115 = vpack.c.bf16 %v1081, %v1080
    %v1116 = vpack.c.bf16 %v1083, %v1082
    %v1117 = vpack.c.bf16 %v1085, %v1084
    %v1150 = vunpack.c.l.b16 %v1086
    %v1151 = vunpack.c.h.b16 %v1086
    %v1152 = vunpack.c.l.b16 %v1087
    %v1153 = vunpack.c.h.b16 %v1087
    %v1154 = vunpack.c.l.b16 %v1088
    %v1155 = vunpack.c.h.b16 %v1088
    %v1156 = vunpack.c.l.b16 %v1089
    %v1157 = vunpack.c.h.b16 %v1089
    %v1158 = vunpack.c.l.b16 %v1090
    %v1159 = vunpack.c.h.b16 %v1090
    %v1160 = vunpack.c.l.b16 %v1091
    %v1161 = vunpack.c.h.b16 %v1091
    %v1162 = vunpack.c.l.b16 %v1092
    %v1163 = vunpack.c.h.b16 %v1092
    %v1164 = vunpack.c.l.b16 %v1093
    %v1165 = vunpack.c.h.b16 %v1093
    %v1166 = vunpack.c.l.b16 %v1094
    %v1167 = vunpack.c.h.b16 %v1094
    %v1168 = vunpack.c.l.b16 %v1095
    %v1169 = vunpack.c.h.b16 %v1095
    %v1170 = vunpack.c.l.b16 %v1096
    %v1171 = vunpack.c.h.b16 %v1096
    %v1172 = vunpack.c.l.b16 %v1097
    %v1173 = vunpack.c.h.b16 %v1097
    %v1174 = vunpack.c.l.b16 %v1098
    %v1175 = vunpack.c.h.b16 %v1098
    %v1176 = vunpack.c.l.b16 %v1099
    %v1177 = vunpack.c.h.b16 %v1099
    %v1178 = vunpack.c.l.b16 %v1100
    %v1179 = vunpack.c.h.b16 %v1100
    %v1180 = vunpack.c.l.b16 %v1101
    %v1181 = vunpack.c.h.b16 %v1101
    %v1182 = vunpack.c.l.b16 %v1102
    %v1183 = vunpack.c.h.b16 %v1102
    %v1184 = vunpack.c.l.b16 %v1103
    %v1185 = vunpack.c.h.b16 %v1103
    %v1186 = vunpack.c.l.b16 %v1104
    %v1187 = vunpack.c.h.b16 %v1104
    %v1188 = vunpack.c.l.b16 %v1105
    %v1189 = vunpack.c.h.b16 %v1105
    %v1190 = vunpack.c.l.b16 %v1106
    %v1191 = vunpack.c.h.b16 %v1106
    %v1192 = vunpack.c.l.b16 %v1107
    %v1193 = vunpack.c.h.b16 %v1107
    %v1194 = vunpack.c.l.b16 %v1108
    %v1195 = vunpack.c.h.b16 %v1108
    %v1196 = vunpack.c.l.b16 %v1109
    %v1197 = vunpack.c.h.b16 %v1109
    %v1198 = vunpack.c.l.b16 %v1110
    %v1199 = vunpack.c.h.b16 %v1110
    %v1200 = vunpack.c.l.b16 %v1111
    %v1201 = vunpack.c.h.b16 %v1111
    %v1202 = vunpack.c.l.b16 %v1112
    %v1203 = vunpack.c.h.b16 %v1112
    %v1204 = vunpack.c.l.b16 %v1113
    %v1205 = vunpack.c.h.b16 %v1113
    %v1206 = vunpack.c.l.b16 %v1114
    %v1207 = vunpack.c.h.b16 %v1114
    %v1208 = vunpack.c.l.b16 %v1115
    %v1209 = vunpack.c.h.b16 %v1115
    %v1210 = vunpack.c.l.b16 %v1116
    %v1211 = vunpack.c.h.b16 %v1116
    %v1212 = vunpack.c.l.b16 %v1117
    %v1213 = vunpack.c.h.b16 %v1117
    %v1214 = vpack.c.b16 %v1150, %v1150
    %v1215 = vpack.c.b16 %v1151, %v1151
    %v1216 = vpack.c.b16 %v1152, %v1152
    %v1217 = vpack.c.b16 %v1153, %v1153
    %v1218 = vpack.c.b16 %v1154, %v1154
    %v1219 = vpack.c.b16 %v1155, %v1155
    %v1220 = vpack.c.b16 %v1156, %v1156
    %v1221 = vpack.c.b16 %v1157, %v1157
    %v1222 = vpack.c.b16 %v1158, %v1158
    %v1223 = vpack.c.b16 %v1159, %v1159
    %v1224 = vpack.c.b16 %v1160, %v1160
    %v1225 = vpack.c.b16 %v1161, %v1161
    %v1226 = vpack.c.b16 %v1162, %v1162
    %v1227 = vpack.c.b16 %v1163, %v1163
    %v1228 = vpack.c.b16 %v1164, %v1164
    %v1229 = vpack.c.b16 %v1165, %v1165
    %v1230 = vpack.c.b16 %v1166, %v1166
    %v1231 = vpack.c.b16 %v1167, %v1167
    %v1232 = vpack.c.b16 %v1168, %v1168
    %v1233 = vpack.c.b16 %v1169, %v1169
    %v1234 = vpack.c.b16 %v1170, %v1170
    %v1235 = vpack.c.b16 %v1171, %v1171
    %v1236 = vpack.c.b16 %v1172, %v1172
    %v1237 = vpack.c.b16 %v1173, %v1173
    %v1238 = vpack.c.b16 %v1174, %v1174
    %v1239 = vpack.c.b16 %v1175, %v1175
    %v1240 = vpack.c.b16 %v1176, %v1176
    %v1241 = vpack.c.b16 %v1177, %v1177
    %v1242 = vpack.c.b16 %v1178, %v1178
    %v1243 = vpack.c.b16 %v1179, %v1179
    %v1244 = vpack.c.b16 %v1180, %v1180
    %v1245 = vpack.c.b16 %v1181, %v1181
    %v1246 = vpack.c.b16 %v1182, %v1182
    %v1247 = vpack.c.b16 %v1183, %v1183
    %v1248 = vpack.c.b16 %v1184, %v1184
    %v1249 = vpack.c.b16 %v1185, %v1185
    %v1250 = vpack.c.b16 %v1186, %v1186
    %v1251 = vpack.c.b16 %v1187, %v1187
    %v1252 = vpack.c.b16 %v1188, %v1188
    %v1253 = vpack.c.b16 %v1189, %v1189
    %v1254 = vpack.c.b16 %v1190, %v1190
    %v1255 = vpack.c.b16 %v1191, %v1191
    %v1256 = vpack.c.b16 %v1192, %v1192
    %v1257 = vpack.c.b16 %v1193, %v1193
    %v1258 = vpack.c.b16 %v1194, %v1194
    %v1259 = vpack.c.b16 %v1195, %v1195
    %v1260 = vpack.c.b16 %v1196, %v1196
    %v1261 = vpack.c.b16 %v1197, %v1197
    %v1262 = vpack.c.b16 %v1198, %v1198
    %v1263 = vpack.c.b16 %v1199, %v1199
    %v1264 = vpack.c.b16 %v1200, %v1200
    %v1265 = vpack.c.b16 %v1201, %v1201
    %v1266 = vpack.c.b16 %v1202, %v1202
    %v1267 = vpack.c.b16 %v1203, %v1203
    %v1268 = vpack.c.b16 %v1204, %v1204
    %v1269 = vpack.c.b16 %v1205, %v1205
    %v1270 = vpack.c.b16 %v1206, %v1206
    %v1271 = vpack.c.b16 %v1207, %v1207
    %v1272 = vpack.c.b16 %v1208, %v1208
    %v1273 = vpack.c.b16 %v1209, %v1209
    %v1274 = vpack.c.b16 %v1210, %v1210
    %v1275 = vpack.c.b16 %v1211, %v1211
    %v1276 = vpack.c.b16 %v1212, %v1212
    %v1277 = vpack.c.b16 %v1213, %v1213
    %1342 = vst [vmem:[%s3] sm:$0xf] %v1214
    %1343 = vst [vmem:[%s3 + $0x4] sm:$0xf] %v1215
    %1344 = vst [vmem:[%s3 + $0x8] sm:$0xf] %v1216
    %1345 = vst [vmem:[%s3 + $0xc] sm:$0xf] %v1217
    %1346 = vst [vmem:[%s3 + $0x10] sm:$0xf] %v1218
    %1347 = vst [vmem:[%s3 + $0x14] sm:$0xf] %v1219
    %1348 = vst [vmem:[%s3 + $0x18] sm:$0xf] %v1220
    %1349 = vst [vmem:[%s3 + $0x1c] sm:$0xf] %v1221
    %1350 = vst [vmem:[%s3 + $0x20] sm:$0xf] %v1222
    %1351 = vst [vmem:[%s3 + $0x24] sm:$0xf] %v1223
    %1352 = vst [vmem:[%s3 + $0x28] sm:$0xf] %v1224
    %1353 = vst [vmem:[%s3 + $0x2c] sm:$0xf] %v1225
    %1354 = vst [vmem:[%s3 + $0x30] sm:$0xf] %v1226
    %1355 = vst [vmem:[%s3 + $0x34] sm:$0xf] %v1227
    %1356 = vst [vmem:[%s3 + $0x38] sm:$0xf] %v1228
    %1357 = vst [vmem:[%s3 + $0x3c] sm:$0xf] %v1229
    %1358 = vst [vmem:[%s3 + $0x40] sm:$0xf] %v1230
    %1359 = vst [vmem:[%s3 + $0x44] sm:$0xf] %v1231
    %1360 = vst [vmem:[%s3 + $0x48] sm:$0xf] %v1232
    %1361 = vst [vmem:[%s3 + $0x4c] sm:$0xf] %v1233
    %1362 = vst [vmem:[%s3 + $0x50] sm:$0xf] %v1234
    %1363 = vst [vmem:[%s3 + $0x54] sm:$0xf] %v1235
    %1364 = vst [vmem:[%s3 + $0x58] sm:$0xf] %v1236
    %1365 = vst [vmem:[%s3 + $0x5c] sm:$0xf] %v1237
    %1366 = vst [vmem:[%s3 + $0x60] sm:$0xf] %v1238
    %1367 = vst [vmem:[%s3 + $0x64] sm:$0xf] %v1239
    %1368 = vst [vmem:[%s3 + $0x68] sm:$0xf] %v1240
    %1369 = vst [vmem:[%s3 + $0x6c] sm:$0xf] %v1241
    %1370 = vst [vmem:[%s3 + $0x70] sm:$0xf] %v1242
    %1371 = vst [vmem:[%s3 + $0x74] sm:$0xf] %v1243
    %1372 = vst [vmem:[%s3 + $0x78] sm:$0xf] %v1244
    %1373 = vst [vmem:[%s3 + $0x7c] sm:$0xf] %v1245
    %1374 = vst [vmem:[%s3 + $0x80] sm:$0xf] %v1246
    %1375 = vst [vmem:[%s3 + $0x84] sm:$0xf] %v1247
    %1376 = vst [vmem:[%s3 + $0x88] sm:$0xf] %v1248
    %1377 = vst [vmem:[%s3 + $0x8c] sm:$0xf] %v1249
    %1378 = vst [vmem:[%s3 + $0x90] sm:$0xf] %v1250
    %1379 = vst [vmem:[%s3 + $0x94] sm:$0xf] %v1251
    %1380 = vst [vmem:[%s3 + $0x98] sm:$0xf] %v1252
    %1381 = vst [vmem:[%s3 + $0x9c] sm:$0xf] %v1253
    %1382 = vst [vmem:[%s3 + $0xa0] sm:$0xf] %v1254
    %1383 = vst [vmem:[%s3 + $0xa4] sm:$0xf] %v1255
    %1384 = vst [vmem:[%s3 + $0xa8] sm:$0xf] %v1256
    %1385 = vst [vmem:[%s3 + $0xac] sm:$0xf] %v1257
    %1386 = vst [vmem:[%s3 + $0xb0] sm:$0xf] %v1258
    %1387 = vst [vmem:[%s3 + $0xb4] sm:$0xf] %v1259
    %1388 = vst [vmem:[%s3 + $0xb8] sm:$0xf] %v1260
    %1389 = vst [vmem:[%s3 + $0xbc] sm:$0xf] %v1261
    %1390 = vst [vmem:[%s3 + $0xc0] sm:$0xf] %v1262
    %1391 = vst [vmem:[%s3 + $0xc4] sm:$0xf] %v1263
    %1392 = vst [vmem:[%s3 + $0xc8] sm:$0xf] %v1264
    %1393 = vst [vmem:[%s3 + $0xcc] sm:$0xf] %v1265
    %1394 = vst [vmem:[%s3 + $0xd0] sm:$0xf] %v1266
    %1395 = vst [vmem:[%s3 + $0xd4] sm:$0xf] %v1267
    %1396 = vst [vmem:[%s3 + $0xd8] sm:$0xf] %v1268
    %1397 = vst [vmem:[%s3 + $0xdc] sm:$0xf] %v1269
    %1398 = vst [vmem:[%s3 + $0xe0] sm:$0xf] %v1270
    %1399 = vst [vmem:[%s3 + $0xe4] sm:$0xf] %v1271
    %1400 = vst [vmem:[%s3 + $0xe8] sm:$0xf] %v1272
    %1401 = vst [vmem:[%s3 + $0xec] sm:$0xf] %v1273
    %1402 = vst [vmem:[%s3 + $0xf0] sm:$0xf] %v1274
    %1403 = vst [vmem:[%s3 + $0xf4] sm:$0xf] %v1275
    %1404 = vst [vmem:[%s3 + $0xf8] sm:$0xf] %v1276
    %1405 = vst [vmem:[%s3 + $0xfc] sm:$0xf] %v1277
  $region21: #{_lambda_.10} parent=0 // pred_fallthru
    _
  // Predicated region
  $region22: #{_lambda_.10} parent=0 // pred_check
    _
  $region23: #{_lambda_.10} parent=0 // pred_check_branch
    %1407 = sbr.rel (0) target = $region25
  $region24: #{_lambda_.10} parent=0 // pred_region
    _
  $region25: #{_lambda_.10} parent=0 // pred_fallthru
    _
  // Predicated region
  $region26: #{_lambda_.10} parent=0 // pred_check
    _
  $region27: #{_lambda_.10} parent=0 // pred_check_branch
    %1409 = sbr.rel (0) target = $region29
  $region28: #{_lambda_.10} parent=0 // pred_region
    _
  $region29: #{_lambda_.10} parent=0 // pred_fallthru
    _

// kernel: _lambda_.12
$region0: #{_lambda_.12}
  #allocation0 [shape = 'u32[]', space=smem, size = 0x4, offset = 0x4, fixed_abs, tag = 'smem constant byte address 0x4 - core index']
  #allocation1 [shape = 'u32[144,128]{1,0:T(1,128)}', space=vmem, size = 0x12000, scoped, tag = 'internal scratch']
  #allocation2 [shape = 'f32[128,128]{1,0:T(8,128)}', space=vmem, size = 0x10000, scoped, tag = 'scratch operand']
  %s0 = inlined_call_operand.vmem [shape: bf16[128,128], index: 0, kind: input, shape index: {}]
  %s1 = inlined_call_operand.vmem [shape: bf16[128,128], index: 1, kind: input, shape index: {}]
  %s2 = inlined_call_operand.vmem [shape: f32[1,128], index: 2, kind: input, shape index: {}]
  %s3 = inlined_call_operand.vmem [shape: bf16[128,128], index: 3, kind: input, shape index: {}]
  %s4 = inlined_call_operand.vmem [shape: bf16[128,128], index: 4, kind: output, shape index: {}]
  %s5 = sld [smem:[#allocation0]]
  $region34: #{_lambda_.12} parent=0
    _
  %s7 = ssub.s32 1, %s5
  %s8 = scalar_select 0, %s7, %s5
  // Predicated region
  $region2: #{_lambda_.12} parent=0 // pred_check
    _
  $region3: #{_lambda_.12} parent=0 // pred_check_branch
    %10 = sbr.rel (0) target = $region5
  $region4: #{_lambda_.12} parent=0 // pred_region
    _
  $region5: #{_lambda_.12} parent=0 // pred_fallthru
    _
  // Predicated region
  $region6: #{_lambda_.12} parent=0 // pred_check
    _
  $region7: #{_lambda_.12} parent=0 // pred_check_branch
    %12 = sbr.rel (0) target = $region9
  $region8: #{_lambda_.12} parent=0 // pred_region
    _
  $region9: #{_lambda_.12} parent=0 // pred_fallthru
    _
  // Predicated region
  $region10: #{_lambda_.12} parent=0 // pred_check
    _
  $region11: #{_lambda_.12} parent=0 // pred_check_branch
    %14 = sbr.rel (0) target = $region13
  $region12: #{_lambda_.12} parent=0 // pred_region
    _
  $region13: #{_lambda_.12} parent=0 // pred_fallthru
    _
  // Predicated region
  $region14: #{_lambda_.12} parent=0 // pred_check
    _
  $region15: #{_lambda_.12} parent=0 // pred_check_branch
    %16 = sbr.rel (0) target = $region17
  $region16: #{_lambda_.12} parent=0 // pred_region
    _
  $region17: #{_lambda_.12} parent=0 // pred_fallthru
    _
  %p18 = scmp.eq.s32.totalorder 0, 0
  // Predicated region
  $region18: #{_lambda_.12} parent=0 // pred_check
    %p19 = pneg %p18
  $region19: #{_lambda_.12} parent=0 // pred_check_branch
    %21 = sbr.rel (%p19) target = $region21
  $region20: #{_lambda_.12} parent=0 // pred_region
    %22 = vst [vmem:[#allocation2] sm:$0xff] 0.0
    %23 = vst [vmem:[#allocation2 + $0x8] sm:$0xff] 0.0
    %24 = vst [vmem:[#allocation2 + $0x10] sm:$0xff] 0.0
    %25 = vst [vmem:[#allocation2 + $0x18] sm:$0xff] 0.0
    %26 = vst [vmem:[#allocation2 + $0x20] sm:$0xff] 0.0
    %27 = vst [vmem:[#allocation2 + $0x28] sm:$0xff] 0.0
    %28 = vst [vmem:[#allocation2 + $0x30] sm:$0xff] 0.0
    %29 = vst [vmem:[#allocation2 + $0x38] sm:$0xff] 0.0
    %30 = vst [vmem:[#allocation2 + $0x40] sm:$0xff] 0.0
    %31 = vst [vmem:[#allocation2 + $0x48] sm:$0xff] 0.0
    %32 = vst [vmem:[#allocation2 + $0x50] sm:$0xff] 0.0
    %33 = vst [vmem:[#allocation2 + $0x58] sm:$0xff] 0.0
    %34 = vst [vmem:[#allocation2 + $0x60] sm:$0xff] 0.0
    %35 = vst [vmem:[#allocation2 + $0x68] sm:$0xff] 0.0
    %36 = vst [vmem:[#allocation2 + $0x70] sm:$0xff] 0.0
    %37 = vst [vmem:[#allocation2 + $0x78] sm:$0xff] 0.0
  $region21: #{_lambda_.12} parent=0 // pred_fallthru
    _
  %v38 = vld [vmem:[#allocation2] sm:$0xff]
  %v39 = vld [vmem:[#allocation2 + $0x8] sm:$0xff]
  %v40 = vld [vmem:[#allocation2 + $0x10] sm:$0xff]
  %v41 = vld [vmem:[#allocation2 + $0x18] sm:$0xff]
  %v42 = vld [vmem:[#allocation2 + $0x20] sm:$0xff]
  %v43 = vld [vmem:[#allocation2 + $0x28] sm:$0xff]
  %v44 = vld [vmem:[#allocation2 + $0x30] sm:$0xff]
  %v45 = vld [vmem:[#allocation2 + $0x38] sm:$0xff]
  %v46 = vld [vmem:[#allocation2 + $0x40] sm:$0xff]
  %v47 = vld [vmem:[#allocation2 + $0x48] sm:$0xff]
  %v48 = vld [vmem:[#allocation2 + $0x50] sm:$0xff]
  %v49 = vld [vmem:[#allocation2 + $0x58] sm:$0xff]
  %v50 = vld [vmem:[#allocation2 + $0x60] sm:$0xff]
  %v51 = vld [vmem:[#allocation2 + $0x68] sm:$0xff]
  %v52 = vld [vmem:[#allocation2 + $0x70] sm:$0xff]
  %v53 = vld [vmem:[#allocation2 + $0x78] sm:$0xff]
  %v54 = vld [vmem:[%s0] sm:$0xf]
  %v55 = vld [vmem:[%s0 + $0x4] sm:$0xf]
  %v56 = vld [vmem:[%s0 + $0x8] sm:$0xf]
  %v57 = vld [vmem:[%s0 + $0xc] sm:$0xf]
  %v58 = vld [vmem:[%s0 + $0x10] sm:$0xf]
  %v59 = vld [vmem:[%s0 + $0x14] sm:$0xf]
  %v60 = vld [vmem:[%s0 + $0x18] sm:$0xf]
  %v61 = vld [vmem:[%s0 + $0x1c] sm:$0xf]
  %v62 = vld [vmem:[%s0 + $0x20] sm:$0xf]
  %v63 = vld [vmem:[%s0 + $0x24] sm:$0xf]
  %v64 = vld [vmem:[%s0 + $0x28] sm:$0xf]
  %v65 = vld [vmem:[%s0 + $0x2c] sm:$0xf]
  %v66 = vld [vmem:[%s0 + $0x30] sm:$0xf]
  %v67 = vld [vmem:[%s0 + $0x34] sm:$0xf]
  %v68 = vld [vmem:[%s0 + $0x38] sm:$0xf]
  %v69 = vld [vmem:[%s0 + $0x3c] sm:$0xf]
  %v70 = vld [vmem:[%s1] sm:$0xf]
  %v71 = vld [vmem:[%s1 + $0x4] sm:$0xf]
  %v72 = vld [vmem:[%s1 + $0x8] sm:$0xf]
  %v73 = vld [vmem:[%s1 + $0xc] sm:$0xf]
  %v74 = vld [vmem:[%s1 + $0x10] sm:$0xf]
  %v75 = vld [vmem:[%s1 + $0x14] sm:$0xf]
  %v76 = vld [vmem:[%s1 + $0x18] sm:$0xf]
  %v77 = vld [vmem:[%s1 + $0x1c] sm:$0xf]
  %v78 = vld [vmem:[%s1 + $0x20] sm:$0xf]
  %v79 = vld [vmem:[%s1 + $0x24] sm:$0xf]
  %v80 = vld [vmem:[%s1 + $0x28] sm:$0xf]
  %v81 = vld [vmem:[%s1 + $0x2c] sm:$0xf]
  %v82 = vld [vmem:[%s1 + $0x30] sm:$0xf]
  %v83 = vld [vmem:[%s1 + $0x34] sm:$0xf]
  %v84 = vld [vmem:[%s1 + $0x38] sm:$0xf]
  %v85 = vld [vmem:[%s1 + $0x3c] sm:$0xf]
  %v102 = vunpack.c.l.b16 %v54
  %v103 = vunpack.c.l.b16 %v55
  %v104 = vunpack.c.l.b16 %v56
  %v105 = vunpack.c.l.b16 %v57
  %v106 = vunpack.c.l.b16 %v58
  %v107 = vunpack.c.l.b16 %v59
  %v108 = vunpack.c.l.b16 %v60
  %v109 = vunpack.c.l.b16 %v61
  %v110 = vunpack.c.l.b16 %v62
  %v111 = vunpack.c.l.b16 %v63
  %v112 = vunpack.c.l.b16 %v64
  %v113 = vunpack.c.l.b16 %v65
  %v114 = vunpack.c.l.b16 %v66
  %v115 = vunpack.c.l.b16 %v67
  %v116 = vunpack.c.l.b16 %v68
  %v117 = vunpack.c.l.b16 %v69
  %v118 = vpack.c.b16 %v103, %v102
  %v119 = vpack.c.b16 %v105, %v104
  %v120 = vpack.c.b16 %v107, %v106
  %v121 = vpack.c.b16 %v109, %v108
  %v122 = vpack.c.b16 %v111, %v110
  %v123 = vpack.c.b16 %v113, %v112
  %v124 = vpack.c.b16 %v115, %v114
  %v125 = vpack.c.b16 %v117, %v116
  %v150 = vunpack.c.l.b16 %v70
  %v151 = vunpack.c.l.b16 %v71
  %v152 = vunpack.c.l.b16 %v72
  %v153 = vunpack.c.l.b16 %v73
  %v154 = vunpack.c.l.b16 %v74
  %v155 = vunpack.c.l.b16 %v75
  %v156 = vunpack.c.l.b16 %v76
  %v157 = vunpack.c.l.b16 %v77
  %v158 = vunpack.c.l.b16 %v78
  %v159 = vunpack.c.l.b16 %v79
  %v160 = vunpack.c.l.b16 %v80
  %v161 = vunpack.c.l.b16 %v81
  %v162 = vunpack.c.l.b16 %v82
  %v163 = vunpack.c.l.b16 %v83
  %v164 = vunpack.c.l.b16 %v84
  %v165 = vunpack.c.l.b16 %v85
  %v166 = vpack.c.b16 %v151, %v150
  %v167 = vpack.c.b16 %v153, %v152
  %v168 = vpack.c.b16 %v155, %v154
  %v169 = vpack.c.b16 %v157, %v156
  %v170 = vpack.c.b16 %v159, %v158
  %v171 = vpack.c.b16 %v161, %v160
  %v172 = vpack.c.b16 %v163, %v162
  %v173 = vpack.c.b16 %v165, %v164
  %182 = vmatprep.subr.bf16.mxu0 0
  %183 = vmatpush1.bf16.msra.mxu0 %v173
  %184 = vmatprep.subr.bf16.mxu0 0
  %185 = vmatpush1.bf16.msra.mxu0 %v172
  %186 = vmatprep.subr.bf16.mxu0 0
  %187 = vmatpush1.bf16.msra.mxu0 %v171
  %188 = vmatprep.subr.bf16.mxu0 0
  %189 = vmatpush1.bf16.msra.mxu0 %v170
  %190 = vmatprep.subr.bf16.mxu0 0
  %191 = vmatpush1.bf16.msra.mxu0 %v169
  %192 = vmatprep.subr.bf16.mxu0 0
  %193 = vmatpush1.bf16.msra.mxu0 %v168
  %194 = vmatprep.subr.bf16.mxu0 0
  %195 = vmatpush1.bf16.msra.mxu0 %v167
  %196 = vmatprep.subr.bf16.mxu0 0
  %197 = vmatpush1.bf16.msra.mxu0 %v166
  %198 = vmatprep.subr.bf16.mxu0 0
  %199 = vmatpush2.bf16.msra.mxu0 0
  %200 = vmatprep.subr.bf16.mxu0 0
  %201 = vmatpush2.bf16.msra.mxu0 0
  %202 = vmatprep.subr.bf16.mxu0 0
  %203 = vmatpush2.bf16.msra.mxu0 0
  %204 = vmatprep.subr.bf16.mxu0 0
  %205 = vmatpush2.bf16.msra.mxu0 0
  %206 = vmatprep.subr.bf16.mxu0 0
  %207 = vmatpush2.bf16.msra.mxu0 0
  %208 = vmatprep.subr.bf16.mxu0 0
  %209 = vmatpush2.bf16.msra.mxu0 0
  %210 = vmatprep.subr.bf16.mxu0 0
  %211 = vmatpush2.bf16.msra.mxu0 0
  %212 = vmatprep.subr.bf16.mxu0 0
  %213 = vmatpush2.bf16.msra.mxu0 0
  %214 = vmatprep.mubr.bf16.mxu0 0
  %215 = vmatmul.mubr.bf16.gmra.mxu0 %v118
  %v216 = vpop.f32.mrf.mxu0
  %v217 = vadd.f32 0.0, %v216
  %v218 = vpop.f32.mrf.mxu0
  %v219 = vpop.f32.mrf.mxu0
  %v220 = vadd.f32 0.0, %v219
  %v221 = vpop.f32.mrf.mxu0
  %222 = vmatprep.mubr.bf16.mxu0 0
  %223 = vmatmul.mubr.bf16.gmra.mxu0 %v119
  %v224 = vpop.f32.mrf.mxu0
  %v225 = vadd.f32 0.0, %v224
  %v226 = vpop.f32.mrf.mxu0
  %v227 = vpop.f32.mrf.mxu0
  %v228 = vadd.f32 0.0, %v227
  %v229 = vpop.f32.mrf.mxu0
  %230 = vmatprep.mubr.bf16.mxu0 0
  %231 = vmatmul.mubr.bf16.gmra.mxu0 %v120
  %v232 = vpop.f32.mrf.mxu0
  %v233 = vadd.f32 0.0, %v232
  %v234 = vpop.f32.mrf.mxu0
  %v235 = vpop.f32.mrf.mxu0
  %v236 = vadd.f32 0.0, %v235
  %v237 = vpop.f32.mrf.mxu0
  %238 = vmatprep.mubr.bf16.mxu0 0
  %239 = vmatmul.mubr.bf16.gmra.mxu0 %v121
  %v240 = vpop.f32.mrf.mxu0
  %v241 = vadd.f32 0.0, %v240
  %v242 = vpop.f32.mrf.mxu0
  %v243 = vpop.f32.mrf.mxu0
  %v244 = vadd.f32 0.0, %v243
  %v245 = vpop.f32.mrf.mxu0
  %246 = vmatprep.mubr.bf16.mxu0 0
  %247 = vmatmul.mubr.bf16.gmra.mxu0 %v122
  %v248 = vpop.f32.mrf.mxu0
  %v249 = vadd.f32 0.0, %v248
  %v250 = vpop.f32.mrf.mxu0
  %v251 = vpop.f32.mrf.mxu0
  %v252 = vadd.f32 0.0, %v251
  %v253 = vpop.f32.mrf.mxu0
  %254 = vmatprep.mubr.bf16.mxu0 0
  %255 = vmatmul.mubr.bf16.gmra.mxu0 %v123
  %v256 = vpop.f32.mrf.mxu0
  %v257 = vadd.f32 0.0, %v256
  %v258 = vpop.f32.mrf.mxu0
  %v259 = vpop.f32.mrf.mxu0
  %v260 = vadd.f32 0.0, %v259
  %v261 = vpop.f32.mrf.mxu0
  %262 = vmatprep.mubr.bf16.mxu0 0
  %263 = vmatmul.mubr.bf16.gmra.mxu0 %v124
  %v264 = vpop.f32.mrf.mxu0
  %v265 = vadd.f32 0.0, %v264
  %v266 = vpop.f32.mrf.mxu0
  %v267 = vpop.f32.mrf.mxu0
  %v268 = vadd.f32 0.0, %v267
  %v269 = vpop.f32.mrf.mxu0
  %270 = vmatprep.mubr.bf16.mxu0 0
  %271 = vmatmul.mubr.bf16.gmra.mxu0 %v125
  %v272 = vpop.f32.mrf.mxu0
  %v273 = vadd.f32 0.0, %v272
  %v274 = vpop.f32.mrf.mxu0
  %v275 = vpop.f32.mrf.mxu0
  %v276 = vadd.f32 0.0, %v275
  %v277 = vpop.f32.mrf.mxu0
  %278 = vdwg.mxu0
  %v279 = vadd.f32 %v38, %v217
  %v280 = vadd.f32 %v39, %v220
  %v281 = vadd.f32 %v40, %v225
  %v282 = vadd.f32 %v41, %v228
  %v283 = vadd.f32 %v42, %v233
  %v284 = vadd.f32 %v43, %v236
  %v285 = vadd.f32 %v44, %v241
  %v286 = vadd.f32 %v45, %v244
  %v287 = vadd.f32 %v46, %v249
  %v288 = vadd.f32 %v47, %v252
  %v289 = vadd.f32 %v48, %v257
  %v290 = vadd.f32 %v49, %v260
  %v291 = vadd.f32 %v50, %v265
  %v292 = vadd.f32 %v51, %v268
  %v293 = vadd.f32 %v52, %v273
  %v294 = vadd.f32 %v53, %v276
  %295 = vst [vmem:[#allocation2] sm:$0xff] %v279
  %296 = vst [vmem:[#allocation2 + $0x8] sm:$0xff] %v280
  %297 = vst [vmem:[#allocation2 + $0x10] sm:$0xff] %v281
  %298 = vst [vmem:[#allocation2 + $0x18] sm:$0xff] %v282
  %299 = vst [vmem:[#allocation2 + $0x20] sm:$0xff] %v283
  %300 = vst [vmem:[#allocation2 + $0x28] sm:$0xff] %v284
  %301 = vst [vmem:[#allocation2 + $0x30] sm:$0xff] %v285
  %302 = vst [vmem:[#allocation2 + $0x38] sm:$0xff] %v286
  %303 = vst [vmem:[#allocation2 + $0x40] sm:$0xff] %v287
  %304 = vst [vmem:[#allocation2 + $0x48] sm:$0xff] %v288
  %305 = vst [vmem:[#allocation2 + $0x50] sm:$0xff] %v289
  %306 = vst [vmem:[#allocation2 + $0x58] sm:$0xff] %v290
  %307 = vst [vmem:[#allocation2 + $0x60] sm:$0xff] %v291
  %308 = vst [vmem:[#allocation2 + $0x68] sm:$0xff] %v292
  %309 = vst [vmem:[#allocation2 + $0x70] sm:$0xff] %v293
  %310 = vst [vmem:[#allocation2 + $0x78] sm:$0xff] %v294
  // Predicated region
  $region22: #{_lambda_.12} parent=0 // pred_check
    %p311 = pneg %p18
  $region23: #{_lambda_.12} parent=0 // pred_check_branch
    %313 = sbr.rel (%p311) target = $region25
  $region24: #{_lambda_.12} parent=0 // pred_region
    %v314 = vld [vmem:[#allocation2] sm:$0xff]
    %v315 = vld [vmem:[#allocation2 + $0x8] sm:$0xff]
    %v316 = vld [vmem:[#allocation2 + $0x10] sm:$0xff]
    %v317 = vld [vmem:[#allocation2 + $0x18] sm:$0xff]
    %v318 = vld [vmem:[#allocation2 + $0x20] sm:$0xff]
    %v319 = vld [vmem:[#allocation2 + $0x28] sm:$0xff]
    %v320 = vld [vmem:[#allocation2 + $0x30] sm:$0xff]
    %v321 = vld [vmem:[#allocation2 + $0x38] sm:$0xff]
    %v322 = vld [vmem:[#allocation2 + $0x40] sm:$0xff]
    %v323 = vld [vmem:[#allocation2 + $0x48] sm:$0xff]
    %v324 = vld [vmem:[#allocation2 + $0x50] sm:$0xff]
    %v325 = vld [vmem:[#allocation2 + $0x58] sm:$0xff]
    %v326 = vld [vmem:[#allocation2 + $0x60] sm:$0xff]
    %v327 = vld [vmem:[#allocation2 + $0x68] sm:$0xff]
    %v328 = vld [vmem:[#allocation2 + $0x70] sm:$0xff]
    %v329 = vld [vmem:[#allocation2 + $0x78] sm:$0xff]
    %v330 = vld [vmem:[%s2] sm:$0x1]
    %v332 = vlaneseq
    %v333 = vshrl.u32 %v332, 7
    %v334 = vsub.s32 0, %v333
    %v335 = vrot.slane %v330, %v334
    %v337 = vadd.f32 %v314, %v335
    %v338 = vadd.f32 %v315, %v335
    %v339 = vadd.f32 %v316, %v335
    %v340 = vadd.f32 %v317, %v335
    %v341 = vadd.f32 %v318, %v335
    %v342 = vadd.f32 %v319, %v335
    %v343 = vadd.f32 %v320, %v335
    %v344 = vadd.f32 %v321, %v335
    %v345 = vadd.f32 %v322, %v335
    %v346 = vadd.f32 %v323, %v335
    %v347 = vadd.f32 %v324, %v335
    %v348 = vadd.f32 %v325, %v335
    %v349 = vadd.f32 %v326, %v335
    %v350 = vadd.f32 %v327, %v335
    %v351 = vadd.f32 %v328, %v335
    %v352 = vadd.f32 %v329, %v335
    %v353 = vld [vmem:[%s3] sm:$0xf]
    %v354 = vld [vmem:[%s3 + $0x4] sm:$0xf]
    %v355 = vld [vmem:[%s3 + $0x8] sm:$0xf]
    %v356 = vld [vmem:[%s3 + $0xc] sm:$0xf]
    %v357 = vld [vmem:[%s3 + $0x10] sm:$0xf]
    %v358 = vld [vmem:[%s3 + $0x14] sm:$0xf]
    %v359 = vld [vmem:[%s3 + $0x18] sm:$0xf]
    %v360 = vld [vmem:[%s3 + $0x1c] sm:$0xf]
    %v361 = vld [vmem:[%s3 + $0x20] sm:$0xf]
    %v362 = vld [vmem:[%s3 + $0x24] sm:$0xf]
    %v363 = vld [vmem:[%s3 + $0x28] sm:$0xf]
    %v364 = vld [vmem:[%s3 + $0x2c] sm:$0xf]
    %v365 = vld [vmem:[%s3 + $0x30] sm:$0xf]
    %v366 = vld [vmem:[%s3 + $0x34] sm:$0xf]
    %v367 = vld [vmem:[%s3 + $0x38] sm:$0xf]
    %v368 = vld [vmem:[%s3 + $0x3c] sm:$0xf]
    %v369 = vunpack.c.l.bf16 %v353
    %v370 = vunpack.c.l.bf16 %v354
    %v371 = vunpack.c.l.bf16 %v355
    %v372 = vunpack.c.l.bf16 %v356
    %v373 = vunpack.c.l.bf16 %v357
    %v374 = vunpack.c.l.bf16 %v358
    %v375 = vunpack.c.l.bf16 %v359
    %v376 = vunpack.c.l.bf16 %v360
    %v377 = vunpack.c.l.bf16 %v361
    %v378 = vunpack.c.l.bf16 %v362
    %v379 = vunpack.c.l.bf16 %v363
    %v380 = vunpack.c.l.bf16 %v364
    %v381 = vunpack.c.l.bf16 %v365
    %v382 = vunpack.c.l.bf16 %v366
    %v383 = vunpack.c.l.bf16 %v367
    %v384 = vunpack.c.l.bf16 %v368
    %v385 = vadd.f32 %v337, %v369
    %v386 = vadd.f32 %v338, %v370
    %v387 = vadd.f32 %v339, %v371
    %v388 = vadd.f32 %v340, %v372
    %v389 = vadd.f32 %v341, %v373
    %v390 = vadd.f32 %v342, %v374
    %v391 = vadd.f32 %v343, %v375
    %v392 = vadd.f32 %v344, %v376
    %v393 = vadd.f32 %v345, %v377
    %v394 = vadd.f32 %v346, %v378
    %v395 = vadd.f32 %v347, %v379
    %v396 = vadd.f32 %v348, %v380
    %v397 = vadd.f32 %v349, %v381
    %v398 = vadd.f32 %v350, %v382
    %v399 = vadd.f32 %v351, %v383
    %v400 = vadd.f32 %v352, %v384
    %v401 = vmax.f32 %v385, 0.0
    %v402 = vmax.f32 %v386, 0.0
    %v403 = vmax.f32 %v387, 0.0
    %v404 = vmax.f32 %v388, 0.0
    %v405 = vmax.f32 %v389, 0.0
    %v406 = vmax.f32 %v390, 0.0
    %v407 = vmax.f32 %v391, 0.0
    %v408 = vmax.f32 %v392, 0.0
    %v409 = vmax.f32 %v393, 0.0
    %v410 = vmax.f32 %v394, 0.0
    %v411 = vmax.f32 %v395, 0.0
    %v412 = vmax.f32 %v396, 0.0
    %v413 = vmax.f32 %v397, 0.0
    %v414 = vmax.f32 %v398, 0.0
    %v415 = vmax.f32 %v399, 0.0
    %v416 = vmax.f32 %v400, 0.0
    %v417 = vpack.c.bf16 %v402, %v401
    %v418 = vpack.c.bf16 %v404, %v403
    %v419 = vpack.c.bf16 %v406, %v405
    %v420 = vpack.c.bf16 %v408, %v407
    %v421 = vpack.c.bf16 %v410, %v409
    %v422 = vpack.c.bf16 %v412, %v411
    %v423 = vpack.c.bf16 %v414, %v413
    %v424 = vpack.c.bf16 %v416, %v415
    %v433 = vunpack.c.l.b16 %v417
    %v434 = vunpack.c.h.b16 %v417
    %v435 = vunpack.c.l.b16 %v418
    %v436 = vunpack.c.h.b16 %v418
    %v437 = vunpack.c.l.b16 %v419
    %v438 = vunpack.c.h.b16 %v419
    %v439 = vunpack.c.l.b16 %v420
    %v440 = vunpack.c.h.b16 %v420
    %v441 = vunpack.c.l.b16 %v421
    %v442 = vunpack.c.h.b16 %v421
    %v443 = vunpack.c.l.b16 %v422
    %v444 = vunpack.c.h.b16 %v422
    %v445 = vunpack.c.l.b16 %v423
    %v446 = vunpack.c.h.b16 %v423
    %v447 = vunpack.c.l.b16 %v424
    %v448 = vunpack.c.h.b16 %v424
    %v449 = vpack.c.b16 %v433, %v433
    %v450 = vpack.c.b16 %v434, %v434
    %v451 = vpack.c.b16 %v435, %v435
    %v452 = vpack.c.b16 %v436, %v436
    %v453 = vpack.c.b16 %v437, %v437
    %v454 = vpack.c.b16 %v438, %v438
    %v455 = vpack.c.b16 %v439, %v439
    %v456 = vpack.c.b16 %v440, %v440
    %v457 = vpack.c.b16 %v441, %v441
    %v458 = vpack.c.b16 %v442, %v442
    %v459 = vpack.c.b16 %v443, %v443
    %v460 = vpack.c.b16 %v444, %v444
    %v461 = vpack.c.b16 %v445, %v445
    %v462 = vpack.c.b16 %v446, %v446
    %v463 = vpack.c.b16 %v447, %v447
    %v464 = vpack.c.b16 %v448, %v448
    %481 = vst [vmem:[%s4] sm:$0xf] %v449
    %482 = vst [vmem:[%s4 + $0x4] sm:$0xf] %v450
    %483 = vst [vmem:[%s4 + $0x8] sm:$0xf] %v451
    %484 = vst [vmem:[%s4 + $0xc] sm:$0xf] %v452
    %485 = vst [vmem:[%s4 + $0x10] sm:$0xf] %v453
    %486 = vst [vmem:[%s4 + $0x14] sm:$0xf] %v454
    %487 = vst [vmem:[%s4 + $0x18] sm:$0xf] %v455
    %488 = vst [vmem:[%s4 + $0x1c] sm:$0xf] %v456
    %489 = vst [vmem:[%s4 + $0x20] sm:$0xf] %v457
    %490 = vst [vmem:[%s4 + $0x24] sm:$0xf] %v458
    %491 = vst [vmem:[%s4 + $0x28] sm:$0xf] %v459
    %492 = vst [vmem:[%s4 + $0x2c] sm:$0xf] %v460
    %493 = vst [vmem:[%s4 + $0x30] sm:$0xf] %v461
    %494 = vst [vmem:[%s4 + $0x34] sm:$0xf] %v462
    %495 = vst [vmem:[%s4 + $0x38] sm:$0xf] %v463
    %496 = vst [vmem:[%s4 + $0x3c] sm:$0xf] %v464
  $region25: #{_lambda_.12} parent=0 // pred_fallthru
    _
  // Predicated region
  $region26: #{_lambda_.12} parent=0 // pred_check
    _
  $region27: #{_lambda_.12} parent=0 // pred_check_branch
    %498 = sbr.rel (0) target = $region29
  $region28: #{_lambda_.12} parent=0 // pred_region
    _
  $region29: #{_lambda_.12} parent=0 // pred_fallthru
    _
  // Predicated region
  $region30: #{_lambda_.12} parent=0 // pred_check
    _
  $region31: #{_lambda_.12} parent=0 // pred_check_branch
    %500 = sbr.rel (0) target = $region33
  $region32: #{_lambda_.12} parent=0 // pred_region
    _
  $region33: #{_lambda_.12} parent=0 // pred_fallthru
    _

// kernel: _lambda_.11
$region0: #{_lambda_.11}
  #allocation0 [shape = 'u32[]', space=smem, size = 0x4, offset = 0x4, fixed_abs, tag = 'smem constant byte address 0x4 - core index']
  #allocation1 [shape = 'u32[144,128]{1,0:T(1,128)}', space=vmem, size = 0x12000, scoped, tag = 'internal scratch']
  #allocation2 [shape = 'f32[128,128]{1,0:T(8,128)}', space=vmem, size = 0x10000, scoped, tag = 'scratch operand']
  %s0 = inlined_call_operand.vmem [shape: bf16[128,1152], index: 0, kind: input, shape index: {}]
  %s1 = inlined_call_operand.vmem [shape: bf16[1152,128], index: 1, kind: input, shape index: {}]
  %s2 = inlined_call_operand.vmem [shape: f32[1,128], index: 2, kind: input, shape index: {}]
  %s3 = inlined_call_operand.vmem [shape: bf16[128,128], index: 3, kind: output, shape index: {}]
  %s4 = sld [smem:[#allocation0]]
  $region79: #{_lambda_.11} parent=0
    _
  %s6 = ssub.s32 1, %s4
  %s7 = scalar_select 0, %s6, %s4
  $region1: #{_lambda_.11} parent=0
    #allocation3 [shape = 'u8[196608]{0}', space=vmem, size = 0x30000, scoped, tag = 'input window, operand 0']
    loop: start=0, step=1, limit=5
    $region2: #{_lambda_.11} parent=1 // loop_pre_header
      _
    $region3: #{_lambda_.11} parent=1 // loop_header
      %s9 = sphi 0, %s13
      %p10 = scmp.ge.s32.totalorder %s9, 5
      %s16 = sphi 0, %s35
      %s17 = sphi 0, %s31
      %s18 = sphi 0, %s27
      %s19 = sphi 0, %s16
      %s20 = sphi 0, %s17
      %s21 = sphi 0, %s18
      %s22 = sphi 0, %s19
      %s23 = sphi 0, %s20
      %s24 = sphi 0, %s21
      %s40 = sphi 0, %s42
      %s43 = sphi 0, %s40
      %s44 = sphi 0, %s43
      %s60 = sphi 0, %s44
      %s68 = sphi 0, %s70
      %s71 = sphi 0, %s68
      %s72 = sphi 0, %s71
      %s88 = sphi 0, %s72
      %s94 = sphi 0, %s96
      %s97 = sphi 0, %s94
      %s98 = sphi 0, %s97
      %s114 = sphi 0, %s98
      %s122 = sphi 0, %s124
      %s125 = sphi 0, %s122
      %s126 = sphi 0, %s125
      %s142 = sphi 0, %s126
    $region4: #{_lambda_.11} parent=1 // loop_header_branch
      %12 = sbr.rel (%p10) target = $region8
    $region5: #{_lambda_.11} parent=1 // loop_body
      %s14 = ssub.s32 %s9, 1
      %s15 = ssub.s32 %s9, 2
      %s25 = sadd.s32 1, %s18
      %p26 = scmp.ge.s32.totalorder %s25, 3
      %s27 = scalar_select %p26, 0, %s25
      %s28 = sadd.s32 1, %s17
      %s29 = scalar_select %p26, %s28, %s17
      %p30 = scmp.ge.s32.totalorder %s29, 1
      %s31 = scalar_select %p30, 0, %s29
      %s32 = sadd.s32 1, %s16
      %s33 = scalar_select %p30, %s32, %s16
      %p34 = scmp.ge.s32.totalorder %s33, 1
      %s35 = scalar_select %p34, 0, %s33
      %s36 = ssub.s32 %s16, %s35
      %s37 = ssub.s32 %s18, %s27
      %s38 = sor.u32 %s36, %s37
      %p39 = scmp.eq.s32.totalorder %s38, 0
      %s41 = sadd.s32 %s40, 1
      %s42 = scalar_select %p39, %s40, %s41
      %p45 = pneg %p39
      %p46 = scmp.eq.s32.totalorder %s9, 2
      %p47 = por %p45, %p46
      %p48 = scmp.ne.s32.totalorder %s40, %s43
      %p49 = scmp.eq.s32.totalorder %s9, 0
      %p50 = por %p48, %p49
      %p51 = scmp.ne.s32.totalorder %s40, %s43
      %p52 = scmp.eq.s32.totalorder %s14, 2
      %p53 = por %p51, %p52
      %p54 = scmp.ne.s32.totalorder %s43, %s44
      %p55 = scmp.eq.s32.totalorder %s14, 0
      %p56 = por %p54, %p55
      %p57 = scmp.ne.s32.totalorder %s43, %s44
      %p58 = scmp.eq.s32.totalorder %s15, 2
      %p59 = por %p57, %p58
      %p61 = scmp.ne.s32.totalorder %s44, %s60
      %p62 = scmp.eq.s32.totalorder %s15, 0
      %p63 = por %p61, %p62
      %s64 = ssub.s32 %s18, %s27
      %s65 = ssub.s32 %s17, %s31
      %s66 = sor.u32 %s64, %s65
      %p67 = scmp.eq.s32.totalorder %s66, 0
      %s69 = sadd.s32 %s68, 1
      %s70 = scalar_select %p67, %s68, %s69
      %p73 = pneg %p67
      %p74 = scmp.eq.s32.totalorder %s9, 2
      %p75 = por %p73, %p74
      %p76 = scmp.ne.s32.totalorder %s68, %s71
      %p77 = scmp.eq.s32.totalorder %s9, 0
      %p78 = por %p76, %p77
      %p79 = scmp.ne.s32.totalorder %s68, %s71
      %p80 = scmp.eq.s32.totalorder %s14, 2
      %p81 = por %p79, %p80
      %p82 = scmp.ne.s32.totalorder %s71, %s72
      %p83 = scmp.eq.s32.totalorder %s14, 0
      %p84 = por %p82, %p83
      %p85 = scmp.ne.s32.totalorder %s71, %s72
      %p86 = scmp.eq.s32.totalorder %s15, 2
      %p87 = por %p85, %p86
      %p89 = scmp.ne.s32.totalorder %s72, %s88
      %p90 = scmp.eq.s32.totalorder %s15, 0
      %p91 = por %p89, %p90
      %s92 = ssub.s32 %s17, %s31
      %p93 = scmp.eq.s32.totalorder %s92, 0
      %s95 = sadd.s32 %s94, 1
      %s96 = scalar_select %p93, %s94, %s95
      %p99 = pneg %p93
      %p100 = scmp.eq.s32.totalorder %s9, 2
      %p101 = por %p99, %p100
      %p102 = scmp.ne.s32.totalorder %s94, %s97
      %p103 = scmp.eq.s32.totalorder %s9, 0
      %p104 = por %p102, %p103
      %p105 = scmp.ne.s32.totalorder %s94, %s97
      %p106 = scmp.eq.s32.totalorder %s14, 2
      %p107 = por %p105, %p106
      %p108 = scmp.ne.s32.totalorder %s97, %s98
      %p109 = scmp.eq.s32.totalorder %s14, 0
      %p110 = por %p108, %p109
      %p111 = scmp.ne.s32.totalorder %s97, %s98
      %p112 = scmp.eq.s32.totalorder %s15, 2
      %p113 = por %p111, %p112
      %p115 = scmp.ne.s32.totalorder %s98, %s114
      %p116 = scmp.eq.s32.totalorder %s15, 0
      %p117 = por %p115, %p116
      %s118 = ssub.s32 %s16, %s35
      %s119 = ssub.s32 %s17, %s31
      %s120 = sor.u32 %s118, %s119
      %p121 = scmp.eq.s32.totalorder %s120, 0
      %s123 = sadd.s32 %s122, 1
      %s124 = scalar_select %p121, %s122, %s123
      %p127 = pneg %p121
      %p128 = scmp.eq.s32.totalorder %s9, 2
      %p129 = por %p127, %p128
      %p130 = scmp.ne.s32.totalorder %s122, %s125
      %p131 = scmp.eq.s32.totalorder %s9, 0
      %p132 = por %p130, %p131
      %p133 = scmp.ne.s32.totalorder %s122, %s125
      %p134 = scmp.eq.s32.totalorder %s14, 2
      %p135 = por %p133, %p134
      %p136 = scmp.ne.s32.totalorder %s125, %s126
      %p137 = scmp.eq.s32.totalorder %s14, 0
      %p138 = por %p136, %p137
      %p139 = scmp.ne.s32.totalorder %s125, %s126
      %p140 = scmp.eq.s32.totalorder %s15, 2
      %p141 = por %p139, %p140
      %p143 = scmp.ne.s32.totalorder %s126, %s142
      %p144 = scmp.eq.s32.totalorder %s15, 0
      %p145 = por %p143, %p144
      %p146 = scmp.le.s32.totalorder 1, %s9
      %p147 = scmp.lt.s32.totalorder %s9, 4
      %p148 = pnand %p146, %p147
      %p149 = pneg %p148
      // Predicated region
      $region9: #{_lambda_.11} parent=5 // pred_check
        _
      $region10: #{_lambda_.11} parent=5 // pred_check_branch
        %151 = sbr.rel (%p148) target = $region12
      $region11: #{_lambda_.11} parent=5 // pred_region
        %s152 = ssub.s32 %s9, 1
        // Predicated region
        $region13: #{_lambda_.11} parent=11 // pred_check
          %p153 = pneg %p110
        $region14: #{_lambda_.11} parent=11 // pred_check_branch
          %155 = sbr.rel (%p153) target = $region16
        $region15: #{_lambda_.11} parent=11 // pred_region
          %p156 = scmp.lt.s32.totalorder %s20, 0
          %s157 = scalar_select %p156, %s20, 0
          %s158 = scalar_lea.vmem %s2, %s157
        $region16: #{_lambda_.11} parent=11 // pred_fallthru
          _
      $region12: #{_lambda_.11} parent=5 // pred_fallthru
        _
      %p159 = scmp.lt.s32.totalorder %s9, 3
      // Predicated region
      $region17: #{_lambda_.11} parent=5 // pred_check
        %p160 = pneg %p159
      $region18: #{_lambda_.11} parent=5 // pred_check_branch
        %162 = sbr.rel (%p160) target = $region20
      $region19: #{_lambda_.11} parent=5 // pred_region
        // Predicated region
        $region21: #{_lambda_.11} parent=19 // pred_check
          %p163 = pneg %p50
        $region22: #{_lambda_.11} parent=19 // pred_check_branch
          %165 = sbr.rel (%p163) target = $region24
        $region23: #{_lambda_.11} parent=19 // pred_region
          %s166 = sand.u32 %s40, 1
          %s167 = sand.u32 %s40, 1
          %s168 = smul.addr %s167, 192
          %s169 = scalar_lea.vmem [#allocation3], %s168
          %s170 = smul.u32 16, %s16
          %s171 = smul.u32 3, %s18
          %s172 = smul.addr %s170, 9
          %s173 = sadd.s32 %s171, %s172
          %s174 = smul.addr %s173, 4
          %s175 = scalar_lea.vmem %s0, %s174
          // Predicated region
          $region25: #{_lambda_.11} parent=23 // pred_check
            _
          $region26: #{_lambda_.11} parent=23 // pred_check_branch
            %177 = sbr.rel (0) target = $region28
          $region27: #{_lambda_.11} parent=23 // pred_region
            // Predicated region
            $region29: #{_lambda_.11} parent=27 // pred_check
              _
            $region30: #{_lambda_.11} parent=27 // pred_check_branch
              %179 = sbr.rel (0) target = $region32
            $region31: #{_lambda_.11} parent=27 // pred_region
              %s180 = scalar_lea.vmem %s175, 8
              %s181 = scalar_lea.vmem %s169, 8 [#allocation3]
              loop: start=0, step=1, limit=1
              $region33: #{_lambda_.11} parent=31 // loop_pre_header
                _
              $region34: #{_lambda_.11} parent=31 // loop_header
                %s183 = sphi 0, %s187
                %p184 = scmp.ge.s32.totalorder %s183, 1
                %s188 = sphi %s175, %s175
                %s189 = sphi %s169, %s169
              $region35: #{_lambda_.11} parent=31 // loop_header_branch
                %186 = sbr.rel (%p184) target = $region39
              $region36: #{_lambda_.11} parent=31 // loop_body
                %v190 = vld [vmem:[%s188] sm:$0xff]
                %191 = vst [vmem:[%s189] sm:$0xff] %v190
                %v192 = vld [vmem:[%s188 + $0x24] sm:$0xff]
                %193 = vst [vmem:[%s189 + $0xc] sm:$0xff] %v192
                %v194 = vld [vmem:[%s188 + $0x48] sm:$0xff]
                %195 = vst [vmem:[%s189 + $0x18] sm:$0xff] %v194
                %v196 = vld [vmem:[%s188 + $0x6c] sm:$0xff]
                %197 = vst [vmem:[%s189 + $0x24] sm:$0xff] %v196
                %v198 = vld [vmem:[%s188 + $0x90] sm:$0xff]
                %199 = vst [vmem:[%s189 + $0x30] sm:$0xff] %v198
                %v200 = vld [vmem:[%s188 + $0xb4] sm:$0xff]
                %201 = vst [vmem:[%s189 + $0x3c] sm:$0xff] %v200
                %v202 = vld [vmem:[%s188 + $0xd8] sm:$0xff]
                %203 = vst [vmem:[%s189 + $0x48] sm:$0xff] %v202
                %v204 = vld [vmem:[%s188 + $0xfc] sm:$0xff]
                %205 = vst [vmem:[%s189 + $0x54] sm:$0xff] %v204
                %v206 = vld [vmem:[%s188 + $0x120] sm:$0xff]
                %207 = vst [vmem:[%s189 + $0x60] sm:$0xff] %v206
                %v208 = vld [vmem:[%s188 + $0x144] sm:$0xff]
                %209 = vst [vmem:[%s189 + $0x6c] sm:$0xff] %v208
                %v210 = vld [vmem:[%s188 + $0x168] sm:$0xff]
                %211 = vst [vmem:[%s189 + $0x78] sm:$0xff] %v210
                %v212 = vld [vmem:[%s188 + $0x18c] sm:$0xff]
                %213 = vst [vmem:[%s189 + $0x84] sm:$0xff] %v212
                %v214 = vld [vmem:[%s188 + $0x1b0] sm:$0xff]
                %215 = vst [vmem:[%s189 + $0x90] sm:$0xff] %v214
                %v216 = vld [vmem:[%s188 + $0x1d4] sm:$0xff]
                %217 = vst [vmem:[%s189 + $0x9c] sm:$0xff] %v216
                %v218 = vld [vmem:[%s188 + $0x1f8] sm:$0xff]
                %219 = vst [vmem:[%s189 + $0xa8] sm:$0xff] %v218
                %v220 = vld [vmem:[%s188 + $0x21c] sm:$0xff]
                %221 = vst [vmem:[%s189 + $0xb4] sm:$0xff] %v220
              $region37: #{_lambda_.11} parent=31 // loop_footer
                %s187 = sadd.s32 1, %s183
              $region38: #{_lambda_.11} parent=31 // loop_footer_branch
                %182 = sbr.rel target = $region34
              $region39: #{_lambda_.11} parent=31 // loop_exit
                _
              %s223 = ssub.s32 16, 1
              loop: start=0, step=1, limit=1
              $region40: #{_lambda_.11} parent=31 // loop_pre_header
                _
              $region41: #{_lambda_.11} parent=31 // loop_header
                %s225 = sphi 0, %s229
                %p226 = scmp.ge.s32.totalorder %s225, 1
                %s230 = sphi %s180, %s180
                %s231 = sphi %s181, %s181
              $region42: #{_lambda_.11} parent=31 // loop_header_branch
                %228 = sbr.rel (%p226) target = $region46
              $region43: #{_lambda_.11} parent=31 // loop_body
                %v232 = vld [vmem:[%s230] sm:%s223]
                %233 = vst [vmem:[%s231] sm:%s223] %v232
                %v234 = vld [vmem:[%s230 + $0x24] sm:%s223]
                %235 = vst [vmem:[%s231 + $0xc] sm:%s223] %v234
                %v236 = vld [vmem:[%s230 + $0x48] sm:%s223]
                %237 = vst [vmem:[%s231 + $0x18] sm:%s223] %v236
                %v238 = vld [vmem:[%s230 + $0x6c] sm:%s223]
                %239 = vst [vmem:[%s231 + $0x24] sm:%s223] %v238
                %v240 = vld [vmem:[%s230 + $0x90] sm:%s223]
                %241 = vst [vmem:[%s231 + $0x30] sm:%s223] %v240
                %v242 = vld [vmem:[%s230 + $0xb4] sm:%s223]
                %243 = vst [vmem:[%s231 + $0x3c] sm:%s223] %v242
                %v244 = vld [vmem:[%s230 + $0xd8] sm:%s223]
                %245 = vst [vmem:[%s231 + $0x48] sm:%s223] %v244
                %v246 = vld [vmem:[%s230 + $0xfc] sm:%s223]
                %247 = vst [vmem:[%s231 + $0x54] sm:%s223] %v246
                %v248 = vld [vmem:[%s230 + $0x120] sm:%s223]
                %249 = vst [vmem:[%s231 + $0x60] sm:%s223] %v248
                %v250 = vld [vmem:[%s230 + $0x144] sm:%s223]
                %251 = vst [vmem:[%s231 + $0x6c] sm:%s223] %v250
                %v252 = vld [vmem:[%s230 + $0x168] sm:%s223]
                %253 = vst [vmem:[%s231 + $0x78] sm:%s223] %v252
                %v254 = vld [vmem:[%s230 + $0x18c] sm:%s223]
                %255 = vst [vmem:[%s231 + $0x84] sm:%s223] %v254
                %v256 = vld [vmem:[%s230 + $0x1b0] sm:%s223]
                %257 = vst [vmem:[%s231 + $0x90] sm:%s223] %v256
                %v258 = vld [vmem:[%s230 + $0x1d4] sm:%s223]
                %259 = vst [vmem:[%s231 + $0x9c] sm:%s223] %v258
                %v260 = vld [vmem:[%s230 + $0x1f8] sm:%s223]
                %261 = vst [vmem:[%s231 + $0xa8] sm:%s223] %v260
                %v262 = vld [vmem:[%s230 + $0x21c] sm:%s223]
                %263 = vst [vmem:[%s231 + $0xb4] sm:%s223] %v262
              $region44: #{_lambda_.11} parent=31 // loop_footer
                %s229 = sadd.s32 1, %s225
              $region45: #{_lambda_.11} parent=31 // loop_footer_branch
                %224 = sbr.rel target = $region41
              $region46: #{_lambda_.11} parent=31 // loop_exit
                _
            $region32: #{_lambda_.11} parent=27 // pred_fallthru
              _
          $region28: #{_lambda_.11} parent=23 // pred_fallthru
            _
          %264 = vnop
        $region24: #{_lambda_.11} parent=19 // pred_fallthru
          _
        // Predicated region
        $region47: #{_lambda_.11} parent=19 // pred_check
          %p265 = pneg %p78
        $region48: #{_lambda_.11} parent=19 // pred_check_branch
          %267 = sbr.rel (%p265) target = $region50
        $region49: #{_lambda_.11} parent=19 // pred_region
          %s268 = smul.u32 48, %s18
          %p269 = scmp.lt.s32.totalorder %s268, 143
          %s270 = scalar_select %p269, %s268, 143
          %p271 = scmp.lt.s32.totalorder %s17, 0
          %s272 = scalar_select %p271, %s17, 0
          %s273 = sadd.s32 %s272, %s270
          %s274 = smul.addr %s273, 4
          %s275 = scalar_lea.vmem %s1, %s274
          %s276 = smul.u32 48, %s18
        $region50: #{_lambda_.11} parent=19 // pred_fallthru
          _
      $region20: #{_lambda_.11} parent=5 // pred_fallthru
        _
      %p277 = scmp.le.s32.totalorder 1, %s9
      %p278 = scmp.lt.s32.totalorder %s9, 4
      %p279 = pnand %p277, %p278
      %p280 = pneg %p279
      // Predicated region
      $region51: #{_lambda_.11} parent=5 // pred_check
        _
      $region52: #{_lambda_.11} parent=5 // pred_check_branch
        %282 = sbr.rel (%p279) target = $region54
      $region53: #{_lambda_.11} parent=5 // pred_region
        %s283 = ssub.s32 %s9, 1
        %s284 = sand.u32 %s43, 1
        %s285 = sand.u32 %s43, 1
        %s286 = smul.addr %s285, 192
        %s287 = scalar_lea.vmem [#allocation3], %s286
        // Predicated region
        $region55: #{_lambda_.11} parent=53 // pred_check
          %p288 = pneg %p56
        $region56: #{_lambda_.11} parent=53 // pred_check_branch
          %290 = sbr.rel (%p288) target = $region58
        $region57: #{_lambda_.11} parent=53 // pred_region
          _
        $region58: #{_lambda_.11} parent=53 // pred_fallthru
          _
        %s291 = sand.u32 %s43, 1
        %s292 = sand.u32 %s43, 1
        %s293 = smul.addr %s292, 192
        %s294 = scalar_lea.vmem [#allocation3], %s293
        %p295 = pneg %p56
        %p296 = pneg %p53
        %s297 = smul.u32 48, %s21
        %p298 = scmp.lt.s32.totalorder %s297, 143
        %s299 = scalar_select %p298, %s297, 143
        %p300 = scmp.lt.s32.totalorder %s20, 0
        %s301 = scalar_select %p300, %s20, 0
        %s302 = sadd.s32 %s301, %s299
        %s303 = smul.addr %s302, 4
        %s304 = scalar_lea.vmem %s1, %s303
        %p305 = pneg %p84
        %p306 = pneg %p81
        %p307 = scmp.lt.s32.totalorder %s20, 0
        %s308 = scalar_select %p307, %s20, 0
        %s309 = scalar_lea.vmem %s2, %s308
        %p310 = pneg %p110
        %p311 = pneg %p107
        %p312 = pneg %p138
        %p313 = pneg %p135
        %s314 = smul.u32 16, %s19
        %p315 = scmp.lt.s32.totalorder %s314, 15
        %s316 = scalar_select %p315, %s314, 15
        %p317 = scmp.lt.s32.totalorder %s20, 0
        %s318 = scalar_select %p317, %s20, 0
        %s319 = sadd.s32 %s318, %s316
        %s320 = smul.addr %s319, 4
        %s321 = scalar_lea.vmem %s3, %s320
        %s322 = smul.u32 16, %s19
        %s323 = smul.u32 3, %s21
        %s324 = smul.u32 48, %s21
        %p325 = scmp.lt.s32.totalorder %s324, 143
        %s326 = scalar_select %p325, %s324, 143
        %p327 = scmp.lt.s32.totalorder %s20, 0
        %s328 = scalar_select %p327, %s20, 0
        %s329 = sadd.s32 %s328, %s326
        %s330 = smul.addr %s329, 4
        %s331 = scalar_lea.vmem %s1, %s330
        %s332 = smul.u32 48, %s21
        %p333 = scmp.lt.s32.totalorder %s20, 0
        %s334 = scalar_select %p333, %s20, 0
        %s335 = scalar_lea.vmem %s2, %s334
        %s336 = smul.u32 16, %s19
        %p337 = scmp.lt.s32.totalorder %s336, 15
        %s338 = scalar_select %p337, %s336, 15
        %p339 = scmp.lt.s32.totalorder %s20, 0
        %s340 = scalar_select %p339, %s20, 0
        %s341 = sadd.s32 %s340, %s338
        %s342 = smul.addr %s341, 4
        %s343 = scalar_lea.vmem %s3, %s342
        %s344 = smul.u32 16, %s19
        %p346 = scmp.eq.s32.totalorder %s21, 0
        // Predicated region
        $region59: #{_lambda_.11} parent=53 // pred_check
          %p347 = pneg %p346
        $region60: #{_lambda_.11} parent=53 // pred_check_branch
          %349 = sbr.rel (%p347) target = $region62
        $region61: #{_lambda_.11} parent=53 // pred_region
          %350 = vst [vmem:[#allocation2] sm:$0xff] 0.0
          %351 = vst [vmem:[#allocation2 + $0x8] sm:$0xff] 0.0
          %352 = vst [vmem:[#allocation2 + $0x10] sm:$0xff] 0.0
          %353 = vst [vmem:[#allocation2 + $0x18] sm:$0xff] 0.0
          %354 = vst [vmem:[#allocation2 + $0x20] sm:$0xff] 0.0
          %355 = vst [vmem:[#allocation2 + $0x28] sm:$0xff] 0.0
          %356 = vst [vmem:[#allocation2 + $0x30] sm:$0xff] 0.0
          %357 = vst [vmem:[#allocation2 + $0x38] sm:$0xff] 0.0
          %358 = vst [vmem:[#allocation2 + $0x40] sm:$0xff] 0.0
          %359 = vst [vmem:[#allocation2 + $0x48] sm:$0xff] 0.0
          %360 = vst [vmem:[#allocation2 + $0x50] sm:$0xff] 0.0
          %361 = vst [vmem:[#allocation2 + $0x58] sm:$0xff] 0.0
          %362 = vst [vmem:[#allocation2 + $0x60] sm:$0xff] 0.0
          %363 = vst [vmem:[#allocation2 + $0x68] sm:$0xff] 0.0
          %364 = vst [vmem:[#allocation2 + $0x70] sm:$0xff] 0.0
          %365 = vst [vmem:[#allocation2 + $0x78] sm:$0xff] 0.0
        $region62: #{_lambda_.11} parent=53 // pred_fallthru
          _
        %v366 = vld [vmem:[#allocation2] sm:$0xff]
        %v367 = vld [vmem:[#allocation2 + $0x8] sm:$0xff]
        %v368 = vld [vmem:[#allocation2 + $0x10] sm:$0xff]
        %v369 = vld [vmem:[#allocation2 + $0x18] sm:$0xff]
        %v370 = vld [vmem:[#allocation2 + $0x20] sm:$0xff]
        %v371 = vld [vmem:[#allocation2 + $0x28] sm:$0xff]
        %v372 = vld [vmem:[#allocation2 + $0x30] sm:$0xff]
        %v373 = vld [vmem:[#allocation2 + $0x38] sm:$0xff]
        %v374 = vld [vmem:[#allocation2 + $0x40] sm:$0xff]
        %v375 = vld [vmem:[#allocation2 + $0x48] sm:$0xff]
        %v376 = vld [vmem:[#allocation2 + $0x50] sm:$0xff]
        %v377 = vld [vmem:[#allocation2 + $0x58] sm:$0xff]
        %v378 = vld [vmem:[#allocation2 + $0x60] sm:$0xff]
        %v379 = vld [vmem:[#allocation2 + $0x68] sm:$0xff]
        %v380 = vld [vmem:[#allocation2 + $0x70] sm:$0xff]
        %v381 = vld [vmem:[#allocation2 + $0x78] sm:$0xff]
        %v382 = vld [vmem:[%s287] sm:$0xff]
        %v383 = vld [vmem:[%s287 + $0x8] sm:$0xf]
        %v384 = vld [vmem:[%s287 + $0xc] sm:$0xff]
        %v385 = vld [vmem:[%s287 + $0x14] sm:$0xf]
        %v386 = vld [vmem:[%s287 + $0x18] sm:$0xff]
        %v387 = vld [vmem:[%s287 + $0x20] sm:$0xf]
        %v388 = vld [vmem:[%s287 + $0x24] sm:$0xff]
        %v389 = vld [vmem:[%s287 + $0x2c] sm:$0xf]
        %v390 = vld [vmem:[%s287 + $0x30] sm:$0xff]
        %v391 = vld [vmem:[%s287 + $0x38] sm:$0xf]
        %v392 = vld [vmem:[%s287 + $0x3c] sm:$0xff]
        %v393 = vld [vmem:[%s287 + $0x44] sm:$0xf]
        %v394 = vld [vmem:[%s287 + $0x48] sm:$0xff]
        %v395 = vld [vmem:[%s287 + $0x50] sm:$0xf]
        %v396 = vld [vmem:[%s287 + $0x54] sm:$0xff]
        %v397 = vld [vmem:[%s287 + $0x5c] sm:$0xf]
        %v398 = vld [vmem:[%s287 + $0x60] sm:$0xff]
        %v399 = vld [vmem:[%s287 + $0x68] sm:$0xf]
        %v400 = vld [vmem:[%s287 + $0x6c] sm:$0xff]
        %v401 = vld [vmem:[%s287 + $0x74] sm:$0xf]
        %v402 = vld [vmem:[%s287 + $0x78] sm:$0xff]
        %v403 = vld [vmem:[%s287 + $0x80] sm:$0xf]
        %v404 = vld [vmem:[%s287 + $0x84] sm:$0xff]
        %v405 = vld [vmem:[%s287 + $0x8c] sm:$0xf]
        %v406 = vld [vmem:[%s287 + $0x90] sm:$0xff]
        %v407 = vld [vmem:[%s287 + $0x98] sm:$0xf]
        %v408 = vld [vmem:[%s287 + $0x9c] sm:$0xff]
        %v409 = vld [vmem:[%s287 + $0xa4] sm:$0xf]
        %v410 = vld [vmem:[%s287 + $0xa8] sm:$0xff]
        %v411 = vld [vmem:[%s287 + $0xb0] sm:$0xf]
        %v412 = vld [vmem:[%s287 + $0xb4] sm:$0xff]
        %v413 = vld [vmem:[%s287 + $0xbc] sm:$0xf]
        %v414 = vld [vmem:[%s331] sm:$0xf]
        %v415 = vld [vmem:[%s331 + $0x4] sm:$0xf]
        %v416 = vld [vmem:[%s331 + $0x8] sm:$0xf]
        %v417 = vld [vmem:[%s331 + $0xc] sm:$0xf]
        %v418 = vld [vmem:[%s331 + $0x10] sm:$0xf]
        %v419 = vld [vmem:[%s331 + $0x14] sm:$0xf]
        %v420 = vld [vmem:[%s331 + $0x18] sm:$0xf]
        %v421 = vld [vmem:[%s331 + $0x1c] sm:$0xf]
        %v422 = vld [vmem:[%s331 + $0x20] sm:$0xf]
        %v423 = vld [vmem:[%s331 + $0x24] sm:$0xf]
        %v424 = vld [vmem:[%s331 + $0x28] sm:$0xf]
        %v425 = vld [vmem:[%s331 + $0x2c] sm:$0xf]
        %v426 = vld [vmem:[%s331 + $0x30] sm:$0xf]
        %v427 = vld [vmem:[%s331 + $0x34] sm:$0xf]
        %v428 = vld [vmem:[%s331 + $0x38] sm:$0xf]
        %v429 = vld [vmem:[%s331 + $0x3c] sm:$0xf]
        %v430 = vld [vmem:[%s331 + $0x40] sm:$0xf]
        %v431 = vld [vmem:[%s331 + $0x44] sm:$0xf]
        %v432 = vld [vmem:[%s331 + $0x48] sm:$0xf]
        %v433 = vld [vmem:[%s331 + $0x4c] sm:$0xf]
        %v434 = vld [vmem:[%s331 + $0x50] sm:$0xf]
        %v435 = vld [vmem:[%s331 + $0x54] sm:$0xf]
        %v436 = vld [vmem:[%s331 + $0x58] sm:$0xf]
        %v437 = vld [vmem:[%s331 + $0x5c] sm:$0xf]
        %v438 = vld [vmem:[%s331 + $0x60] sm:$0xf]
        %v439 = vld [vmem:[%s331 + $0x64] sm:$0xf]
        %v440 = vld [vmem:[%s331 + $0x68] sm:$0xf]
        %v441 = vld [vmem:[%s331 + $0x6c] sm:$0xf]
        %v442 = vld [vmem:[%s331 + $0x70] sm:$0xf]
        %v443 = vld [vmem:[%s331 + $0x74] sm:$0xf]
        %v444 = vld [vmem:[%s331 + $0x78] sm:$0xf]
        %v445 = vld [vmem:[%s331 + $0x7c] sm:$0xf]
        %v446 = vld [vmem:[%s331 + $0x80] sm:$0xf]
        %v447 = vld [vmem:[%s331 + $0x84] sm:$0xf]
        %v448 = vld [vmem:[%s331 + $0x88] sm:$0xf]
        %v449 = vld [vmem:[%s331 + $0x8c] sm:$0xf]
        %v450 = vld [vmem:[%s331 + $0x90] sm:$0xf]
        %v451 = vld [vmem:[%s331 + $0x94] sm:$0xf]
        %v452 = vld [vmem:[%s331 + $0x98] sm:$0xf]
        %v453 = vld [vmem:[%s331 + $0x9c] sm:$0xf]
        %v454 = vld [vmem:[%s331 + $0xa0] sm:$0xf]
        %v455 = vld [vmem:[%s331 + $0xa4] sm:$0xf]
        %v456 = vld [vmem:[%s331 + $0xa8] sm:$0xf]
        %v457 = vld [vmem:[%s331 + $0xac] sm:$0xf]
        %v458 = vld [vmem:[%s331 + $0xb0] sm:$0xf]
        %v459 = vld [vmem:[%s331 + $0xb4] sm:$0xf]
        %v460 = vld [vmem:[%s331 + $0xb8] sm:$0xf]
        %v461 = vld [vmem:[%s331 + $0xbc] sm:$0xf]
        %v494 = vunpack.c.l.b16 %v382
        %v495 = vunpack.c.h.b16 %v382
        %v496 = vunpack.c.l.b16 %v383
        %v497 = vunpack.c.l.b16 %v384
        %v498 = vunpack.c.h.b16 %v384
        %v499 = vunpack.c.l.b16 %v385
        %v500 = vunpack.c.l.b16 %v386
        %v501 = vunpack.c.h.b16 %v386
        %v502 = vunpack.c.l.b16 %v387
        %v503 = vunpack.c.l.b16 %v388
        %v504 = vunpack.c.h.b16 %v388
        %v505 = vunpack.c.l.b16 %v389
        %v506 = vunpack.c.l.b16 %v390
        %v507 = vunpack.c.h.b16 %v390
        %v508 = vunpack.c.l.b16 %v391
        %v509 = vunpack.c.l.b16 %v392
        %v510 = vunpack.c.h.b16 %v392
        %v511 = vunpack.c.l.b16 %v393
        %v512 = vunpack.c.l.b16 %v394
        %v513 = vunpack.c.h.b16 %v394
        %v514 = vunpack.c.l.b16 %v395
        %v515 = vunpack.c.l.b16 %v396
        %v516 = vunpack.c.h.b16 %v396
        %v517 = vunpack.c.l.b16 %v397
        %v518 = vunpack.c.l.b16 %v398
        %v519 = vunpack.c.h.b16 %v398
        %v520 = vunpack.c.l.b16 %v399
        %v521 = vunpack.c.l.b16 %v400
        %v522 = vunpack.c.h.b16 %v400
        %v523 = vunpack.c.l.b16 %v401
        %v524 = vunpack.c.l.b16 %v402
        %v525 = vunpack.c.h.b16 %v402
        %v526 = vunpack.c.l.b16 %v403
        %v527 = vunpack.c.l.b16 %v404
        %v528 = vunpack.c.h.b16 %v404
        %v529 = vunpack.c.l.b16 %v405
        %v530 = vunpack.c.l.b16 %v406
        %v531 = vunpack.c.h.b16 %v406
        %v532 = vunpack.c.l.b16 %v407
        %v533 = vunpack.c.l.b16 %v408
        %v534 = vunpack.c.h.b16 %v408
        %v535 = vunpack.c.l.b16 %v409
        %v536 = vunpack.c.l.b16 %v410
        %v537 = vunpack.c.h.b16 %v410
        %v538 = vunpack.c.l.b16 %v411
        %v539 = vunpack.c.l.b16 %v412
        %v540 = vunpack.c.h.b16 %v412
        %v541 = vunpack.c.l.b16 %v413
        %v542 = vpack.c.b16 %v497, %v494
        %v543 = vpack.c.b16 %v498, %v495
        %v544 = vpack.c.b16 %v499, %v496
        %v545 = vpack.c.b16 %v503, %v500
        %v546 = vpack.c.b16 %v504, %v501
        %v547 = vpack.c.b16 %v505, %v502
        %v548 = vpack.c.b16 %v509, %v506
        %v549 = vpack.c.b16 %v510, %v507
        %v550 = vpack.c.b16 %v511, %v508
        %v551 = vpack.c.b16 %v515, %v512
        %v552 = vpack.c.b16 %v516, %v513
        %v553 = vpack.c.b16 %v517, %v514
        %v554 = vpack.c.b16 %v521, %v518
        %v555 = vpack.c.b16 %v522, %v519
        %v556 = vpack.c.b16 %v523, %v520
        %v557 = vpack.c.b16 %v527, %v524
        %v558 = vpack.c.b16 %v528, %v525
        %v559 = vpack.c.b16 %v529, %v526
        %v560 = vpack.c.b16 %v533, %v530
        %v561 = vpack.c.b16 %v534, %v531
        %v562 = vpack.c.b16 %v535, %v532
        %v563 = vpack.c.b16 %v539, %v536
        %v564 = vpack.c.b16 %v540, %v537
        %v565 = vpack.c.b16 %v541, %v538
        %v638 = vunpack.c.l.b16 %v414
        %v639 = vunpack.c.l.b16 %v415
        %v640 = vunpack.c.l.b16 %v416
        %v641 = vunpack.c.l.b16 %v417
        %v642 = vunpack.c.l.b16 %v418
        %v643 = vunpack.c.l.b16 %v419
        %v644 = vunpack.c.l.b16 %v420
        %v645 = vunpack.c.l.b16 %v421
        %v646 = vunpack.c.l.b16 %v422
        %v647 = vunpack.c.l.b16 %v423
        %v648 = vunpack.c.l.b16 %v424
        %v649 = vunpack.c.l.b16 %v425
        %v650 = vunpack.c.l.b16 %v426
        %v651 = vunpack.c.l.b16 %v427
        %v652 = vunpack.c.l.b16 %v428
        %v653 = vunpack.c.l.b16 %v429
        %v654 = vunpack.c.l.b16 %v430
        %v655 = vunpack.c.l.b16 %v431
        %v656 = vunpack.c.l.b16 %v432
        %v657 = vunpack.c.l.b16 %v433
        %v658 = vunpack.c.l.b16 %v434
        %v659 = vunpack.c.l.b16 %v435
        %v660 = vunpack.c.l.b16 %v436
        %v661 = vunpack.c.l.b16 %v437
        %v662 = vunpack.c.l.b16 %v438
        %v663 = vunpack.c.l.b16 %v439
        %v664 = vunpack.c.l.b16 %v440
        %v665 = vunpack.c.l.b16 %v441
        %v666 = vunpack.c.l.b16 %v442
        %v667 = vunpack.c.l.b16 %v443
        %v668 = vunpack.c.l.b16 %v444
        %v669 = vunpack.c.l.b16 %v445
        %v670 = vunpack.c.l.b16 %v446
        %v671 = vunpack.c.l.b16 %v447
        %v672 = vunpack.c.l.b16 %v448
        %v673 = vunpack.c.l.b16 %v449
        %v674 = vunpack.c.l.b16 %v450
        %v675 = vunpack.c.l.b16 %v451
        %v676 = vunpack.c.l.b16 %v452
        %v677 = vunpack.c.l.b16 %v453
        %v678 = vunpack.c.l.b16 %v454
        %v679 = vunpack.c.l.b16 %v455
        %v680 = vunpack.c.l.b16 %v456
        %v681 = vunpack.c.l.b16 %v457
        %v682 = vunpack.c.l.b16 %v458
        %v683 = vunpack.c.l.b16 %v459
        %v684 = vunpack.c.l.b16 %v460
        %v685 = vunpack.c.l.b16 %v461
        %v686 = vpack.c.b16 %v639, %v638
        %v687 = vpack.c.b16 %v641, %v640
        %v688 = vpack.c.b16 %v643, %v642
        %v689 = vpack.c.b16 %v645, %v644
        %v690 = vpack.c.b16 %v647, %v646
        %v691 = vpack.c.b16 %v649, %v648
        %v692 = vpack.c.b16 %v651, %v650
        %v693 = vpack.c.b16 %v653, %v652
        %v694 = vpack.c.b16 %v655, %v654
        %v695 = vpack.c.b16 %v657, %v656
        %v696 = vpack.c.b16 %v659, %v658
        %v697 = vpack.c.b16 %v661, %v660
        %v698 = vpack.c.b16 %v663, %v662
        %v699 = vpack.c.b16 %v665, %v664
        %v700 = vpack.c.b16 %v667, %v666
        %v701 = vpack.c.b16 %v669, %v668
        %v702 = vpack.c.b16 %v671, %v670
        %v703 = vpack.c.b16 %v673, %v672
        %v704 = vpack.c.b16 %v675, %v674
        %v705 = vpack.c.b16 %v677, %v676
        %v706 = vpack.c.b16 %v679, %v678
        %v707 = vpack.c.b16 %v681, %v680
        %v708 = vpack.c.b16 %v683, %v682
        %v709 = vpack.c.b16 %v685, %v684
        %734 = vmatprep.subr.bf16.mxu0 0
        %735 = vmatpush1.bf16.msra.mxu0 %v693
        %736 = vmatprep.subr.bf16.mxu0 0
        %737 = vmatpush1.bf16.msra.mxu0 %v692
        %738 = vmatprep.subr.bf16.mxu0 0
        %739 = vmatpush1.bf16.msra.mxu0 %v691
        %740 = vmatprep.subr.bf16.mxu0 0
        %741 = vmatpush1.bf16.msra.mxu0 %v690
        %742 = vmatprep.subr.bf16.mxu0 0
        %743 = vmatpush1.bf16.msra.mxu0 %v689
        %744 = vmatprep.subr.bf16.mxu0 0
        %745 = vmatpush1.bf16.msra.mxu0 %v688
        %746 = vmatprep.subr.bf16.mxu0 0
        %747 = vmatpush1.bf16.msra.mxu0 %v687
        %748 = vmatprep.subr.bf16.mxu0 0
        %749 = vmatpush1.bf16.msra.mxu0 %v686
        %750 = vmatprep.subr.bf16.mxu0 0
        %751 = vmatpush2.bf16.msra.mxu0 %v701
        %752 = vmatprep.subr.bf16.mxu0 0
        %753 = vmatpush2.bf16.msra.mxu0 %v700
        %754 = vmatprep.subr.bf16.mxu0 0
        %755 = vmatpush2.bf16.msra.mxu0 %v699
        %756 = vmatprep.subr.bf16.mxu0 0
        %757 = vmatpush2.bf16.msra.mxu0 %v698
        %758 = vmatprep.subr.bf16.mxu0 0
        %759 = vmatpush2.bf16.msra.mxu0 %v697
        %760 = vmatprep.subr.bf16.mxu0 0
        %761 = vmatpush2.bf16.msra.mxu0 %v696
        %762 = vmatprep.subr.bf16.mxu0 0
        %763 = vmatpush2.bf16.msra.mxu0 %v695
        %764 = vmatprep.subr.bf16.mxu0 0
        %765 = vmatpush2.bf16.msra.mxu0 %v694
        %766 = vmatprep.mubr.bf16.mxu0 %v543
        %767 = vmatmul.mubr.bf16.gmra.mxu0 %v542
        %v768 = vpop.f32.mrf.mxu0
        %v769 = vadd.f32 0.0, %v768
        %v770 = vpop.f32.mrf.mxu0
        %v771 = vpop.f32.mrf.mxu0
        %v772 = vadd.f32 0.0, %v771
        %v773 = vpop.f32.mrf.mxu0
        %774 = vmatprep.mubr.bf16.mxu0 %v546
        %775 = vmatmul.mubr.bf16.gmra.mxu0 %v545
        %v776 = vpop.f32.mrf.mxu0
        %v777 = vadd.f32 0.0, %v776
        %v778 = vpop.f32.mrf.mxu0
        %v779 = vpop.f32.mrf.mxu0
        %v780 = vadd.f32 0.0, %v779
        %v781 = vpop.f32.mrf.mxu0
        %782 = vmatprep.mubr.bf16.mxu0 %v549
        %783 = vmatmul.mubr.bf16.gmra.mxu0 %v548
        %v784 = vpop.f32.mrf.mxu0
        %v785 = vadd.f32 0.0, %v784
        %v786 = vpop.f32.mrf.mxu0
        %v787 = vpop.f32.mrf.mxu0
        %v788 = vadd.f32 0.0, %v787
        %v789 = vpop.f32.mrf.mxu0
        %790 = vmatprep.mubr.bf16.mxu0 %v552
        %791 = vmatmul.mubr.bf16.gmra.mxu0 %v551
        %v792 = vpop.f32.mrf.mxu0
        %v793 = vadd.f32 0.0, %v792
        %v794 = vpop.f32.mrf.mxu0
        %v795 = vpop.f32.mrf.mxu0
        %v796 = vadd.f32 0.0, %v795
        %v797 = vpop.f32.mrf.mxu0
        %798 = vmatprep.mubr.bf16.mxu0 %v555
        %799 = vmatmul.mubr.bf16.gmra.mxu0 %v554
        %v800 = vpop.f32.mrf.mxu0
        %v801 = vadd.f32 0.0, %v800
        %v802 = vpop.f32.mrf.mxu0
        %v803 = vpop.f32.mrf.mxu0
        %v804 = vadd.f32 0.0, %v803
        %v805 = vpop.f32.mrf.mxu0
        %806 = vmatprep.mubr.bf16.mxu0 %v558
        %807 = vmatmul.mubr.bf16.gmra.mxu0 %v557
        %v808 = vpop.f32.mrf.mxu0
        %v809 = vadd.f32 0.0, %v808
        %v810 = vpop.f32.mrf.mxu0
        %v811 = vpop.f32.mrf.mxu0
        %v812 = vadd.f32 0.0, %v811
        %v813 = vpop.f32.mrf.mxu0
        %814 = vmatprep.mubr.bf16.mxu0 %v561
        %815 = vmatmul.mubr.bf16.gmra.mxu0 %v560
        %v816 = vpop.f32.mrf.mxu0
        %v817 = vadd.f32 0.0, %v816
        %v818 = vpop.f32.mrf.mxu0
        %v819 = vpop.f32.mrf.mxu0
        %v820 = vadd.f32 0.0, %v819
        %v821 = vpop.f32.mrf.mxu0
        %822 = vmatprep.mubr.bf16.mxu0 %v564
        %823 = vmatmul.mubr.bf16.gmra.mxu0 %v563
        %v824 = vpop.f32.mrf.mxu0
        %v825 = vadd.f32 0.0, %v824
        %v826 = vpop.f32.mrf.mxu0
        %v827 = vpop.f32.mrf.mxu0
        %v828 = vadd.f32 0.0, %v827
        %v829 = vpop.f32.mrf.mxu0
        %830 = vdwg.mxu0
        %831 = vmatprep.subr.bf16.mxu0 0
        %832 = vmatpush1.bf16.msra.mxu0 %v709
        %833 = vmatprep.subr.bf16.mxu0 0
        %834 = vmatpush1.bf16.msra.mxu0 %v708
        %835 = vmatprep.subr.bf16.mxu0 0
        %836 = vmatpush1.bf16.msra.mxu0 %v707
        %837 = vmatprep.subr.bf16.mxu0 0
        %838 = vmatpush1.bf16.msra.mxu0 %v706
        %839 = vmatprep.subr.bf16.mxu0 0
        %840 = vmatpush1.bf16.msra.mxu0 %v705
        %841 = vmatprep.subr.bf16.mxu0 0
        %842 = vmatpush1.bf16.msra.mxu0 %v704
        %843 = vmatprep.subr.bf16.mxu0 0
        %844 = vmatpush1.bf16.msra.mxu0 %v703
        %845 = vmatprep.subr.bf16.mxu0 0
        %846 = vmatpush1.bf16.msra.mxu0 %v702
        %847 = vmatprep.subr.bf16.mxu0 0
        %848 = vmatpush2.bf16.msra.mxu0 0
        %849 = vmatprep.subr.bf16.mxu0 0
        %850 = vmatpush2.bf16.msra.mxu0 0
        %851 = vmatprep.subr.bf16.mxu0 0
        %852 = vmatpush2.bf16.msra.mxu0 0
        %853 = vmatprep.subr.bf16.mxu0 0
        %854 = vmatpush2.bf16.msra.mxu0 0
        %855 = vmatprep.subr.bf16.mxu0 0
        %856 = vmatpush2.bf16.msra.mxu0 0
        %857 = vmatprep.subr.bf16.mxu0 0
        %858 = vmatpush2.bf16.msra.mxu0 0
        %859 = vmatprep.subr.bf16.mxu0 0
        %860 = vmatpush2.bf16.msra.mxu0 0
        %861 = vmatprep.subr.bf16.mxu0 0
        %862 = vmatpush2.bf16.msra.mxu0 0
        %863 = vmatprep.mubr.bf16.mxu0 0
        %864 = vmatmul.mubr.bf16.gmra.mxu0 %v544
        %v865 = vpop.f32.mrf.mxu0
        %v866 = vadd.f32 %v769, %v865
        %v867 = vpop.f32.mrf.mxu0
        %v868 = vpop.f32.mrf.mxu0
        %v869 = vadd.f32 %v772, %v868
        %v870 = vpop.f32.mrf.mxu0
        %871 = vmatprep.mubr.bf16.mxu0 0
        %872 = vmatmul.mubr.bf16.gmra.mxu0 %v547
        %v873 = vpop.f32.mrf.mxu0
        %v874 = vadd.f32 %v777, %v873
        %v875 = vpop.f32.mrf.mxu0
        %v876 = vpop.f32.mrf.mxu0
        %v877 = vadd.f32 %v780, %v876
        %v878 = vpop.f32.mrf.mxu0
        %879 = vmatprep.mubr.bf16.mxu0 0
        %880 = vmatmul.mubr.bf16.gmra.mxu0 %v550
        %v881 = vpop.f32.mrf.mxu0
        %v882 = vadd.f32 %v785, %v881
        %v883 = vpop.f32.mrf.mxu0
        %v884 = vpop.f32.mrf.mxu0
        %v885 = vadd.f32 %v788, %v884
        %v886 = vpop.f32.mrf.mxu0
        %887 = vmatprep.mubr.bf16.mxu0 0
        %888 = vmatmul.mubr.bf16.gmra.mxu0 %v553
        %v889 = vpop.f32.mrf.mxu0
        %v890 = vadd.f32 %v793, %v889
        %v891 = vpop.f32.mrf.mxu0
        %v892 = vpop.f32.mrf.mxu0
        %v893 = vadd.f32 %v796, %v892
        %v894 = vpop.f32.mrf.mxu0
        %895 = vmatprep.mubr.bf16.mxu0 0
        %896 = vmatmul.mubr.bf16.gmra.mxu0 %v556
        %v897 = vpop.f32.mrf.mxu0
        %v898 = vadd.f32 %v801, %v897
        %v899 = vpop.f32.mrf.mxu0
        %v900 = vpop.f32.mrf.mxu0
        %v901 = vadd.f32 %v804, %v900
        %v902 = vpop.f32.mrf.mxu0
        %903 = vmatprep.mubr.bf16.mxu0 0
        %904 = vmatmul.mubr.bf16.gmra.mxu0 %v559
        %v905 = vpop.f32.mrf.mxu0
        %v906 = vadd.f32 %v809, %v905
        %v907 = vpop.f32.mrf.mxu0
        %v908 = vpop.f32.mrf.mxu0
        %v909 = vadd.f32 %v812, %v908
        %v910 = vpop.f32.mrf.mxu0
        %911 = vmatprep.mubr.bf16.mxu0 0
        %912 = vmatmul.mubr.bf16.gmra.mxu0 %v562
        %v913 = vpop.f32.mrf.mxu0
        %v914 = vadd.f32 %v817, %v913
        %v915 = vpop.f32.mrf.mxu0
        %v916 = vpop.f32.mrf.mxu0
        %v917 = vadd.f32 %v820, %v916
        %v918 = vpop.f32.mrf.mxu0
        %919 = vmatprep.mubr.bf16.mxu0 0
        %920 = vmatmul.mubr.bf16.gmra.mxu0 %v565
        %v921 = vpop.f32.mrf.mxu0
        %v922 = vadd.f32 %v825, %v921
        %v923 = vpop.f32.mrf.mxu0
        %v924 = vpop.f32.mrf.mxu0
        %v925 = vadd.f32 %v828, %v924
        %v926 = vpop.f32.mrf.mxu0
        %927 = vdwg.mxu0
        %v928 = vadd.f32 %v366, %v866
        %v929 = vadd.f32 %v367, %v869
        %v930 = vadd.f32 %v368, %v874
        %v931 = vadd.f32 %v369, %v877
        %v932 = vadd.f32 %v370, %v882
        %v933 = vadd.f32 %v371, %v885
        %v934 = vadd.f32 %v372, %v890
        %v935 = vadd.f32 %v373, %v893
        %v936 = vadd.f32 %v374, %v898
        %v937 = vadd.f32 %v375, %v901
        %v938 = vadd.f32 %v376, %v906
        %v939 = vadd.f32 %v377, %v909
        %v940 = vadd.f32 %v378, %v914
        %v941 = vadd.f32 %v379, %v917
        %v942 = vadd.f32 %v380, %v922
        %v943 = vadd.f32 %v381, %v925
        %944 = vst [vmem:[#allocation2] sm:$0xff] %v928
        %945 = vst [vmem:[#allocation2 + $0x8] sm:$0xff] %v929
        %946 = vst [vmem:[#allocation2 + $0x10] sm:$0xff] %v930
        %947 = vst [vmem:[#allocation2 + $0x18] sm:$0xff] %v931
        %948 = vst [vmem:[#allocation2 + $0x20] sm:$0xff] %v932
        %949 = vst [vmem:[#allocation2 + $0x28] sm:$0xff] %v933
        %950 = vst [vmem:[#allocation2 + $0x30] sm:$0xff] %v934
        %951 = vst [vmem:[#allocation2 + $0x38] sm:$0xff] %v935
        %952 = vst [vmem:[#allocation2 + $0x40] sm:$0xff] %v936
        %953 = vst [vmem:[#allocation2 + $0x48] sm:$0xff] %v937
        %954 = vst [vmem:[#allocation2 + $0x50] sm:$0xff] %v938
        %955 = vst [vmem:[#allocation2 + $0x58] sm:$0xff] %v939
        %956 = vst [vmem:[#allocation2 + $0x60] sm:$0xff] %v940
        %957 = vst [vmem:[#allocation2 + $0x68] sm:$0xff] %v941
        %958 = vst [vmem:[#allocation2 + $0x70] sm:$0xff] %v942
        %959 = vst [vmem:[#allocation2 + $0x78] sm:$0xff] %v943
        %p960 = scmp.eq.s32.totalorder %s21, 2
        // Predicated region
        $region63: #{_lambda_.11} parent=53 // pred_check
          %p961 = pneg %p960
        $region64: #{_lambda_.11} parent=53 // pred_check_branch
          %963 = sbr.rel (%p961) target = $region66
        $region65: #{_lambda_.11} parent=53 // pred_region
          %v964 = vld [vmem:[#allocation2] sm:$0xff]
          %v965 = vld [vmem:[#allocation2 + $0x8] sm:$0xff]
          %v966 = vld [vmem:[#allocation2 + $0x10] sm:$0xff]
          %v967 = vld [vmem:[#allocation2 + $0x18] sm:$0xff]
          %v968 = vld [vmem:[#allocation2 + $0x20] sm:$0xff]
          %v969 = vld [vmem:[#allocation2 + $0x28] sm:$0xff]
          %v970 = vld [vmem:[#allocation2 + $0x30] sm:$0xff]
          %v971 = vld [vmem:[#allocation2 + $0x38] sm:$0xff]
          %v972 = vld [vmem:[#allocation2 + $0x40] sm:$0xff]
          %v973 = vld [vmem:[#allocation2 + $0x48] sm:$0xff]
          %v974 = vld [vmem:[#allocation2 + $0x50] sm:$0xff]
          %v975 = vld [vmem:[#allocation2 + $0x58] sm:$0xff]
          %v976 = vld [vmem:[#allocation2 + $0x60] sm:$0xff]
          %v977 = vld [vmem:[#allocation2 + $0x68] sm:$0xff]
          %v978 = vld [vmem:[#allocation2 + $0x70] sm:$0xff]
          %v979 = vld [vmem:[#allocation2 + $0x78] sm:$0xff]
          %v980 = vld [vmem:[%s335] sm:$0x1]
          %v982 = vlaneseq
          %v983 = vshrl.u32 %v982, 7
          %v984 = vsub.s32 0, %v983
          %v985 = vrot.slane %v980, %v984
          %v987 = vadd.f32 %v964, %v985
          %v988 = vadd.f32 %v965, %v985
          %v989 = vadd.f32 %v966, %v985
          %v990 = vadd.f32 %v967, %v985
          %v991 = vadd.f32 %v968, %v985
          %v992 = vadd.f32 %v969, %v985
          %v993 = vadd.f32 %v970, %v985
          %v994 = vadd.f32 %v971, %v985
          %v995 = vadd.f32 %v972, %v985
          %v996 = vadd.f32 %v973, %v985
          %v997 = vadd.f32 %v974, %v985
          %v998 = vadd.f32 %v975, %v985
          %v999 = vadd.f32 %v976, %v985
          %v1000 = vadd.f32 %v977, %v985
          %v1001 = vadd.f32 %v978, %v985
          %v1002 = vadd.f32 %v979, %v985
          %v1003 = vmax.f32 %v987, 0.0
          %v1004 = vmax.f32 %v988, 0.0
          %v1005 = vmax.f32 %v989, 0.0
          %v1006 = vmax.f32 %v990, 0.0
          %v1007 = vmax.f32 %v991, 0.0
          %v1008 = vmax.f32 %v992, 0.0
          %v1009 = vmax.f32 %v993, 0.0
          %v1010 = vmax.f32 %v994, 0.0
          %v1011 = vmax.f32 %v995, 0.0
          %v1012 = vmax.f32 %v996, 0.0
          %v1013 = vmax.f32 %v997, 0.0
          %v1014 = vmax.f32 %v998, 0.0
          %v1015 = vmax.f32 %v999, 0.0
          %v1016 = vmax.f32 %v1000, 0.0
          %v1017 = vmax.f32 %v1001, 0.0
          %v1018 = vmax.f32 %v1002, 0.0
          %v1019 = vpack.c.bf16 %v1004, %v1003
          %v1020 = vpack.c.bf16 %v1006, %v1005
          %v1021 = vpack.c.bf16 %v1008, %v1007
          %v1022 = vpack.c.bf16 %v1010, %v1009
          %v1023 = vpack.c.bf16 %v1012, %v1011
          %v1024 = vpack.c.bf16 %v1014, %v1013
          %v1025 = vpack.c.bf16 %v1016, %v1015
          %v1026 = vpack.c.bf16 %v1018, %v1017
          %v1035 = vunpack.c.l.b16 %v1019
          %v1036 = vunpack.c.h.b16 %v1019
          %v1037 = vunpack.c.l.b16 %v1020
          %v1038 = vunpack.c.h.b16 %v1020
          %v1039 = vunpack.c.l.b16 %v1021
          %v1040 = vunpack.c.h.b16 %v1021
          %v1041 = vunpack.c.l.b16 %v1022
          %v1042 = vunpack.c.h.b16 %v1022
          %v1043 = vunpack.c.l.b16 %v1023
          %v1044 = vunpack.c.h.b16 %v1023
          %v1045 = vunpack.c.l.b16 %v1024
          %v1046 = vunpack.c.h.b16 %v1024
          %v1047 = vunpack.c.l.b16 %v1025
          %v1048 = vunpack.c.h.b16 %v1025
          %v1049 = vunpack.c.l.b16 %v1026
          %v1050 = vunpack.c.h.b16 %v1026
          %v1051 = vpack.c.b16 %v1035, %v1035
          %v1052 = vpack.c.b16 %v1036, %v1036
          %v1053 = vpack.c.b16 %v1037, %v1037
          %v1054 = vpack.c.b16 %v1038, %v1038
          %v1055 = vpack.c.b16 %v1039, %v1039
          %v1056 = vpack.c.b16 %v1040, %v1040
          %v1057 = vpack.c.b16 %v1041, %v1041
          %v1058 = vpack.c.b16 %v1042, %v1042
          %v1059 = vpack.c.b16 %v1043, %v1043
          %v1060 = vpack.c.b16 %v1044, %v1044
          %v1061 = vpack.c.b16 %v1045, %v1045
          %v1062 = vpack.c.b16 %v1046, %v1046
          %v1063 = vpack.c.b16 %v1047, %v1047
          %v1064 = vpack.c.b16 %v1048, %v1048
          %v1065 = vpack.c.b16 %v1049, %v1049
          %v1066 = vpack.c.b16 %v1050, %v1050
          %1083 = vst [vmem:[%s343] sm:$0xf] %v1051
          %1084 = vst [vmem:[%s343 + $0x4] sm:$0xf] %v1052
          %1085 = vst [vmem:[%s343 + $0x8] sm:$0xf] %v1053
          %1086 = vst [vmem:[%s343 + $0xc] sm:$0xf] %v1054
          %1087 = vst [vmem:[%s343 + $0x10] sm:$0xf] %v1055
          %1088 = vst [vmem:[%s343 + $0x14] sm:$0xf] %v1056
          %1089 = vst [vmem:[%s343 + $0x18] sm:$0xf] %v1057
          %1090 = vst [vmem:[%s343 + $0x1c] sm:$0xf] %v1058
          %1091 = vst [vmem:[%s343 + $0x20] sm:$0xf] %v1059
          %1092 = vst [vmem:[%s343 + $0x24] sm:$0xf] %v1060
          %1093 = vst [vmem:[%s343 + $0x28] sm:$0xf] %v1061
          %1094 = vst [vmem:[%s343 + $0x2c] sm:$0xf] %v1062
          %1095 = vst [vmem:[%s343 + $0x30] sm:$0xf] %v1063
          %1096 = vst [vmem:[%s343 + $0x34] sm:$0xf] %v1064
          %1097 = vst [vmem:[%s343 + $0x38] sm:$0xf] %v1065
          %1098 = vst [vmem:[%s343 + $0x3c] sm:$0xf] %v1066
        $region66: #{_lambda_.11} parent=53 // pred_fallthru
          _
        %s1099 = smul.u32 16, %s19
        %p1100 = scmp.lt.s32.totalorder %s1099, 15
        %s1101 = scalar_select %p1100, %s1099, 15
        %p1102 = scmp.lt.s32.totalorder %s20, 0
        %s1103 = scalar_select %p1102, %s20, 0
        %s1104 = sadd.s32 %s1103, %s1101
        %s1105 = smul.addr %s1104, 4
        %s1106 = scalar_lea.vmem %s3, %s1105
        // Predicated region
        $region67: #{_lambda_.11} parent=53 // pred_check
          %p1107 = pneg %p135
        $region68: #{_lambda_.11} parent=53 // pred_check_branch
          %1109 = sbr.rel (%p1107) target = $region70
        $region69: #{_lambda_.11} parent=53 // pred_region
          %s1110 = smul.u32 16, %s19
        $region70: #{_lambda_.11} parent=53 // pred_fallthru
          _
        // Predicated region
        $region71: #{_lambda_.11} parent=53 // pred_check
          %p1111 = pneg %p135
        $region72: #{_lambda_.11} parent=53 // pred_check_branch
          %1113 = sbr.rel (%p1111) target = $region74
        $region73: #{_lambda_.11} parent=53 // pred_region
          %s1114 = smul.u32 16, %s19
          %p1115 = scmp.lt.s32.totalorder %s1114, 15
          %s1116 = scalar_select %p1115, %s1114, 15
          %p1117 = scmp.lt.s32.totalorder %s20, 0
          %s1118 = scalar_select %p1117, %s20, 0
          %s1119 = sadd.s32 %s1118, %s1116
          %s1120 = smul.addr %s1119, 4
          %s1121 = scalar_lea.vmem %s3, %s1120
        $region74: #{_lambda_.11} parent=53 // pred_fallthru
          _
      $region54: #{_lambda_.11} parent=5 // pred_fallthru
        _
      %p1122 = scmp.le.s32.totalorder 2, %s9
      // Predicated region
      $region75: #{_lambda_.11} parent=5 // pred_check
        %p1123 = pneg %p1122
      $region76: #{_lambda_.11} parent=5 // pred_check_branch
        %1125 = sbr.rel (%p1123) target = $region78
      $region77: #{_lambda_.11} parent=5 // pred_region
        %s1126 = ssub.s32 %s9, 2
      $region78: #{_lambda_.11} parent=5 // pred_fallthru
        _
    $region6: #{_lambda_.11} parent=1 // loop_footer
      %s13 = sadd.s32 1, %s9
    $region7: #{_lambda_.11} parent=1 // loop_footer_branch
      %8 = sbr.rel target = $region3
    $region8: #{_lambda_.11} parent=1 // loop_exit
      _

// kernel: _lambda_.13
$region0: #{_lambda_.13}
  #allocation0 [shape = 'u32[]', space=smem, size = 0x4, offset = 0x4, fixed_abs, tag = 'smem constant byte address 0x4 - core index']
  #allocation1 [shape = 'u32[144,128]{1,0:T(1,128)}', space=vmem, size = 0x12000, scoped, tag = 'internal scratch']
  #allocation2 [shape = 'f32[128,128]{1,0:T(8,128)}', space=vmem, size = 0x10000, scoped, tag = 'scratch operand']
  %s0 = inlined_call_operand.vmem [shape: bf16[128,128], index: 0, kind: input, shape index: {}]
  %s1 = inlined_call_operand.vmem [shape: bf16[128,128], index: 1, kind: input, shape index: {}]
  %s2 = inlined_call_operand.vmem [shape: f32[1,128], index: 2, kind: input, shape index: {}]
  %s3 = inlined_call_operand.vmem [shape: bf16[128,128], index: 3, kind: output, shape index: {}]
  %s4 = sld [smem:[#allocation0]]
  $region30: #{_lambda_.13} parent=0
    _
  %s6 = ssub.s32 1, %s4
  %s7 = scalar_select 0, %s6, %s4
  // Predicated region
  $region2: #{_lambda_.13} parent=0 // pred_check
    _
  $region3: #{_lambda_.13} parent=0 // pred_check_branch
    %9 = sbr.rel (0) target = $region5
  $region4: #{_lambda_.13} parent=0 // pred_region
    _
  $region5: #{_lambda_.13} parent=0 // pred_fallthru
    _
  // Predicated region
  $region6: #{_lambda_.13} parent=0 // pred_check
    _
  $region7: #{_lambda_.13} parent=0 // pred_check_branch
    %11 = sbr.rel (0) target = $region9
  $region8: #{_lambda_.13} parent=0 // pred_region
    _
  $region9: #{_lambda_.13} parent=0 // pred_fallthru
    _
  // Predicated region
  $region10: #{_lambda_.13} parent=0 // pred_check
    _
  $region11: #{_lambda_.13} parent=0 // pred_check_branch
    %13 = sbr.rel (0) target = $region13
  $region12: #{_lambda_.13} parent=0 // pred_region
    _
  $region13: #{_lambda_.13} parent=0 // pred_fallthru
    _
  %p15 = scmp.eq.s32.totalorder 0, 0
  // Predicated region
  $region14: #{_lambda_.13} parent=0 // pred_check
    %p16 = pneg %p15
  $region15: #{_lambda_.13} parent=0 // pred_check_branch
    %18 = sbr.rel (%p16) target = $region17
  $region16: #{_lambda_.13} parent=0 // pred_region
    %19 = vst [vmem:[#allocation2] sm:$0xff] 0.0
    %20 = vst [vmem:[#allocation2 + $0x8] sm:$0xff] 0.0
    %21 = vst [vmem:[#allocation2 + $0x10] sm:$0xff] 0.0
    %22 = vst [vmem:[#allocation2 + $0x18] sm:$0xff] 0.0
    %23 = vst [vmem:[#allocation2 + $0x20] sm:$0xff] 0.0
    %24 = vst [vmem:[#allocation2 + $0x28] sm:$0xff] 0.0
    %25 = vst [vmem:[#allocation2 + $0x30] sm:$0xff] 0.0
    %26 = vst [vmem:[#allocation2 + $0x38] sm:$0xff] 0.0
    %27 = vst [vmem:[#allocation2 + $0x40] sm:$0xff] 0.0
    %28 = vst [vmem:[#allocation2 + $0x48] sm:$0xff] 0.0
    %29 = vst [vmem:[#allocation2 + $0x50] sm:$0xff] 0.0
    %30 = vst [vmem:[#allocation2 + $0x58] sm:$0xff] 0.0
    %31 = vst [vmem:[#allocation2 + $0x60] sm:$0xff] 0.0
    %32 = vst [vmem:[#allocation2 + $0x68] sm:$0xff] 0.0
    %33 = vst [vmem:[#allocation2 + $0x70] sm:$0xff] 0.0
    %34 = vst [vmem:[#allocation2 + $0x78] sm:$0xff] 0.0
  $region17: #{_lambda_.13} parent=0 // pred_fallthru
    _
  %v35 = vld [vmem:[#allocation2] sm:$0xff]
  %v36 = vld [vmem:[#allocation2 + $0x8] sm:$0xff]
  %v37 = vld [vmem:[#allocation2 + $0x10] sm:$0xff]
  %v38 = vld [vmem:[#allocation2 + $0x18] sm:$0xff]
  %v39 = vld [vmem:[#allocation2 + $0x20] sm:$0xff]
  %v40 = vld [vmem:[#allocation2 + $0x28] sm:$0xff]
  %v41 = vld [vmem:[#allocation2 + $0x30] sm:$0xff]
  %v42 = vld [vmem:[#allocation2 + $0x38] sm:$0xff]
  %v43 = vld [vmem:[#allocation2 + $0x40] sm:$0xff]
  %v44 = vld [vmem:[#allocation2 + $0x48] sm:$0xff]
  %v45 = vld [vmem:[#allocation2 + $0x50] sm:$0xff]
  %v46 = vld [vmem:[#allocation2 + $0x58] sm:$0xff]
  %v47 = vld [vmem:[#allocation2 + $0x60] sm:$0xff]
  %v48 = vld [vmem:[#allocation2 + $0x68] sm:$0xff]
  %v49 = vld [vmem:[#allocation2 + $0x70] sm:$0xff]
  %v50 = vld [vmem:[#allocation2 + $0x78] sm:$0xff]
  %v51 = vld [vmem:[%s0] sm:$0xf]
  %v52 = vld [vmem:[%s0 + $0x4] sm:$0xf]
  %v53 = vld [vmem:[%s0 + $0x8] sm:$0xf]
  %v54 = vld [vmem:[%s0 + $0xc] sm:$0xf]
  %v55 = vld [vmem:[%s0 + $0x10] sm:$0xf]
  %v56 = vld [vmem:[%s0 + $0x14] sm:$0xf]
  %v57 = vld [vmem:[%s0 + $0x18] sm:$0xf]
  %v58 = vld [vmem:[%s0 + $0x1c] sm:$0xf]
  %v59 = vld [vmem:[%s0 + $0x20] sm:$0xf]
  %v60 = vld [vmem:[%s0 + $0x24] sm:$0xf]
  %v61 = vld [vmem:[%s0 + $0x28] sm:$0xf]
  %v62 = vld [vmem:[%s0 + $0x2c] sm:$0xf]
  %v63 = vld [vmem:[%s0 + $0x30] sm:$0xf]
  %v64 = vld [vmem:[%s0 + $0x34] sm:$0xf]
  %v65 = vld [vmem:[%s0 + $0x38] sm:$0xf]
  %v66 = vld [vmem:[%s0 + $0x3c] sm:$0xf]
  %v67 = vld [vmem:[%s1] sm:$0xf]
  %v68 = vld [vmem:[%s1 + $0x4] sm:$0xf]
  %v69 = vld [vmem:[%s1 + $0x8] sm:$0xf]
  %v70 = vld [vmem:[%s1 + $0xc] sm:$0xf]
  %v71 = vld [vmem:[%s1 + $0x10] sm:$0xf]
  %v72 = vld [vmem:[%s1 + $0x14] sm:$0xf]
  %v73 = vld [vmem:[%s1 + $0x18] sm:$0xf]
  %v74 = vld [vmem:[%s1 + $0x1c] sm:$0xf]
  %v75 = vld [vmem:[%s1 + $0x20] sm:$0xf]
  %v76 = vld [vmem:[%s1 + $0x24] sm:$0xf]
  %v77 = vld [vmem:[%s1 + $0x28] sm:$0xf]
  %v78 = vld [vmem:[%s1 + $0x2c] sm:$0xf]
  %v79 = vld [vmem:[%s1 + $0x30] sm:$0xf]
  %v80 = vld [vmem:[%s1 + $0x34] sm:$0xf]
  %v81 = vld [vmem:[%s1 + $0x38] sm:$0xf]
  %v82 = vld [vmem:[%s1 + $0x3c] sm:$0xf]
  %v99 = vunpack.c.l.b16 %v51
  %v100 = vunpack.c.l.b16 %v52
  %v101 = vunpack.c.l.b16 %v53
  %v102 = vunpack.c.l.b16 %v54
  %v103 = vunpack.c.l.b16 %v55
  %v104 = vunpack.c.l.b16 %v56
  %v105 = vunpack.c.l.b16 %v57
  %v106 = vunpack.c.l.b16 %v58
  %v107 = vunpack.c.l.b16 %v59
  %v108 = vunpack.c.l.b16 %v60
  %v109 = vunpack.c.l.b16 %v61
  %v110 = vunpack.c.l.b16 %v62
  %v111 = vunpack.c.l.b16 %v63
  %v112 = vunpack.c.l.b16 %v64
  %v113 = vunpack.c.l.b16 %v65
  %v114 = vunpack.c.l.b16 %v66
  %v115 = vpack.c.b16 %v100, %v99
  %v116 = vpack.c.b16 %v102, %v101
  %v117 = vpack.c.b16 %v104, %v103
  %v118 = vpack.c.b16 %v106, %v105
  %v119 = vpack.c.b16 %v108, %v107
  %v120 = vpack.c.b16 %v110, %v109
  %v121 = vpack.c.b16 %v112, %v111
  %v122 = vpack.c.b16 %v114, %v113
  %v147 = vunpack.c.l.b16 %v67
  %v148 = vunpack.c.l.b16 %v68
  %v149 = vunpack.c.l.b16 %v69
  %v150 = vunpack.c.l.b16 %v70
  %v151 = vunpack.c.l.b16 %v71
  %v152 = vunpack.c.l.b16 %v72
  %v153 = vunpack.c.l.b16 %v73
  %v154 = vunpack.c.l.b16 %v74
  %v155 = vunpack.c.l.b16 %v75
  %v156 = vunpack.c.l.b16 %v76
  %v157 = vunpack.c.l.b16 %v77
  %v158 = vunpack.c.l.b16 %v78
  %v159 = vunpack.c.l.b16 %v79
  %v160 = vunpack.c.l.b16 %v80
  %v161 = vunpack.c.l.b16 %v81
  %v162 = vunpack.c.l.b16 %v82
  %v163 = vpack.c.b16 %v148, %v147
  %v164 = vpack.c.b16 %v150, %v149
  %v165 = vpack.c.b16 %v152, %v151
  %v166 = vpack.c.b16 %v154, %v153
  %v167 = vpack.c.b16 %v156, %v155
  %v168 = vpack.c.b16 %v158, %v157
  %v169 = vpack.c.b16 %v160, %v159
  %v170 = vpack.c.b16 %v162, %v161
  %179 = vmatprep.subr.bf16.mxu0 0
  %180 = vmatpush1.bf16.msra.mxu0 %v170
  %181 = vmatprep.subr.bf16.mxu0 0
  %182 = vmatpush1.bf16.msra.mxu0 %v169
  %183 = vmatprep.subr.bf16.mxu0 0
  %184 = vmatpush1.bf16.msra.mxu0 %v168
  %185 = vmatprep.subr.bf16.mxu0 0
  %186 = vmatpush1.bf16.msra.mxu0 %v167
  %187 = vmatprep.subr.bf16.mxu0 0
  %188 = vmatpush1.bf16.msra.mxu0 %v166
  %189 = vmatprep.subr.bf16.mxu0 0
  %190 = vmatpush1.bf16.msra.mxu0 %v165
  %191 = vmatprep.subr.bf16.mxu0 0
  %192 = vmatpush1.bf16.msra.mxu0 %v164
  %193 = vmatprep.subr.bf16.mxu0 0
  %194 = vmatpush1.bf16.msra.mxu0 %v163
  %195 = vmatprep.subr.bf16.mxu0 0
  %196 = vmatpush2.bf16.msra.mxu0 0
  %197 = vmatprep.subr.bf16.mxu0 0
  %198 = vmatpush2.bf16.msra.mxu0 0
  %199 = vmatprep.subr.bf16.mxu0 0
  %200 = vmatpush2.bf16.msra.mxu0 0
  %201 = vmatprep.subr.bf16.mxu0 0
  %202 = vmatpush2.bf16.msra.mxu0 0
  %203 = vmatprep.subr.bf16.mxu0 0
  %204 = vmatpush2.bf16.msra.mxu0 0
  %205 = vmatprep.subr.bf16.mxu0 0
  %206 = vmatpush2.bf16.msra.mxu0 0
  %207 = vmatprep.subr.bf16.mxu0 0
  %208 = vmatpush2.bf16.msra.mxu0 0
  %209 = vmatprep.subr.bf16.mxu0 0
  %210 = vmatpush2.bf16.msra.mxu0 0
  %211 = vmatprep.mubr.bf16.mxu0 0
  %212 = vmatmul.mubr.bf16.gmra.mxu0 %v115
  %v213 = vpop.f32.mrf.mxu0
  %v214 = vadd.f32 0.0, %v213
  %v215 = vpop.f32.mrf.mxu0
  %v216 = vpop.f32.mrf.mxu0
  %v217 = vadd.f32 0.0, %v216
  %v218 = vpop.f32.mrf.mxu0
  %219 = vmatprep.mubr.bf16.mxu0 0
  %220 = vmatmul.mubr.bf16.gmra.mxu0 %v116
  %v221 = vpop.f32.mrf.mxu0
  %v222 = vadd.f32 0.0, %v221
  %v223 = vpop.f32.mrf.mxu0
  %v224 = vpop.f32.mrf.mxu0
  %v225 = vadd.f32 0.0, %v224
  %v226 = vpop.f32.mrf.mxu0
  %227 = vmatprep.mubr.bf16.mxu0 0
  %228 = vmatmul.mubr.bf16.gmra.mxu0 %v117
  %v229 = vpop.f32.mrf.mxu0
  %v230 = vadd.f32 0.0, %v229
  %v231 = vpop.f32.mrf.mxu0
  %v232 = vpop.f32.mrf.mxu0
  %v233 = vadd.f32 0.0, %v232
  %v234 = vpop.f32.mrf.mxu0
  %235 = vmatprep.mubr.bf16.mxu0 0
  %236 = vmatmul.mubr.bf16.gmra.mxu0 %v118
  %v237 = vpop.f32.mrf.mxu0
  %v238 = vadd.f32 0.0, %v237
  %v239 = vpop.f32.mrf.mxu0
  %v240 = vpop.f32.mrf.mxu0
  %v241 = vadd.f32 0.0, %v240
  %v242 = vpop.f32.mrf.mxu0
  %243 = vmatprep.mubr.bf16.mxu0 0
  %244 = vmatmul.mubr.bf16.gmra.mxu0 %v119
  %v245 = vpop.f32.mrf.mxu0
  %v246 = vadd.f32 0.0, %v245
  %v247 = vpop.f32.mrf.mxu0
  %v248 = vpop.f32.mrf.mxu0
  %v249 = vadd.f32 0.0, %v248
  %v250 = vpop.f32.mrf.mxu0
  %251 = vmatprep.mubr.bf16.mxu0 0
  %252 = vmatmul.mubr.bf16.gmra.mxu0 %v120
  %v253 = vpop.f32.mrf.mxu0
  %v254 = vadd.f32 0.0, %v253
  %v255 = vpop.f32.mrf.mxu0
  %v256 = vpop.f32.mrf.mxu0
  %v257 = vadd.f32 0.0, %v256
  %v258 = vpop.f32.mrf.mxu0
  %259 = vmatprep.mubr.bf16.mxu0 0
  %260 = vmatmul.mubr.bf16.gmra.mxu0 %v121
  %v261 = vpop.f32.mrf.mxu0
  %v262 = vadd.f32 0.0, %v261
  %v263 = vpop.f32.mrf.mxu0
  %v264 = vpop.f32.mrf.mxu0
  %v265 = vadd.f32 0.0, %v264
  %v266 = vpop.f32.mrf.mxu0
  %267 = vmatprep.mubr.bf16.mxu0 0
  %268 = vmatmul.mubr.bf16.gmra.mxu0 %v122
  %v269 = vpop.f32.mrf.mxu0
  %v270 = vadd.f32 0.0, %v269
  %v271 = vpop.f32.mrf.mxu0
  %v272 = vpop.f32.mrf.mxu0
  %v273 = vadd.f32 0.0, %v272
  %v274 = vpop.f32.mrf.mxu0
  %275 = vdwg.mxu0
  %v276 = vadd.f32 %v35, %v214
  %v277 = vadd.f32 %v36, %v217
  %v278 = vadd.f32 %v37, %v222
  %v279 = vadd.f32 %v38, %v225
  %v280 = vadd.f32 %v39, %v230
  %v281 = vadd.f32 %v40, %v233
  %v282 = vadd.f32 %v41, %v238
  %v283 = vadd.f32 %v42, %v241
  %v284 = vadd.f32 %v43, %v246
  %v285 = vadd.f32 %v44, %v249
  %v286 = vadd.f32 %v45, %v254
  %v287 = vadd.f32 %v46, %v257
  %v288 = vadd.f32 %v47, %v262
  %v289 = vadd.f32 %v48, %v265
  %v290 = vadd.f32 %v49, %v270
  %v291 = vadd.f32 %v50, %v273
  %292 = vst [vmem:[#allocation2] sm:$0xff] %v276
  %293 = vst [vmem:[#allocation2 + $0x8] sm:$0xff] %v277
  %294 = vst [vmem:[#allocation2 + $0x10] sm:$0xff] %v278
  %295 = vst [vmem:[#allocation2 + $0x18] sm:$0xff] %v279
  %296 = vst [vmem:[#allocation2 + $0x20] sm:$0xff] %v280
  %297 = vst [vmem:[#allocation2 + $0x28] sm:$0xff] %v281
  %298 = vst [vmem:[#allocation2 + $0x30] sm:$0xff] %v282
  %299 = vst [vmem:[#allocation2 + $0x38] sm:$0xff] %v283
  %300 = vst [vmem:[#allocation2 + $0x40] sm:$0xff] %v284
  %301 = vst [vmem:[#allocation2 + $0x48] sm:$0xff] %v285
  %302 = vst [vmem:[#allocation2 + $0x50] sm:$0xff] %v286
  %303 = vst [vmem:[#allocation2 + $0x58] sm:$0xff] %v287
  %304 = vst [vmem:[#allocation2 + $0x60] sm:$0xff] %v288
  %305 = vst [vmem:[#allocation2 + $0x68] sm:$0xff] %v289
  %306 = vst [vmem:[#allocation2 + $0x70] sm:$0xff] %v290
  %307 = vst [vmem:[#allocation2 + $0x78] sm:$0xff] %v291
  // Predicated region
  $region18: #{_lambda_.13} parent=0 // pred_check
    %p308 = pneg %p15
  $region19: #{_lambda_.13} parent=0 // pred_check_branch
    %310 = sbr.rel (%p308) target = $region21
  $region20: #{_lambda_.13} parent=0 // pred_region
    %v311 = vld [vmem:[#allocation2] sm:$0xff]
    %v312 = vld [vmem:[#allocation2 + $0x8] sm:$0xff]
    %v313 = vld [vmem:[#allocation2 + $0x10] sm:$0xff]
    %v314 = vld [vmem:[#allocation2 + $0x18] sm:$0xff]
    %v315 = vld [vmem:[#allocation2 + $0x20] sm:$0xff]
    %v316 = vld [vmem:[#allocation2 + $0x28] sm:$0xff]
    %v317 = vld [vmem:[#allocation2 + $0x30] sm:$0xff]
    %v318 = vld [vmem:[#allocation2 + $0x38] sm:$0xff]
    %v319 = vld [vmem:[#allocation2 + $0x40] sm:$0xff]
    %v320 = vld [vmem:[#allocation2 + $0x48] sm:$0xff]
    %v321 = vld [vmem:[#allocation2 + $0x50] sm:$0xff]
    %v322 = vld [vmem:[#allocation2 + $0x58] sm:$0xff]
    %v323 = vld [vmem:[#allocation2 + $0x60] sm:$0xff]
    %v324 = vld [vmem:[#allocation2 + $0x68] sm:$0xff]
    %v325 = vld [vmem:[#allocation2 + $0x70] sm:$0xff]
    %v326 = vld [vmem:[#allocation2 + $0x78] sm:$0xff]
    %v327 = vld [vmem:[%s2] sm:$0x1]
    %v329 = vlaneseq
    %v330 = vshrl.u32 %v329, 7
    %v331 = vsub.s32 0, %v330
    %v332 = vrot.slane %v327, %v331
    %v334 = vadd.f32 %v311, %v332
    %v335 = vadd.f32 %v312, %v332
    %v336 = vadd.f32 %v313, %v332
    %v337 = vadd.f32 %v314, %v332
    %v338 = vadd.f32 %v315, %v332
    %v339 = vadd.f32 %v316, %v332
    %v340 = vadd.f32 %v317, %v332
    %v341 = vadd.f32 %v318, %v332
    %v342 = vadd.f32 %v319, %v332
    %v343 = vadd.f32 %v320, %v332
    %v344 = vadd.f32 %v321, %v332
    %v345 = vadd.f32 %v322, %v332
    %v346 = vadd.f32 %v323, %v332
    %v347 = vadd.f32 %v324, %v332
    %v348 = vadd.f32 %v325, %v332
    %v349 = vadd.f32 %v326, %v332
    %v350 = vmax.f32 %v334, 0.0
    %v351 = vmax.f32 %v335, 0.0
    %v352 = vmax.f32 %v336, 0.0
    %v353 = vmax.f32 %v337, 0.0
    %v354 = vmax.f32 %v338, 0.0
    %v355 = vmax.f32 %v339, 0.0
    %v356 = vmax.f32 %v340, 0.0
    %v357 = vmax.f32 %v341, 0.0
    %v358 = vmax.f32 %v342, 0.0
    %v359 = vmax.f32 %v343, 0.0
    %v360 = vmax.f32 %v344, 0.0
    %v361 = vmax.f32 %v345, 0.0
    %v362 = vmax.f32 %v346, 0.0
    %v363 = vmax.f32 %v347, 0.0
    %v364 = vmax.f32 %v348, 0.0
    %v365 = vmax.f32 %v349, 0.0
    %v366 = vpack.c.bf16 %v351, %v350
    %v367 = vpack.c.bf16 %v353, %v352
    %v368 = vpack.c.bf16 %v355, %v354
    %v369 = vpack.c.bf16 %v357, %v356
    %v370 = vpack.c.bf16 %v359, %v358
    %v371 = vpack.c.bf16 %v361, %v360
    %v372 = vpack.c.bf16 %v363, %v362
    %v373 = vpack.c.bf16 %v365, %v364
    %v382 = vunpack.c.l.b16 %v366
    %v383 = vunpack.c.h.b16 %v366
    %v384 = vunpack.c.l.b16 %v367
    %v385 = vunpack.c.h.b16 %v367
    %v386 = vunpack.c.l.b16 %v368
    %v387 = vunpack.c.h.b16 %v368
    %v388 = vunpack.c.l.b16 %v369
    %v389 = vunpack.c.h.b16 %v369
    %v390 = vunpack.c.l.b16 %v370
    %v391 = vunpack.c.h.b16 %v370
    %v392 = vunpack.c.l.b16 %v371
    %v393 = vunpack.c.h.b16 %v371
    %v394 = vunpack.c.l.b16 %v372
    %v395 = vunpack.c.h.b16 %v372
    %v396 = vunpack.c.l.b16 %v373
    %v397 = vunpack.c.h.b16 %v373
    %v398 = vpack.c.b16 %v382, %v382
    %v399 = vpack.c.b16 %v383, %v383
    %v400 = vpack.c.b16 %v384, %v384
    %v401 = vpack.c.b16 %v385, %v385
    %v402 = vpack.c.b16 %v386, %v386
    %v403 = vpack.c.b16 %v387, %v387
    %v404 = vpack.c.b16 %v388, %v388
    %v405 = vpack.c.b16 %v389, %v389
    %v406 = vpack.c.b16 %v390, %v390
    %v407 = vpack.c.b16 %v391, %v391
    %v408 = vpack.c.b16 %v392, %v392
    %v409 = vpack.c.b16 %v393, %v393
    %v410 = vpack.c.b16 %v394, %v394
    %v411 = vpack.c.b16 %v395, %v395
    %v412 = vpack.c.b16 %v396, %v396
    %v413 = vpack.c.b16 %v397, %v397
    %430 = vst [vmem:[%s3] sm:$0xf] %v398
    %431 = vst [vmem:[%s3 + $0x4] sm:$0xf] %v399
    %432 = vst [vmem:[%s3 + $0x8] sm:$0xf] %v400
    %433 = vst [vmem:[%s3 + $0xc] sm:$0xf] %v401
    %434 = vst [vmem:[%s3 + $0x10] sm:$0xf] %v402
    %435 = vst [vmem:[%s3 + $0x14] sm:$0xf] %v403
    %436 = vst [vmem:[%s3 + $0x18] sm:$0xf] %v404
    %437 = vst [vmem:[%s3 + $0x1c] sm:$0xf] %v405
    %438 = vst [vmem:[%s3 + $0x20] sm:$0xf] %v406
    %439 = vst [vmem:[%s3 + $0x24] sm:$0xf] %v407
    %440 = vst [vmem:[%s3 + $0x28] sm:$0xf] %v408
    %441 = vst [vmem:[%s3 + $0x2c] sm:$0xf] %v409
    %442 = vst [vmem:[%s3 + $0x30] sm:$0xf] %v410
    %443 = vst [vmem:[%s3 + $0x34] sm:$0xf] %v411
    %444 = vst [vmem:[%s3 + $0x38] sm:$0xf] %v412
    %445 = vst [vmem:[%s3 + $0x3c] sm:$0xf] %v413
  $region21: #{_lambda_.13} parent=0 // pred_fallthru
    _
  // Predicated region
  $region22: #{_lambda_.13} parent=0 // pred_check
    _
  $region23: #{_lambda_.13} parent=0 // pred_check_branch
    %447 = sbr.rel (0) target = $region25
  $region24: #{_lambda_.13} parent=0 // pred_region
    _
  $region25: #{_lambda_.13} parent=0 // pred_fallthru
    _
  // Predicated region
  $region26: #{_lambda_.13} parent=0 // pred_check
    _
  $region27: #{_lambda_.13} parent=0 // pred_check_branch
    %449 = sbr.rel (0) target = $region29
  $region28: #{_lambda_.13} parent=0 // pred_region
    _
  $region29: #{_lambda_.13} parent=0 // pred_fallthru
    _

</llo_original>
